<compile_context>
chip_gen: v5e
topology: v5e:2x2
jax: 0.10.0
libtpu: 0.0.40
codegen_flags: <defaults>
</compile_context>

<pallas_src>
import jax
import jax.numpy as jnp
from jax import lax
from jax.experimental import pallas as pl
from jax.experimental.pallas import tpu as pltpu

# ------------------------------ configuration --------------------------------
B = 2             # batch
N_IN = 1          # input channels
H = W = 16        # spatial
N_CONV = 4        # conv output channels
KH = KW = 3
OH, OW = H - KH + 1, W - KW + 1
N_TAPS = N_IN * KH * KW
MAX_SEQ = 64      # max_sequence == seq_size of the classifier
N_DIAG = 4        # diagram feature dim (birth, death, hom_dim, batch_idx)
N_HIDDEN = 32
N_OUT = 4
NHEAD = 2
NUM_LAYERS = 2
DIM_FF = 16
DH = N_HIDDEN // NHEAD
LN_EPS = 1e-5
INV_SQRT_DH = 1.0 / float(DH) ** 0.5

assert OH * OW >= MAX_SEQ  # surrogate always hits the truncation branch

# ------------------------- parameter slab layout ------------------------------
# Weight slab (bf16, 128 lanes wide).  All row offsets are multiples of 16
# (bf16 sublane packing).
W_FUSED_R = 0                                   # (N_TAPS, N_HIDDEN)
WQKV_R = 16                                     # per layer: (32, 96)
WO_R = WQKV_R + NUM_LAYERS * N_HIDDEN           # per layer: (32, 32)
LIN1_R = WO_R + NUM_LAYERS * N_HIDDEN           # per layer: (32, 16)
LIN2_R = LIN1_R + NUM_LAYERS * N_HIDDEN         # per layer: (16, 32)
W_ROWS = LIN2_R + NUM_LAYERS * DIM_FF           # 240

# Bias / LayerNorm slab (f32, 128 lanes wide), one row per parameter vector.
B_FUSED = 0
B_QKV = 1
B_BO = B_QKV + NUM_LAYERS
B_LN1W = B_BO + NUM_LAYERS
B_LN1B = B_LN1W + NUM_LAYERS
B_L1B = B_LN1B + NUM_LAYERS
B_L2B = B_L1B + NUM_LAYERS
B_LN2W = B_L2B + NUM_LAYERS
B_LN2B = B_LN2W + NUM_LAYERS
B_CLSB = B_LN2B + NUM_LAYERS
B_CLSW = 24                                     # classifier weight (64, 4)
B_ROWS = B_CLSW + MAX_SEQ                       # 88


# ------------------------------- fused kernel --------------------------------
def _layer_norm(x, w, b):
    mu = jnp.mean(x, axis=-1, keepdims=True)
    var = jnp.mean((x - mu) ** 2, axis=-1, keepdims=True)
    return (x - mu) * lax.rsqrt(var + LN_EPS) * w + b


def fused_kernel(patches_ref, wslab_ref, bslab_ref, o_ref):
    f32 = jnp.float32
    bf16 = jnp.bfloat16

    # ---- conv -> diagram surrogate -> embedding, folded into ONE matmul ----
    # TODO(synk): the original ConvDiagram calls an external persistent-homology
    # `diagram(...)` with data-dependent point counts; no JAX/Pallas equivalent,
    # so rows are (birth, death, hom_dim, idx) = (v, v, 0, 0) built from the
    # first MAX_SEQ flattened conv-channel-0 activations.  That surrogate (and
    # the /256 scaling and the embedding Linear) are algebraically folded into
    # W_fused / b_fused at init time.
    w_fused = wslab_ref[W_FUSED_R:W_FUSED_R + N_TAPS, 0:N_HIDDEN]        # bf16 (9,32)
    h = jnp.dot(patches_ref[...].astype(bf16), w_fused,
                preferred_element_type=f32)
    h = h + bslab_ref[B_FUSED:B_FUSED + 1, 0:N_HIDDEN]                   # (B*S, d)

    # ---- transformer encoder layers (post-norm, relu FFN, no dropout) ----
    for l in range(NUM_LAYERS):
        # fused Q|K|V projection: one (128,32)x(32,96) MXU matmul
        wqkv = wslab_ref[WQKV_R + l * N_HIDDEN:WQKV_R + (l + 1) * N_HIDDEN,
                         0:3 * N_HIDDEN]
        qkv = jnp.dot(h.astype(bf16), wqkv, preferred_element_type=f32)
        qkv = qkv + bslab_ref[B_QKV + l:B_QKV + l + 1, 0:3 * N_HIDDEN]

        ctx_heads = []
        for hd in range(NHEAD):
            q = qkv[:, hd * DH:(hd + 1) * DH]                      # 1/sqrt(dh) folded
            k = qkv[:, N_HIDDEN + hd * DH:N_HIDDEN + (hd + 1) * DH]
            v = qkv[:, 2 * N_HIDDEN + hd * DH:2 * N_HIDDEN + (hd + 1) * DH]
            q3 = q.reshape(B, MAX_SEQ, DH).astype(bf16)
            k3 = k.reshape(B, MAX_SEQ, DH).astype(bf16)
            v3 = v.reshape(B, MAX_SEQ, DH).astype(bf16)
            s = jnp.einsum('bqd,bkd->bqk', q3, k3, preferred_element_type=f32)
            s = s - jnp.max(s, axis=-1, keepdims=True)
            e = jnp.exp(s)
            p = e * pl.reciprocal(jnp.sum(e, axis=-1, keepdims=True), approx=True)
            ctx = jnp.einsum('bqk,bkd->bqd', p.astype(bf16), v3,
                             preferred_element_type=f32)
            ctx_heads.append(ctx.reshape(B * MAX_SEQ, DH))
        ctx_all = jnp.concatenate(ctx_heads, axis=-1)              # (B*S, d)

        # fused out-projection: one (128,32)x(32,32) MXU matmul
        wo = wslab_ref[WO_R + l * N_HIDDEN:WO_R + (l + 1) * N_HIDDEN, 0:N_HIDDEN]
        attn = jnp.dot(ctx_all.astype(bf16), wo, preferred_element_type=f32)
        attn = attn + bslab_ref[B_BO + l:B_BO + l + 1, 0:N_HIDDEN]

        h = _layer_norm(h + attn,
                        bslab_ref[B_LN1W + l:B_LN1W + l + 1, 0:N_HIDDEN],
                        bslab_ref[B_LN1B + l:B_LN1B + l + 1, 0:N_HIDDEN])

        # FFN
        w1 = wslab_ref[LIN1_R + l * N_HIDDEN:LIN1_R + (l + 1) * N_HIDDEN, 0:DIM_FF]
        w2 = wslab_ref[LIN2_R + l * DIM_FF:LIN2_R + (l + 1) * DIM_FF, 0:N_HIDDEN]
        ff = jnp.dot(h.astype(bf16), w1, preferred_element_type=f32)
        ff = ff + bslab_ref[B_L1B + l:B_L1B + l + 1, 0:DIM_FF]
        ff = jnp.maximum(ff, 0.0)
        ff = jnp.dot(ff.astype(bf16), w2, preferred_element_type=f32)
        ff = ff + bslab_ref[B_L2B + l:B_L2B + l + 1, 0:N_HIDDEN]

        h = _layer_norm(h + ff,
                        bslab_ref[B_LN2W + l:B_LN2W + l + 1, 0:N_HIDDEN],
                        bslab_ref[B_LN2B + l:B_LN2B + l + 1, 0:N_HIDDEN])

    # ---- mean over hidden -> classifier Linear(max_seq, n_out) -> softmax ----
    m = jnp.mean(h, axis=-1, keepdims=True)                        # (B*S, 1) f32
    m3 = m.reshape(B, MAX_SEQ, 1)                                  # (B, S, 1)
    cls_w = bslab_ref[B_CLSW:B_CLSW + MAX_SEQ, 0:N_OUT]            # (S, N_OUT) f32
    logits = jnp.sum(m3 * cls_w, axis=1)                           # (B, N_OUT)
    logits = logits + bslab_ref[B_CLSB:B_CLSB + 1, 0:N_OUT]
    z = logits - jnp.max(logits, axis=-1, keepdims=True)
    ez = jnp.exp(z)
    o_ref[...] = ez / jnp.sum(ez, axis=-1, keepdims=True)          # exact (8 values)


# --------------------------------- wrapper ------------------------------------
def _im2col_first_rows(xs):
    """Gather 3x3 patches for the first MAX_SEQ conv output pixels.

    Pure layout plumbing (indexing only, no arithmetic): the /256 scaling and
    the conv / embedding weights live inside the kernel's fused matmul."""
    bsz = xs.shape[0]
    cols = []
    for ci in range(N_IN):
        for dy in range(KH):
            for dx in range(KW):
                p = xs[:, ci, dy:dy + OH, dx:dx + OW]               # (B, OH, OW)
                cols.append(p.reshape(bsz, OH * OW)[:, :MAX_SEQ])   # (B, MAX_SEQ)
    patches = jnp.stack(cols, axis=-1)                              # (B, S, N_TAPS)
    return patches.reshape(bsz * MAX_SEQ, N_TAPS)                   # (B*S, N_TAPS)


def topological_conv_transformer_pallas(xs, wslab, bslab):
    patches = _im2col_first_rows(xs.astype(jnp.float32))
    vmem = pl.BlockSpec(memory_space=pltpu.MemorySpace.VMEM)
    return pl.pallas_call(
        fused_kernel,
        out_shape=jax.ShapeDtypeStruct((xs.shape[0], N_OUT), jnp.float32),
        in_specs=[vmem, vmem, vmem],
        out_specs=vmem,
    )(patches, wslab, bslab)


# ------------------------------- parameters -----------------------------------
def init_params(key):
    ks = iter(jax.random.split(key, 64))

    def nrm(shape, scale=0.1):
        return scale * jax.random.normal(next(ks), shape, jnp.float32)

    wslab = jnp.zeros((W_ROWS, 128), jnp.bfloat16)
    bslab = jnp.zeros((B_ROWS, 128), jnp.float32)

    def wput(slab, row, arr):
        return slab.at[row:row + arr.shape[0], 0:arr.shape[1]].set(
            arr.astype(jnp.bfloat16))

    def bput(slab, row, vec):
        vec = vec.reshape(1, -1)
        return slab.at[row:row + 1, 0:vec.shape[1]].set(vec.astype(jnp.float32))

    # conv (PyTorch layout) -> im2col form, then fold conv+surrogate+embedding
    conv_w = nrm((N_CONV, N_IN, KH, KW), 0.2)
    conv_wt = conv_w.transpose(1, 2, 3, 0).reshape(N_TAPS, N_CONV)
    conv_b = nrm((N_CONV,), 0.05)
    emb_wt = nrm((N_DIAG, N_HIDDEN))           # x @ emb_wt (pre-transposed Linear)
    emb_b = nrm((N_HIDDEN,), 0.01)
    # surrogate feats = [v, v, 0, 0]  =>  emb(feats) = v*(emb_wt[0]+emb_wt[1]) + emb_b
    e_sum = emb_wt[0] + emb_wt[1]
    w_fused = (conv_wt[:, 0:1] * (1.0 / 256.0)) * e_sum[None, :]   # (N_TAPS, d)
    b_fused = conv_b[0] * e_sum + emb_b                            # (d,)
    wslab = wput(wslab, W_FUSED_R, w_fused)
    bslab = bput(bslab, B_FUSED, b_fused)

    for l in range(NUM_LAYERS):
        wq, bq = nrm((N_HIDDEN, N_HIDDEN)), nrm((N_HIDDEN,), 0.01)
        wk, bk = nrm((N_HIDDEN, N_HIDDEN)), nrm((N_HIDDEN,), 0.01)
        wv, bv = nrm((N_HIDDEN, N_HIDDEN)), nrm((N_HIDDEN,), 0.01)
        # fold 1/sqrt(d_head) into the Q projection
        wqkv = jnp.concatenate([wq * INV_SQRT_DH, wk, wv], axis=1)  # (32, 96)
        bqkv = jnp.concatenate([bq * INV_SQRT_DH, bk, bv])          # (96,)
        wslab = wput(wslab, WQKV_R + l * N_HIDDEN, wqkv)
        bslab = bput(bslab, B_QKV + l, bqkv)

        wo, bo = nrm((N_HIDDEN, N_HIDDEN)), nrm((N_HIDDEN,), 0.01)
        wslab = wput(wslab, WO_R + l * N_HIDDEN, wo)
        bslab = bput(bslab, B_BO + l, bo)

        bslab = bput(bslab, B_LN1W + l, jnp.ones((N_HIDDEN,), jnp.float32))
        bslab = bput(bslab, B_LN1B + l, jnp.zeros((N_HIDDEN,), jnp.float32))

        w1, b1 = nrm((N_HIDDEN, DIM_FF)), nrm((DIM_FF,), 0.01)
        w2, b2 = nrm((DIM_FF, N_HIDDEN)), nrm((N_HIDDEN,), 0.01)
        wslab = wput(wslab, LIN1_R + l * N_HIDDEN, w1)
        bslab = bput(bslab, B_L1B + l, b1)
        wslab = wput(wslab, LIN2_R + l * DIM_FF, w2)
        bslab = bput(bslab, B_L2B + l, b2)

        bslab = bput(bslab, B_LN2W + l, jnp.ones((N_HIDDEN,), jnp.float32))
        bslab = bput(bslab, B_LN2B + l, jnp.zeros((N_HIDDEN,), jnp.float32))

    cls_w, cls_b = nrm((MAX_SEQ, N_OUT)), nrm((N_OUT,), 0.01)
    bslab = bslab.at[B_CLSW:B_CLSW + MAX_SEQ, 0:N_OUT].set(cls_w)
    bslab = bput(bslab, B_CLSB, cls_b)

    return {'wslab': wslab, 'bslab': bslab}


# ------------------------------- full forward ----------------------------------
@jax.jit
def topological_conv_transformer(xs, params):
    return topological_conv_transformer_pallas(xs, params['wslab'],
                                               params['bslab'])   # (B, N_OUT)


if __name__ == "__main__":
    key = jax.random.PRNGKey(0)
    k_x, k_p = jax.random.split(key)
    xs = jax.random.uniform(k_x, (B, N_IN, H, W), jnp.float32, 0.0, 255.0)
    params = init_params(k_p)

    out = topological_conv_transformer(xs, params)
    out = jax.block_until_ready(out)

    assert out.shape == (B, N_OUT), out.shape
    assert bool(jnp.all(jnp.isfinite(out)))
    # each row is a softmax -> sums to 1
    assert bool(jnp.all(jnp.abs(jnp.sum(out, axis=-1) - 1.0) < 1e-3))
    print("KERNEL_OK")
</pallas_src>

<mosaic_0001>
module attributes {stable_mosaic.version = 11 : i64} {
  func.func @fused_kernel(%arg0: memref<128x9xf32, #tpu.memory_space<vmem>>, %arg1: memref<240x128xbf16, #tpu.memory_space<vmem>>, %arg2: memref<88x128xf32, #tpu.memory_space<vmem>>, %arg3: memref<2x4xf32, #tpu.memory_space<vmem>>) attributes {dimension_semantics = [], scalar_prefetch = 0 : i64, scratch_operands = 0 : i64, tpu.core_type = #tpu.core_type<tc>} {
    %c0 = arith.constant 0 : index
    %c0_0 = arith.constant 0 : index
    %0 = vector.load %arg1[%c0, %c0_0] : memref<240x128xbf16, #tpu.memory_space<vmem>>, vector<9x32xbf16>
    %c0_1 = arith.constant 0 : index
    %c0_2 = arith.constant 0 : index
    %1 = vector.load %arg0[%c0_1, %c0_2] : memref<128x9xf32, #tpu.memory_space<vmem>>, vector<128x9xf32>
    %2 = arith.truncf %1 : vector<128x9xf32> to vector<128x9xbf16>
    %cst = arith.constant dense<0.000000e+00> : vector<128x32xf32>
    %3 = tpu.matmul %2, %0, %cst {dimension_numbers = #tpu.dot_dimension_numbers<[1], [0], [0], [1], [0, 0, 1, 1], [], []>} : vector<128x9xbf16>, vector<9x32xbf16>, vector<128x32xf32> -> vector<128x32xf32>
    %c0_3 = arith.constant 0 : index
    %c0_4 = arith.constant 0 : index
    %4 = vector.load %arg2[%c0_3, %c0_4] : memref<88x128xf32, #tpu.memory_space<vmem>>, vector<1x32xf32>
    %5 = vector.broadcast %4 : vector<1x32xf32> to vector<128x32xf32>
    %6 = arith.addf %3, %5 : vector<128x32xf32>
    %c16 = arith.constant 16 : index
    %c0_5 = arith.constant 0 : index
    %7 = vector.load %arg1[%c16, %c0_5] : memref<240x128xbf16, #tpu.memory_space<vmem>>, vector<32x96xbf16>
    %8 = arith.truncf %6 : vector<128x32xf32> to vector<128x32xbf16>
    %cst_6 = arith.constant dense<0.000000e+00> : vector<128x96xf32>
    %9 = tpu.matmul %8, %7, %cst_6 {dimension_numbers = #tpu.dot_dimension_numbers<[1], [0], [0], [1], [0, 0, 1, 1], [], []>} : vector<128x32xbf16>, vector<32x96xbf16>, vector<128x96xf32> -> vector<128x96xf32>
    %c1 = arith.constant 1 : index
    %c0_7 = arith.constant 0 : index
    %10 = vector.load %arg2[%c1, %c0_7] : memref<88x128xf32, #tpu.memory_space<vmem>>, vector<1x96xf32>
    %11 = vector.broadcast %10 : vector<1x96xf32> to vector<128x96xf32>
    %12 = arith.addf %9, %11 : vector<128x96xf32>
    %13 = vector.extract_strided_slice %12 {offsets = [0, 0], sizes = [128, 16], strides = [1, 1]} : vector<128x96xf32> to vector<128x16xf32>
    %14 = vector.extract_strided_slice %12 {offsets = [0, 32], sizes = [128, 16], strides = [1, 1]} : vector<128x96xf32> to vector<128x16xf32>
    %15 = vector.extract_strided_slice %12 {offsets = [0, 64], sizes = [128, 16], strides = [1, 1]} : vector<128x96xf32> to vector<128x16xf32>
    %16 = vector.shape_cast %13 : vector<128x16xf32> to vector<2x64x16xf32>
    %17 = arith.truncf %16 : vector<2x64x16xf32> to vector<2x64x16xbf16>
    %18 = vector.shape_cast %14 : vector<128x16xf32> to vector<2x64x16xf32>
    %19 = arith.truncf %18 : vector<2x64x16xf32> to vector<2x64x16xbf16>
    %20 = vector.shape_cast %15 : vector<128x16xf32> to vector<2x64x16xf32>
    %21 = arith.truncf %20 : vector<2x64x16xf32> to vector<2x64x16xbf16>
    "tpu.trace_start"() <{level = 10 : i32, message = "bqd,bkd->bqk"}> : () -> ()
    %cst_8 = arith.constant dense<0.000000e+00> : vector<2x64x64xf32>
    %22 = tpu.matmul %17, %19, %cst_8 {dimension_numbers = #tpu.dot_dimension_numbers<[2], [2], [1], [1], [0, 0, 0, 1, 1, 1], [0], [0]>} : vector<2x64x16xbf16>, vector<2x64x16xbf16>, vector<2x64x64xf32> -> vector<2x64x64xf32>
    "tpu.trace_stop"() : () -> ()
    %cst_9 = arith.constant dense<0xFF800000> : vector<2x64xf32>
    %23 = vector.multi_reduction <maximumf>, %22, %cst_9 [2] : vector<2x64x64xf32> to vector<2x64xf32>
    %24 = vector.shape_cast %23 : vector<2x64xf32> to vector<2x64x1xf32>
    %25 = vector.broadcast %24 : vector<2x64x1xf32> to vector<2x64x64xf32>
    %26 = arith.subf %22, %25 : vector<2x64x64xf32>
    %27 = math.exp %26 : vector<2x64x64xf32>
    %cst_10 = arith.constant dense<0.000000e+00> : vector<2x64xf32>
    %28 = vector.multi_reduction <add>, %27, %cst_10 [2] : vector<2x64x64xf32> to vector<2x64xf32>
    %29 = vector.shape_cast %28 : vector<2x64xf32> to vector<2x64x1xf32>
    %30 = tpu.reciprocal %29 {approx = true} : vector<2x64x1xf32> -> vector<2x64x1xf32>
    %31 = vector.broadcast %30 : vector<2x64x1xf32> to vector<2x64x64xf32>
    %32 = arith.mulf %27, %31 : vector<2x64x64xf32>
    %33 = arith.truncf %32 : vector<2x64x64xf32> to vector<2x64x64xbf16>
    "tpu.trace_start"() <{level = 10 : i32, message = "bqk,bkd->bqd"}> : () -> ()
    %cst_11 = arith.constant dense<0.000000e+00> : vector<2x64x16xf32>
    %34 = tpu.matmul %33, %21, %cst_11 {dimension_numbers = #tpu.dot_dimension_numbers<[2], [1], [1], [2], [0, 0, 0, 1, 1, 2], [0], [0]>} : vector<2x64x64xbf16>, vector<2x64x16xbf16>, vector<2x64x16xf32> -> vector<2x64x16xf32>
    "tpu.trace_stop"() : () -> ()
    %35 = vector.shape_cast %34 : vector<2x64x16xf32> to vector<128x16xf32>
    %36 = vector.extract_strided_slice %12 {offsets = [0, 16], sizes = [128, 16], strides = [1, 1]} : vector<128x96xf32> to vector<128x16xf32>
    %37 = vector.extract_strided_slice %12 {offsets = [0, 48], sizes = [128, 16], strides = [1, 1]} : vector<128x96xf32> to vector<128x16xf32>
    %38 = vector.extract_strided_slice %12 {offsets = [0, 80], sizes = [128, 16], strides = [1, 1]} : vector<128x96xf32> to vector<128x16xf32>
    %39 = vector.shape_cast %36 : vector<128x16xf32> to vector<2x64x16xf32>
    %40 = arith.truncf %39 : vector<2x64x16xf32> to vector<2x64x16xbf16>
    %41 = vector.shape_cast %37 : vector<128x16xf32> to vector<2x64x16xf32>
    %42 = arith.truncf %41 : vector<2x64x16xf32> to vector<2x64x16xbf16>
    %43 = vector.shape_cast %38 : vector<128x16xf32> to vector<2x64x16xf32>
    %44 = arith.truncf %43 : vector<2x64x16xf32> to vector<2x64x16xbf16>
    "tpu.trace_start"() <{level = 10 : i32, message = "bqd,bkd->bqk"}> : () -> ()
    %cst_12 = arith.constant dense<0.000000e+00> : vector<2x64x64xf32>
    %45 = tpu.matmul %40, %42, %cst_12 {dimension_numbers = #tpu.dot_dimension_numbers<[2], [2], [1], [1], [0, 0, 0, 1, 1, 1], [0], [0]>} : vector<2x64x16xbf16>, vector<2x64x16xbf16>, vector<2x64x64xf32> -> vector<2x64x64xf32>
    "tpu.trace_stop"() : () -> ()
    %cst_13 = arith.constant dense<0xFF800000> : vector<2x64xf32>
    %46 = vector.multi_reduction <maximumf>, %45, %cst_13 [2] : vector<2x64x64xf32> to vector<2x64xf32>
    %47 = vector.shape_cast %46 : vector<2x64xf32> to vector<2x64x1xf32>
    %48 = vector.broadcast %47 : vector<2x64x1xf32> to vector<2x64x64xf32>
    %49 = arith.subf %45, %48 : vector<2x64x64xf32>
    %50 = math.exp %49 : vector<2x64x64xf32>
    %cst_14 = arith.constant dense<0.000000e+00> : vector<2x64xf32>
    %51 = vector.multi_reduction <add>, %50, %cst_14 [2] : vector<2x64x64xf32> to vector<2x64xf32>
    %52 = vector.shape_cast %51 : vector<2x64xf32> to vector<2x64x1xf32>
    %53 = tpu.reciprocal %52 {approx = true} : vector<2x64x1xf32> -> vector<2x64x1xf32>
    %54 = vector.broadcast %53 : vector<2x64x1xf32> to vector<2x64x64xf32>
    %55 = arith.mulf %50, %54 : vector<2x64x64xf32>
    %56 = arith.truncf %55 : vector<2x64x64xf32> to vector<2x64x64xbf16>
    "tpu.trace_start"() <{level = 10 : i32, message = "bqk,bkd->bqd"}> : () -> ()
    %cst_15 = arith.constant dense<0.000000e+00> : vector<2x64x16xf32>
    %57 = tpu.matmul %56, %44, %cst_15 {dimension_numbers = #tpu.dot_dimension_numbers<[2], [1], [1], [2], [0, 0, 0, 1, 1, 2], [0], [0]>} : vector<2x64x64xbf16>, vector<2x64x16xbf16>, vector<2x64x16xf32> -> vector<2x64x16xf32>
    "tpu.trace_stop"() : () -> ()
    %58 = vector.shape_cast %57 : vector<2x64x16xf32> to vector<128x16xf32>
    %59 = tpu.concatenate %35, %58 in 1 : vector<128x16xf32>, vector<128x16xf32> -> vector<128x32xf32>
    %c80 = arith.constant 80 : index
    %c0_16 = arith.constant 0 : index
    %60 = vector.load %arg1[%c80, %c0_16] : memref<240x128xbf16, #tpu.memory_space<vmem>>, vector<32x32xbf16>
    %61 = arith.truncf %59 : vector<128x32xf32> to vector<128x32xbf16>
    %cst_17 = arith.constant dense<0.000000e+00> : vector<128x32xf32>
    %62 = tpu.matmul %61, %60, %cst_17 {dimension_numbers = #tpu.dot_dimension_numbers<[1], [0], [0], [1], [0, 0, 1, 1], [], []>} : vector<128x32xbf16>, vector<32x32xbf16>, vector<128x32xf32> -> vector<128x32xf32>
    %c3 = arith.constant 3 : index
    %c0_18 = arith.constant 0 : index
    %63 = vector.load %arg2[%c3, %c0_18] : memref<88x128xf32, #tpu.memory_space<vmem>>, vector<1x32xf32>
    %64 = vector.broadcast %63 : vector<1x32xf32> to vector<128x32xf32>
    %65 = arith.addf %62, %64 : vector<128x32xf32>
    %66 = arith.addf %6, %65 : vector<128x32xf32>
    %c5 = arith.constant 5 : index
    %c0_19 = arith.constant 0 : index
    %67 = vector.load %arg2[%c5, %c0_19] : memref<88x128xf32, #tpu.memory_space<vmem>>, vector<1x32xf32>
    %c7 = arith.constant 7 : index
    %c0_20 = arith.constant 0 : index
    %68 = vector.load %arg2[%c7, %c0_20] : memref<88x128xf32, #tpu.memory_space<vmem>>, vector<1x32xf32>
    %cst_21 = arith.constant dense<0.000000e+00> : vector<128xf32>
    %69 = vector.multi_reduction <add>, %66, %cst_21 [1] : vector<128x32xf32> to vector<128xf32>
    %70 = vector.shape_cast %69 : vector<128xf32> to vector<128x1xf32>
    %cst_22 = arith.constant 3.200000e+01 : f32
    %71 = vector.broadcast %cst_22 : f32 to vector<128x1xf32>
    %72 = arith.divf %70, %71 : vector<128x1xf32>
    %73 = vector.broadcast %72 : vector<128x1xf32> to vector<128x32xf32>
    %74 = arith.subf %66, %73 : vector<128x32xf32>
    %75 = arith.mulf %74, %74 : vector<128x32xf32>
    %cst_23 = arith.constant dense<0.000000e+00> : vector<128xf32>
    %76 = vector.multi_reduction <add>, %75, %cst_23 [1] : vector<128x32xf32> to vector<128xf32>
    %77 = vector.shape_cast %76 : vector<128xf32> to vector<128x1xf32>
    %cst_24 = arith.constant 3.200000e+01 : f32
    %78 = vector.broadcast %cst_24 : f32 to vector<128x1xf32>
    %79 = arith.divf %77, %78 : vector<128x1xf32>
    %80 = vector.broadcast %72 : vector<128x1xf32> to vector<128x32xf32>
    %81 = arith.subf %66, %80 : vector<128x32xf32>
    %cst_25 = arith.constant 9.99999974E-6 : f32
    %82 = vector.broadcast %cst_25 : f32 to vector<128x1xf32>
    %83 = arith.addf %79, %82 : vector<128x1xf32>
    %84 = math.rsqrt %83 : vector<128x1xf32>
    %85 = vector.broadcast %84 : vector<128x1xf32> to vector<128x32xf32>
    %86 = arith.mulf %81, %85 : vector<128x32xf32>
    %87 = vector.broadcast %67 : vector<1x32xf32> to vector<128x32xf32>
    %88 = arith.mulf %86, %87 : vector<128x32xf32>
    %89 = vector.broadcast %68 : vector<1x32xf32> to vector<128x32xf32>
    %90 = arith.addf %88, %89 : vector<128x32xf32>
    %c144 = arith.constant 144 : index
    %c0_26 = arith.constant 0 : index
    %91 = vector.load %arg1[%c144, %c0_26] : memref<240x128xbf16, #tpu.memory_space<vmem>>, vector<32x16xbf16>
    %c208 = arith.constant 208 : index
    %c0_27 = arith.constant 0 : index
    %92 = vector.load %arg1[%c208, %c0_27] : memref<240x128xbf16, #tpu.memory_space<vmem>>, vector<16x32xbf16>
    %93 = arith.truncf %90 : vector<128x32xf32> to vector<128x32xbf16>
    %cst_28 = arith.constant dense<0.000000e+00> : vector<128x16xf32>
    %94 = tpu.matmul %93, %91, %cst_28 {dimension_numbers = #tpu.dot_dimension_numbers<[1], [0], [0], [1], [0, 0, 1, 1], [], []>} : vector<128x32xbf16>, vector<32x16xbf16>, vector<128x16xf32> -> vector<128x16xf32>
    %c9 = arith.constant 9 : index
    %c0_29 = arith.constant 0 : index
    %95 = vector.load %arg2[%c9, %c0_29] : memref<88x128xf32, #tpu.memory_space<vmem>>, vector<1x16xf32>
    %96 = vector.broadcast %95 : vector<1x16xf32> to vector<128x16xf32>
    %97 = arith.addf %94, %96 : vector<128x16xf32>
    %cst_30 = arith.constant 0.000000e+00 : f32
    %98 = vector.broadcast %cst_30 : f32 to vector<128x16xf32>
    %99 = arith.maximumf %97, %98 : vector<128x16xf32>
    %100 = arith.truncf %99 : vector<128x16xf32> to vector<128x16xbf16>
    %cst_31 = arith.constant dense<0.000000e+00> : vector<128x32xf32>
    %101 = tpu.matmul %100, %92, %cst_31 {dimension_numbers = #tpu.dot_dimension_numbers<[1], [0], [0], [1], [0, 0, 1, 1], [], []>} : vector<128x16xbf16>, vector<16x32xbf16>, vector<128x32xf32> -> vector<128x32xf32>
    %c11 = arith.constant 11 : index
    %c0_32 = arith.constant 0 : index
    %102 = vector.load %arg2[%c11, %c0_32] : memref<88x128xf32, #tpu.memory_space<vmem>>, vector<1x32xf32>
    %103 = vector.broadcast %102 : vector<1x32xf32> to vector<128x32xf32>
    %104 = arith.addf %101, %103 : vector<128x32xf32>
    %105 = arith.addf %90, %104 : vector<128x32xf32>
    %c13 = arith.constant 13 : index
    %c0_33 = arith.constant 0 : index
    %106 = vector.load %arg2[%c13, %c0_33] : memref<88x128xf32, #tpu.memory_space<vmem>>, vector<1x32xf32>
    %c15 = arith.constant 15 : index
    %c0_34 = arith.constant 0 : index
    %107 = vector.load %arg2[%c15, %c0_34] : memref<88x128xf32, #tpu.memory_space<vmem>>, vector<1x32xf32>
    %cst_35 = arith.constant dense<0.000000e+00> : vector<128xf32>
    %108 = vector.multi_reduction <add>, %105, %cst_35 [1] : vector<128x32xf32> to vector<128xf32>
    %109 = vector.shape_cast %108 : vector<128xf32> to vector<128x1xf32>
    %cst_36 = arith.constant 3.200000e+01 : f32
    %110 = vector.broadcast %cst_36 : f32 to vector<128x1xf32>
    %111 = arith.divf %109, %110 : vector<128x1xf32>
    %112 = vector.broadcast %111 : vector<128x1xf32> to vector<128x32xf32>
    %113 = arith.subf %105, %112 : vector<128x32xf32>
    %114 = arith.mulf %113, %113 : vector<128x32xf32>
    %cst_37 = arith.constant dense<0.000000e+00> : vector<128xf32>
    %115 = vector.multi_reduction <add>, %114, %cst_37 [1] : vector<128x32xf32> to vector<128xf32>
    %116 = vector.shape_cast %115 : vector<128xf32> to vector<128x1xf32>
    %cst_38 = arith.constant 3.200000e+01 : f32
    %117 = vector.broadcast %cst_38 : f32 to vector<128x1xf32>
    %118 = arith.divf %116, %117 : vector<128x1xf32>
    %119 = vector.broadcast %111 : vector<128x1xf32> to vector<128x32xf32>
    %120 = arith.subf %105, %119 : vector<128x32xf32>
    %cst_39 = arith.constant 9.99999974E-6 : f32
    %121 = vector.broadcast %cst_39 : f32 to vector<128x1xf32>
    %122 = arith.addf %118, %121 : vector<128x1xf32>
    %123 = math.rsqrt %122 : vector<128x1xf32>
    %124 = vector.broadcast %123 : vector<128x1xf32> to vector<128x32xf32>
    %125 = arith.mulf %120, %124 : vector<128x32xf32>
    %126 = vector.broadcast %106 : vector<1x32xf32> to vector<128x32xf32>
    %127 = arith.mulf %125, %126 : vector<128x32xf32>
    %128 = vector.broadcast %107 : vector<1x32xf32> to vector<128x32xf32>
    %129 = arith.addf %127, %128 : vector<128x32xf32>
    %c48 = arith.constant 48 : index
    %c0_40 = arith.constant 0 : index
    %130 = vector.load %arg1[%c48, %c0_40] : memref<240x128xbf16, #tpu.memory_space<vmem>>, vector<32x96xbf16>
    %131 = arith.truncf %129 : vector<128x32xf32> to vector<128x32xbf16>
    %cst_41 = arith.constant dense<0.000000e+00> : vector<128x96xf32>
    %132 = tpu.matmul %131, %130, %cst_41 {dimension_numbers = #tpu.dot_dimension_numbers<[1], [0], [0], [1], [0, 0, 1, 1], [], []>} : vector<128x32xbf16>, vector<32x96xbf16>, vector<128x96xf32> -> vector<128x96xf32>
    %c2 = arith.constant 2 : index
    %c0_42 = arith.constant 0 : index
    %133 = vector.load %arg2[%c2, %c0_42] : memref<88x128xf32, #tpu.memory_space<vmem>>, vector<1x96xf32>
    %134 = vector.broadcast %133 : vector<1x96xf32> to vector<128x96xf32>
    %135 = arith.addf %132, %134 : vector<128x96xf32>
    %136 = vector.extract_strided_slice %135 {offsets = [0, 0], sizes = [128, 16], strides = [1, 1]} : vector<128x96xf32> to vector<128x16xf32>
    %137 = vector.extract_strided_slice %135 {offsets = [0, 32], sizes = [128, 16], strides = [1, 1]} : vector<128x96xf32> to vector<128x16xf32>
    %138 = vector.extract_strided_slice %135 {offsets = [0, 64], sizes = [128, 16], strides = [1, 1]} : vector<128x96xf32> to vector<128x16xf32>
    %139 = vector.shape_cast %136 : vector<128x16xf32> to vector<2x64x16xf32>
    %140 = arith.truncf %139 : vector<2x64x16xf32> to vector<2x64x16xbf16>
    %141 = vector.shape_cast %137 : vector<128x16xf32> to vector<2x64x16xf32>
    %142 = arith.truncf %141 : vector<2x64x16xf32> to vector<2x64x16xbf16>
    %143 = vector.shape_cast %138 : vector<128x16xf32> to vector<2x64x16xf32>
    %144 = arith.truncf %143 : vector<2x64x16xf32> to vector<2x64x16xbf16>
    "tpu.trace_start"() <{level = 10 : i32, message = "bqd,bkd->bqk"}> : () -> ()
    %cst_43 = arith.constant dense<0.000000e+00> : vector<2x64x64xf32>
    %145 = tpu.matmul %140, %142, %cst_43 {dimension_numbers = #tpu.dot_dimension_numbers<[2], [2], [1], [1], [0, 0, 0, 1, 1, 1], [0], [0]>} : vector<2x64x16xbf16>, vector<2x64x16xbf16>, vector<2x64x64xf32> -> vector<2x64x64xf32>
    "tpu.trace_stop"() : () -> ()
    %cst_44 = arith.constant dense<0xFF800000> : vector<2x64xf32>
    %146 = vector.multi_reduction <maximumf>, %145, %cst_44 [2] : vector<2x64x64xf32> to vector<2x64xf32>
    %147 = vector.shape_cast %146 : vector<2x64xf32> to vector<2x64x1xf32>
    %148 = vector.broadcast %147 : vector<2x64x1xf32> to vector<2x64x64xf32>
    %149 = arith.subf %145, %148 : vector<2x64x64xf32>
    %150 = math.exp %149 : vector<2x64x64xf32>
    %cst_45 = arith.constant dense<0.000000e+00> : vector<2x64xf32>
    %151 = vector.multi_reduction <add>, %150, %cst_45 [2] : vector<2x64x64xf32> to vector<2x64xf32>
    %152 = vector.shape_cast %151 : vector<2x64xf32> to vector<2x64x1xf32>
    %153 = tpu.reciprocal %152 {approx = true} : vector<2x64x1xf32> -> vector<2x64x1xf32>
    %154 = vector.broadcast %153 : vector<2x64x1xf32> to vector<2x64x64xf32>
    %155 = arith.mulf %150, %154 : vector<2x64x64xf32>
    %156 = arith.truncf %155 : vector<2x64x64xf32> to vector<2x64x64xbf16>
    "tpu.trace_start"() <{level = 10 : i32, message = "bqk,bkd->bqd"}> : () -> ()
    %cst_46 = arith.constant dense<0.000000e+00> : vector<2x64x16xf32>
    %157 = tpu.matmul %156, %144, %cst_46 {dimension_numbers = #tpu.dot_dimension_numbers<[2], [1], [1], [2], [0, 0, 0, 1, 1, 2], [0], [0]>} : vector<2x64x64xbf16>, vector<2x64x16xbf16>, vector<2x64x16xf32> -> vector<2x64x16xf32>
    "tpu.trace_stop"() : () -> ()
    %158 = vector.shape_cast %157 : vector<2x64x16xf32> to vector<128x16xf32>
    %159 = vector.extract_strided_slice %135 {offsets = [0, 16], sizes = [128, 16], strides = [1, 1]} : vector<128x96xf32> to vector<128x16xf32>
    %160 = vector.extract_strided_slice %135 {offsets = [0, 48], sizes = [128, 16], strides = [1, 1]} : vector<128x96xf32> to vector<128x16xf32>
    %161 = vector.extract_strided_slice %135 {offsets = [0, 80], sizes = [128, 16], strides = [1, 1]} : vector<128x96xf32> to vector<128x16xf32>
    %162 = vector.shape_cast %159 : vector<128x16xf32> to vector<2x64x16xf32>
    %163 = arith.truncf %162 : vector<2x64x16xf32> to vector<2x64x16xbf16>
    %164 = vector.shape_cast %160 : vector<128x16xf32> to vector<2x64x16xf32>
    %165 = arith.truncf %164 : vector<2x64x16xf32> to vector<2x64x16xbf16>
    %166 = vector.shape_cast %161 : vector<128x16xf32> to vector<2x64x16xf32>
    %167 = arith.truncf %166 : vector<2x64x16xf32> to vector<2x64x16xbf16>
    "tpu.trace_start"() <{level = 10 : i32, message = "bqd,bkd->bqk"}> : () -> ()
    %cst_47 = arith.constant dense<0.000000e+00> : vector<2x64x64xf32>
    %168 = tpu.matmul %163, %165, %cst_47 {dimension_numbers = #tpu.dot_dimension_numbers<[2], [2], [1], [1], [0, 0, 0, 1, 1, 1], [0], [0]>} : vector<2x64x16xbf16>, vector<2x64x16xbf16>, vector<2x64x64xf32> -> vector<2x64x64xf32>
    "tpu.trace_stop"() : () -> ()
    %cst_48 = arith.constant dense<0xFF800000> : vector<2x64xf32>
    %169 = vector.multi_reduction <maximumf>, %168, %cst_48 [2] : vector<2x64x64xf32> to vector<2x64xf32>
    %170 = vector.shape_cast %169 : vector<2x64xf32> to vector<2x64x1xf32>
    %171 = vector.broadcast %170 : vector<2x64x1xf32> to vector<2x64x64xf32>
    %172 = arith.subf %168, %171 : vector<2x64x64xf32>
    %173 = math.exp %172 : vector<2x64x64xf32>
    %cst_49 = arith.constant dense<0.000000e+00> : vector<2x64xf32>
    %174 = vector.multi_reduction <add>, %173, %cst_49 [2] : vector<2x64x64xf32> to vector<2x64xf32>
    %175 = vector.shape_cast %174 : vector<2x64xf32> to vector<2x64x1xf32>
    %176 = tpu.reciprocal %175 {approx = true} : vector<2x64x1xf32> -> vector<2x64x1xf32>
    %177 = vector.broadcast %176 : vector<2x64x1xf32> to vector<2x64x64xf32>
    %178 = arith.mulf %173, %177 : vector<2x64x64xf32>
    %179 = arith.truncf %178 : vector<2x64x64xf32> to vector<2x64x64xbf16>
    "tpu.trace_start"() <{level = 10 : i32, message = "bqk,bkd->bqd"}> : () -> ()
    %cst_50 = arith.constant dense<0.000000e+00> : vector<2x64x16xf32>
    %180 = tpu.matmul %179, %167, %cst_50 {dimension_numbers = #tpu.dot_dimension_numbers<[2], [1], [1], [2], [0, 0, 0, 1, 1, 2], [0], [0]>} : vector<2x64x64xbf16>, vector<2x64x16xbf16>, vector<2x64x16xf32> -> vector<2x64x16xf32>
    "tpu.trace_stop"() : () -> ()
    %181 = vector.shape_cast %180 : vector<2x64x16xf32> to vector<128x16xf32>
    %182 = tpu.concatenate %158, %181 in 1 : vector<128x16xf32>, vector<128x16xf32> -> vector<128x32xf32>
    %c112 = arith.constant 112 : index
    %c0_51 = arith.constant 0 : index
    %183 = vector.load %arg1[%c112, %c0_51] : memref<240x128xbf16, #tpu.memory_space<vmem>>, vector<32x32xbf16>
    %184 = arith.truncf %182 : vector<128x32xf32> to vector<128x32xbf16>
    %cst_52 = arith.constant dense<0.000000e+00> : vector<128x32xf32>
    %185 = tpu.matmul %184, %183, %cst_52 {dimension_numbers = #tpu.dot_dimension_numbers<[1], [0], [0], [1], [0, 0, 1, 1], [], []>} : vector<128x32xbf16>, vector<32x32xbf16>, vector<128x32xf32> -> vector<128x32xf32>
    %c4 = arith.constant 4 : index
    %c0_53 = arith.constant 0 : index
    %186 = vector.load %arg2[%c4, %c0_53] : memref<88x128xf32, #tpu.memory_space<vmem>>, vector<1x32xf32>
    %187 = vector.broadcast %186 : vector<1x32xf32> to vector<128x32xf32>
    %188 = arith.addf %185, %187 : vector<128x32xf32>
    %189 = arith.addf %129, %188 : vector<128x32xf32>
    %c6 = arith.constant 6 : index
    %c0_54 = arith.constant 0 : index
    %190 = vector.load %arg2[%c6, %c0_54] : memref<88x128xf32, #tpu.memory_space<vmem>>, vector<1x32xf32>
    %c8 = arith.constant 8 : index
    %c0_55 = arith.constant 0 : index
    %191 = vector.load %arg2[%c8, %c0_55] : memref<88x128xf32, #tpu.memory_space<vmem>>, vector<1x32xf32>
    %cst_56 = arith.constant dense<0.000000e+00> : vector<128xf32>
    %192 = vector.multi_reduction <add>, %189, %cst_56 [1] : vector<128x32xf32> to vector<128xf32>
    %193 = vector.shape_cast %192 : vector<128xf32> to vector<128x1xf32>
    %cst_57 = arith.constant 3.200000e+01 : f32
    %194 = vector.broadcast %cst_57 : f32 to vector<128x1xf32>
    %195 = arith.divf %193, %194 : vector<128x1xf32>
    %196 = vector.broadcast %195 : vector<128x1xf32> to vector<128x32xf32>
    %197 = arith.subf %189, %196 : vector<128x32xf32>
    %198 = arith.mulf %197, %197 : vector<128x32xf32>
    %cst_58 = arith.constant dense<0.000000e+00> : vector<128xf32>
    %199 = vector.multi_reduction <add>, %198, %cst_58 [1] : vector<128x32xf32> to vector<128xf32>
    %200 = vector.shape_cast %199 : vector<128xf32> to vector<128x1xf32>
    %cst_59 = arith.constant 3.200000e+01 : f32
    %201 = vector.broadcast %cst_59 : f32 to vector<128x1xf32>
    %202 = arith.divf %200, %201 : vector<128x1xf32>
    %203 = vector.broadcast %195 : vector<128x1xf32> to vector<128x32xf32>
    %204 = arith.subf %189, %203 : vector<128x32xf32>
    %cst_60 = arith.constant 9.99999974E-6 : f32
    %205 = vector.broadcast %cst_60 : f32 to vector<128x1xf32>
    %206 = arith.addf %202, %205 : vector<128x1xf32>
    %207 = math.rsqrt %206 : vector<128x1xf32>
    %208 = vector.broadcast %207 : vector<128x1xf32> to vector<128x32xf32>
    %209 = arith.mulf %204, %208 : vector<128x32xf32>
    %210 = vector.broadcast %190 : vector<1x32xf32> to vector<128x32xf32>
    %211 = arith.mulf %209, %210 : vector<128x32xf32>
    %212 = vector.broadcast %191 : vector<1x32xf32> to vector<128x32xf32>
    %213 = arith.addf %211, %212 : vector<128x32xf32>
    %c176 = arith.constant 176 : index
    %c0_61 = arith.constant 0 : index
    %214 = vector.load %arg1[%c176, %c0_61] : memref<240x128xbf16, #tpu.memory_space<vmem>>, vector<32x16xbf16>
    %c224 = arith.constant 224 : index
    %c0_62 = arith.constant 0 : index
    %215 = vector.load %arg1[%c224, %c0_62] : memref<240x128xbf16, #tpu.memory_space<vmem>>, vector<16x32xbf16>
    %216 = arith.truncf %213 : vector<128x32xf32> to vector<128x32xbf16>
    %cst_63 = arith.constant dense<0.000000e+00> : vector<128x16xf32>
    %217 = tpu.matmul %216, %214, %cst_63 {dimension_numbers = #tpu.dot_dimension_numbers<[1], [0], [0], [1], [0, 0, 1, 1], [], []>} : vector<128x32xbf16>, vector<32x16xbf16>, vector<128x16xf32> -> vector<128x16xf32>
    %c10 = arith.constant 10 : index
    %c0_64 = arith.constant 0 : index
    %218 = vector.load %arg2[%c10, %c0_64] : memref<88x128xf32, #tpu.memory_space<vmem>>, vector<1x16xf32>
    %219 = vector.broadcast %218 : vector<1x16xf32> to vector<128x16xf32>
    %220 = arith.addf %217, %219 : vector<128x16xf32>
    %cst_65 = arith.constant 0.000000e+00 : f32
    %221 = vector.broadcast %cst_65 : f32 to vector<128x16xf32>
    %222 = arith.maximumf %220, %221 : vector<128x16xf32>
    %223 = arith.truncf %222 : vector<128x16xf32> to vector<128x16xbf16>
    %cst_66 = arith.constant dense<0.000000e+00> : vector<128x32xf32>
    %224 = tpu.matmul %223, %215, %cst_66 {dimension_numbers = #tpu.dot_dimension_numbers<[1], [0], [0], [1], [0, 0, 1, 1], [], []>} : vector<128x16xbf16>, vector<16x32xbf16>, vector<128x32xf32> -> vector<128x32xf32>
    %c12 = arith.constant 12 : index
    %c0_67 = arith.constant 0 : index
    %225 = vector.load %arg2[%c12, %c0_67] : memref<88x128xf32, #tpu.memory_space<vmem>>, vector<1x32xf32>
    %226 = vector.broadcast %225 : vector<1x32xf32> to vector<128x32xf32>
    %227 = arith.addf %224, %226 : vector<128x32xf32>
    %228 = arith.addf %213, %227 : vector<128x32xf32>
    %c14 = arith.constant 14 : index
    %c0_68 = arith.constant 0 : index
    %229 = vector.load %arg2[%c14, %c0_68] : memref<88x128xf32, #tpu.memory_space<vmem>>, vector<1x32xf32>
    %c16_69 = arith.constant 16 : index
    %c0_70 = arith.constant 0 : index
    %230 = vector.load %arg2[%c16_69, %c0_70] : memref<88x128xf32, #tpu.memory_space<vmem>>, vector<1x32xf32>
    %cst_71 = arith.constant dense<0.000000e+00> : vector<128xf32>
    %231 = vector.multi_reduction <add>, %228, %cst_71 [1] : vector<128x32xf32> to vector<128xf32>
    %232 = vector.shape_cast %231 : vector<128xf32> to vector<128x1xf32>
    %cst_72 = arith.constant 3.200000e+01 : f32
    %233 = vector.broadcast %cst_72 : f32 to vector<128x1xf32>
    %234 = arith.divf %232, %233 : vector<128x1xf32>
    %235 = vector.broadcast %234 : vector<128x1xf32> to vector<128x32xf32>
    %236 = arith.subf %228, %235 : vector<128x32xf32>
    %237 = arith.mulf %236, %236 : vector<128x32xf32>
    %cst_73 = arith.constant dense<0.000000e+00> : vector<128xf32>
    %238 = vector.multi_reduction <add>, %237, %cst_73 [1] : vector<128x32xf32> to vector<128xf32>
    %239 = vector.shape_cast %238 : vector<128xf32> to vector<128x1xf32>
    %cst_74 = arith.constant 3.200000e+01 : f32
    %240 = vector.broadcast %cst_74 : f32 to vector<128x1xf32>
    %241 = arith.divf %239, %240 : vector<128x1xf32>
    %242 = vector.broadcast %234 : vector<128x1xf32> to vector<128x32xf32>
    %243 = arith.subf %228, %242 : vector<128x32xf32>
    %cst_75 = arith.constant 9.99999974E-6 : f32
    %244 = vector.broadcast %cst_75 : f32 to vector<128x1xf32>
    %245 = arith.addf %241, %244 : vector<128x1xf32>
    %246 = math.rsqrt %245 : vector<128x1xf32>
    %247 = vector.broadcast %246 : vector<128x1xf32> to vector<128x32xf32>
    %248 = arith.mulf %243, %247 : vector<128x32xf32>
    %249 = vector.broadcast %229 : vector<1x32xf32> to vector<128x32xf32>
    %250 = arith.mulf %248, %249 : vector<128x32xf32>
    %251 = vector.broadcast %230 : vector<1x32xf32> to vector<128x32xf32>
    %252 = arith.addf %250, %251 : vector<128x32xf32>
    %cst_76 = arith.constant dense<0.000000e+00> : vector<128xf32>
    %253 = vector.multi_reduction <add>, %252, %cst_76 [1] : vector<128x32xf32> to vector<128xf32>
    %254 = vector.shape_cast %253 : vector<128xf32> to vector<128x1xf32>
    %cst_77 = arith.constant 3.200000e+01 : f32
    %255 = vector.broadcast %cst_77 : f32 to vector<128x1xf32>
    %256 = arith.divf %254, %255 : vector<128x1xf32>
    %257 = vector.shape_cast %256 : vector<128x1xf32> to vector<2x64x1xf32>
    %c24 = arith.constant 24 : index
    %c0_78 = arith.constant 0 : index
    %258 = vector.load %arg2[%c24, %c0_78] : memref<88x128xf32, #tpu.memory_space<vmem>>, vector<64x4xf32>
    %259 = vector.shape_cast %258 : vector<64x4xf32> to vector<1x64x4xf32>
    %260 = vector.broadcast %257 : vector<2x64x1xf32> to vector<2x64x4xf32>
    %261 = vector.broadcast %259 : vector<1x64x4xf32> to vector<2x64x4xf32>
    %262 = arith.mulf %260, %261 : vector<2x64x4xf32>
    %cst_79 = arith.constant dense<0.000000e+00> : vector<2x4xf32>
    %263 = vector.multi_reduction <add>, %262, %cst_79 [1] : vector<2x64x4xf32> to vector<2x4xf32>
    %c17 = arith.constant 17 : index
    %c0_80 = arith.constant 0 : index
    %264 = vector.load %arg2[%c17, %c0_80] : memref<88x128xf32, #tpu.memory_space<vmem>>, vector<1x4xf32>
    %265 = vector.broadcast %264 : vector<1x4xf32> to vector<2x4xf32>
    %266 = arith.addf %263, %265 : vector<2x4xf32>
    %cst_81 = arith.constant dense<0xFF800000> : vector<2xf32>
    %267 = vector.multi_reduction <maximumf>, %266, %cst_81 [1] : vector<2x4xf32> to vector<2xf32>
    %268 = vector.shape_cast %267 : vector<2xf32> to vector<2x1xf32>
    %269 = vector.broadcast %268 : vector<2x1xf32> to vector<2x4xf32>
    %270 = arith.subf %266, %269 : vector<2x4xf32>
    %271 = math.exp %270 : vector<2x4xf32>
    %cst_82 = arith.constant dense<0.000000e+00> : vector<2xf32>
    %272 = vector.multi_reduction <add>, %271, %cst_82 [1] : vector<2x4xf32> to vector<2xf32>
    %273 = vector.shape_cast %272 : vector<2xf32> to vector<2x1xf32>
    %274 = vector.broadcast %273 : vector<2x1xf32> to vector<2x4xf32>
    %275 = arith.divf %271, %274 : vector<2x4xf32>
    %c0_83 = arith.constant 0 : index
    %c0_84 = arith.constant 0 : index
    %276 = vector.load %arg3[%c0_83, %c0_84] : memref<2x4xf32, #tpu.memory_space<vmem>>, vector<2x4xf32>
    tpu.vector_store %arg3[%c0_83, %c0_84], %275 {strides = array<i32>} : memref<2x4xf32, #tpu.memory_space<vmem>>, vector<2x4xf32>,
    return
  }
}

</mosaic_0001>

<llo_original>
// kernel: squeeze.17
$region0: #{squeeze.17}
  %s0 = inlined_call_operand.vmem [shape: f32[2,1,14,14], index: 0, kind: input, shape index: {}]
  %s1 = inlined_call_operand.vmem [shape: f32[2,196], index: 1, kind: output, shape index: {}]
  $region1: #{squeeze.17} parent=0
    #allocation0 [shape = 'u8[8192]{0}', space=vmem, size = 0x2000, scoped, tag = 'scoped mem for output reshape']
    %s2 = smov 3
    %v3 = vld [vmem:[%s0] ss:$16 sm:%s2]
    %vm4 = vcmask 113664
    %5 = vst.msk [vmem:[#allocation0] sm:$0x3] %vm4, %v3
    %s6 = scalar_lea.vmem %s0, 9
    %s7 = smov 3
    %v8 = vld [vmem:[%s6] ss:$16 sm:%s7]
    %s9 = scalar_lea.vmem %s0, 9
    %s10 = smov 3
    %v11 = vld [vmem:[%s9] ss:$16 sm:%s10]
    %vm12 = vcmask 15360
    %v13 = vsel %vm12, %v11, %v8
    %14 = vrot.lane.b32.xlu0 %v13, 126
    %v15 = vpop.permute.xlu0 %14
    %vm16 = vcmask 97280
    %s17 = scalar_lea.vmem [#allocation0], 8
    %18 = vst.msk [vmem:[%s17] sm:$0x3] %vm16, %v15
    %vm19 = vcmask 1048560
    %20 = vst.msk [vmem:[#allocation0] sm:$0x3] %vm19, %v15
    %s21 = scalar_lea.vmem %s0, 8
    %s22 = smov 3
    %v23 = vld [vmem:[%s21] ss:$16 sm:%s22]
    %24 = vrot.lane.b32.xlu0 %v23, 112
    %v25 = vpop.permute.xlu0 %24
    %vm26 = vcmask 1032064
    %27 = vst.msk [vmem:[#allocation0] sm:$0x3] %vm26, %v25
    %s28 = scalar_lea.vmem %s0, 7
    %s29 = smov 3
    %v30 = vld [vmem:[%s28] ss:$16 sm:%s29]
    %31 = vrot.lane.b32.xlu0 %v30, 98
    %v32 = vpop.permute.xlu0 %31
    %vm33 = vcmask 917264
    %34 = vst.msk [vmem:[#allocation0] sm:$0x3] %vm33, %v32
    %s35 = scalar_lea.vmem %s0, 6
    %s36 = smov 3
    %v37 = vld [vmem:[%s35] ss:$16 sm:%s36]
    %38 = vrot.lane.b32.xlu0 %v37, 84
    %v39 = vpop.permute.xlu0 %38
    %vm40 = vcmask 802464
    %41 = vst.msk [vmem:[#allocation0] sm:$0x3] %vm40, %v39
    %s42 = scalar_lea.vmem %s0, 5
    %s43 = smov 3
    %v44 = vld [vmem:[%s42] ss:$16 sm:%s43]
    %45 = vrot.lane.b32.xlu0 %v44, 70
    %v46 = vpop.permute.xlu0 %45
    %vm47 = vcmask 687664
    %48 = vst.msk [vmem:[#allocation0] sm:$0x3] %vm47, %v46
    %s49 = scalar_lea.vmem %s0, 4
    %s50 = smov 3
    %v51 = vld [vmem:[%s49] ss:$16 sm:%s50]
    %52 = vrot.lane.b32.xlu0 %v51, 56
    %v53 = vpop.permute.xlu0 %52
    %vm54 = vcmask 572864
    %55 = vst.msk [vmem:[#allocation0] sm:$0x3] %vm54, %v53
    %s56 = scalar_lea.vmem %s0, 13
    %s57 = smov 3
    %v58 = vld [vmem:[%s56] ss:$16 sm:%s57]
    %59 = vrot.lane.b32.xlu0 %v58, 54
    %v60 = vpop.permute.xlu0 %59
    %vm61 = vcmask 556464
    %s62 = scalar_lea.vmem [#allocation0], 8
    %63 = vst.msk [vmem:[%s62] sm:$0x3] %vm61, %v60
    %s64 = scalar_lea.vmem %s0, 3
    %s65 = smov 3
    %v66 = vld [vmem:[%s64] ss:$16 sm:%s65]
    %67 = vrot.lane.b32.xlu0 %v66, 42
    %v68 = vpop.permute.xlu0 %67
    %vm69 = vcmask 458064
    %70 = vst.msk [vmem:[#allocation0] sm:$0x3] %vm69, %v68
    %s71 = scalar_lea.vmem %s0, 12
    %s72 = smov 3
    %v73 = vld [vmem:[%s71] ss:$16 sm:%s72]
    %74 = vrot.lane.b32.xlu0 %v73, 40
    %v75 = vpop.permute.xlu0 %74
    %vm76 = vcmask 441664
    %s77 = scalar_lea.vmem [#allocation0], 8
    %78 = vst.msk [vmem:[%s77] sm:$0x3] %vm76, %v75
    %s79 = scalar_lea.vmem %s0, 2
    %s80 = smov 3
    %v81 = vld [vmem:[%s79] ss:$16 sm:%s80]
    %82 = vrot.lane.b32.xlu0 %v81, 28
    %v83 = vpop.permute.xlu0 %82
    %vm84 = vcmask 343264
    %85 = vst.msk [vmem:[#allocation0] sm:$0x3] %vm84, %v83
    %s86 = scalar_lea.vmem %s0, 11
    %s87 = smov 3
    %v88 = vld [vmem:[%s86] ss:$16 sm:%s87]
    %89 = vrot.lane.b32.xlu0 %v88, 26
    %v90 = vpop.permute.xlu0 %89
    %vm91 = vcmask 326864
    %s92 = scalar_lea.vmem [#allocation0], 8
    %93 = vst.msk [vmem:[%s92] sm:$0x3] %vm91, %v90
    %s94 = scalar_lea.vmem %s0, 1
    %s95 = smov 3
    %v96 = vld [vmem:[%s94] ss:$16 sm:%s95]
    %97 = vrot.lane.b32.xlu0 %v96, 14
    %v98 = vpop.permute.xlu0 %97
    %vm99 = vcmask 228464
    %100 = vst.msk [vmem:[#allocation0] sm:$0x3] %vm99, %v98
    %s101 = scalar_lea.vmem %s0, 10
    %s102 = smov 3
    %v103 = vld [vmem:[%s101] ss:$16 sm:%s102]
    %104 = vrot.lane.b32.xlu0 %v103, 12
    %v105 = vpop.permute.xlu0 %104
    %vm106 = vcmask 212064
    %s107 = scalar_lea.vmem [#allocation0], 8
    %108 = vst.msk [vmem:[%s107] sm:$0x3] %vm106, %v105
    %s110 = ssub.s32 4, 1
    %v111 = vld [vmem:[#allocation0] sm:%s110]
    %s113 = ssub.s32 4, 1
    %114 = vst [vmem:[%s1] sm:%s113] %v111
    %s115 = scalar_lea.vmem [#allocation0], 8
    %v116 = vld [vmem:[%s115] sm:%s110]
    %s118 = ssub.s32 4, 1
    %s119 = scalar_lea.vmem %s1, 2
    %120 = vst [vmem:[%s119] sm:%s118] %v116

// kernel: topological_conv_transformer.1
$region0: #{topological_conv_transformer.1}
  #allocation0 [shape = 'u32[]', space=smem, size = 0x4, offset = 0x4, fixed_abs, tag = 'smem constant byte address 0x4 - core index']
  #allocation1 [shape = 'u32[72,128]{1,0:T(1,128)}', space=vmem, size = 0x9000, scoped, tag = 'internal scratch']
  %s0 = inlined_call_operand.vmem [shape: f32[128,9], index: 0, kind: input, shape index: {}]
  %s1 = inlined_call_operand.vmem [shape: bf16[240,128], index: 1, kind: input, shape index: {}]
  %s2 = inlined_call_operand.vmem [shape: f32[88,128], index: 2, kind: input, shape index: {}]
  %s3 = inlined_call_operand.hbm [shape: f32[2,4], index: 3, kind: output, shape index: {}]
  %s4 = sld [smem:[#allocation0]]
  $region22: #{topological_conv_transformer.1} parent=0
    _
  %s6 = ssub.s32 1, %s4
  %s7 = scalar_select 0, %s6, %s4
  $region1: #{topological_conv_transformer.1} parent=0
    #allocation2 [shape = 'u8[1024]{0}', space=vmem, size = 0x400, scoped, tag = 'output window, operand 0, single buffered']
    #allocation3 [shape = 's32[1]{0}', space=sflag, size = 0x4, scoped, tag = 'scoped memory for topological_conv_transformer.1']
    %8 = vsyncpa [#allocation3], 0
    // Predicated region
    $region2: #{topological_conv_transformer.1} parent=1 // pred_check
      _
    $region3: #{topological_conv_transformer.1} parent=1 // pred_check_branch
      %10 = sbr.rel (0) target = $region5
    $region4: #{topological_conv_transformer.1} parent=1 // pred_region
      _
    $region5: #{topological_conv_transformer.1} parent=1 // pred_fallthru
      _
    // Predicated region
    $region6: #{topological_conv_transformer.1} parent=1 // pred_check
      _
    $region7: #{topological_conv_transformer.1} parent=1 // pred_check_branch
      %12 = sbr.rel (0) target = $region9
    $region8: #{topological_conv_transformer.1} parent=1 // pred_region
      _
    $region9: #{topological_conv_transformer.1} parent=1 // pred_fallthru
      _
    // Predicated region
    $region10: #{topological_conv_transformer.1} parent=1 // pred_check
      _
    $region11: #{topological_conv_transformer.1} parent=1 // pred_check_branch
      %14 = sbr.rel (0) target = $region13
    $region12: #{topological_conv_transformer.1} parent=1 // pred_region
      _
    $region13: #{topological_conv_transformer.1} parent=1 // pred_fallthru
      _
    %v16 = vld [vmem:[%s1] sm:$0xf]
    %v17 = vld [vmem:[%s1 + $0x4] sm:$0x1]
    %v18 = vld [vmem:[%s0] sm:$0xff]
    %v19 = vld [vmem:[%s0 + $0x8] sm:$0xff]
    %v20 = vld [vmem:[%s0 + $0x10] sm:$0xff]
    %v21 = vld [vmem:[%s0 + $0x18] sm:$0xff]
    %v22 = vld [vmem:[%s0 + $0x20] sm:$0xff]
    %v23 = vld [vmem:[%s0 + $0x28] sm:$0xff]
    %v24 = vld [vmem:[%s0 + $0x30] sm:$0xff]
    %v25 = vld [vmem:[%s0 + $0x38] sm:$0xff]
    %v26 = vld [vmem:[%s0 + $0x40] sm:$0xff]
    %v27 = vld [vmem:[%s0 + $0x48] sm:$0xff]
    %v28 = vld [vmem:[%s0 + $0x50] sm:$0xff]
    %v29 = vld [vmem:[%s0 + $0x58] sm:$0xff]
    %v30 = vld [vmem:[%s0 + $0x60] sm:$0xff]
    %v31 = vld [vmem:[%s0 + $0x68] sm:$0xff]
    %v32 = vld [vmem:[%s0 + $0x70] sm:$0xff]
    %v33 = vld [vmem:[%s0 + $0x78] sm:$0xff]
    %v34 = vpack.c.bf16 %v19, %v18
    %v35 = vpack.c.bf16 %v21, %v20
    %v36 = vpack.c.bf16 %v23, %v22
    %v37 = vpack.c.bf16 %v25, %v24
    %v38 = vpack.c.bf16 %v27, %v26
    %v39 = vpack.c.bf16 %v29, %v28
    %v40 = vpack.c.bf16 %v31, %v30
    %v41 = vpack.c.bf16 %v33, %v32
    %v42 = vld [vmem:[%s2] sm:$0x1]
    %v43 = vperm.slane %v42, 0
    %v46 = vunpack.c.l.b16 %v16
    %v47 = vunpack.c.l.b16 %v17
    %v48 = vpack.c.b16 %v47, %v46
    %vm49 = vcmask 72704
    %v51 = vsel %vm49, %v34, 0
    %v54 = vsel %vm49, %v35, 0
    %v57 = vsel %vm49, %v36, 0
    %v60 = vsel %vm49, %v37, 0
    %v63 = vsel %vm49, %v38, 0
    %v66 = vsel %vm49, %v39, 0
    %v69 = vsel %vm49, %v40, 0
    %v72 = vsel %vm49, %v41, 0
    %vm74 = vcmask 1043456
    %vm75 = vcmask 1044480
    %v76 = vsel %vm74, 4294967295, 65535
    %v77 = vsel %vm75, %v76, 0
    %v79 = vand.u32 %v48, %v77
    %81 = vmatpush.bf16.msra.mxu0 0
    %82 = vmatpush.bf16.msra.mxu0 0
    %83 = vmatpush.bf16.msra.mxu0 0
    %84 = vmatpush.bf16.msra.mxu0 0
    %85 = vmatpush.bf16.msra.mxu0 0
    %86 = vmatpush.bf16.msra.mxu0 0
    %87 = vmatpush.bf16.msra.mxu0 0
    %88 = vmatpush.bf16.msra.mxu0 %v79
    %89 = vmatmul.bf16.gmra.mxu0 %v51
    %v90 = vpop.f32.mrf.mxu0
    %v91 = vadd.f32 %v43, %v90
    %v92 = vpop.f32.mrf.mxu0
    %v93 = vadd.f32 %v43, %v92
    %94 = vmatmul.bf16.gmra.mxu0 %v54
    %v95 = vpop.f32.mrf.mxu0
    %v96 = vadd.f32 %v43, %v95
    %v97 = vpop.f32.mrf.mxu0
    %v98 = vadd.f32 %v43, %v97
    %99 = vmatmul.bf16.gmra.mxu0 %v57
    %v100 = vpop.f32.mrf.mxu0
    %v101 = vadd.f32 %v43, %v100
    %v102 = vpop.f32.mrf.mxu0
    %v103 = vadd.f32 %v43, %v102
    %104 = vmatmul.bf16.gmra.mxu0 %v60
    %v105 = vpop.f32.mrf.mxu0
    %v106 = vadd.f32 %v43, %v105
    %v107 = vpop.f32.mrf.mxu0
    %v108 = vadd.f32 %v43, %v107
    %109 = vmatmul.bf16.gmra.mxu0 %v63
    %v110 = vpop.f32.mrf.mxu0
    %v111 = vadd.f32 %v43, %v110
    %v112 = vpop.f32.mrf.mxu0
    %v113 = vadd.f32 %v43, %v112
    %114 = vmatmul.bf16.gmra.mxu0 %v66
    %v115 = vpop.f32.mrf.mxu0
    %v116 = vadd.f32 %v43, %v115
    %v117 = vpop.f32.mrf.mxu0
    %v118 = vadd.f32 %v43, %v117
    %119 = vmatmul.bf16.gmra.mxu0 %v69
    %v120 = vpop.f32.mrf.mxu0
    %v121 = vadd.f32 %v43, %v120
    %v122 = vpop.f32.mrf.mxu0
    %v123 = vadd.f32 %v43, %v122
    %124 = vmatmul.bf16.gmra.mxu0 %v72
    %v125 = vpop.f32.mrf.mxu0
    %v126 = vadd.f32 %v43, %v125
    %v127 = vpop.f32.mrf.mxu0
    %v128 = vadd.f32 %v43, %v127
    %129 = vdwg.mxu0
    %v130 = vld [vmem:[%s1 + $0x8] sm:$0xf]
    %v131 = vld [vmem:[%s1 + $0xc] sm:$0xf]
    %v132 = vld [vmem:[%s1 + $0x10] sm:$0xf]
    %v133 = vld [vmem:[%s1 + $0x14] sm:$0xf]
    %v134 = vpack.c.bf16 %v93, %v91
    %v135 = vpack.c.bf16 %v98, %v96
    %v136 = vpack.c.bf16 %v103, %v101
    %v137 = vpack.c.bf16 %v108, %v106
    %v138 = vpack.c.bf16 %v113, %v111
    %v139 = vpack.c.bf16 %v118, %v116
    %v140 = vpack.c.bf16 %v123, %v121
    %v141 = vpack.c.bf16 %v128, %v126
    %v142 = vld [vmem:[%s2 + $0x1] sm:$0x1]
    %v143 = vperm.slane %v142, 0
    %v148 = vunpack.c.l.b16 %v130
    %v149 = vunpack.c.l.b16 %v131
    %v150 = vunpack.c.l.b16 %v132
    %v151 = vunpack.c.l.b16 %v133
    %v152 = vpack.c.b16 %v149, %v148
    %v153 = vpack.c.b16 %v151, %v150
    %vm156 = vcmask 261120
    %v158 = vsel %vm156, %v134, 0
    %v161 = vsel %vm156, %v135, 0
    %v164 = vsel %vm156, %v136, 0
    %v167 = vsel %vm156, %v137, 0
    %v170 = vsel %vm156, %v138, 0
    %v173 = vsel %vm156, %v139, 0
    %v176 = vsel %vm156, %v140, 0
    %v179 = vsel %vm156, %v141, 0
    %181 = vmatpush.bf16.msra.mxu0 0
    %182 = vmatpush.bf16.msra.mxu0 0
    %183 = vmatpush.bf16.msra.mxu0 0
    %184 = vmatpush.bf16.msra.mxu0 0
    %185 = vmatpush.bf16.msra.mxu0 0
    %186 = vmatpush.bf16.msra.mxu0 0
    %187 = vmatpush.bf16.msra.mxu0 %v153
    %188 = vmatpush.bf16.msra.mxu0 %v152
    %189 = vmatmul.bf16.gmra.mxu0 %v158
    %v190 = vpop.f32.mrf.mxu0
    %v191 = vadd.f32 %v143, %v190
    %v192 = vpop.f32.mrf.mxu0
    %v193 = vadd.f32 %v143, %v192
    %194 = vmatmul.bf16.gmra.mxu0 %v161
    %v195 = vpop.f32.mrf.mxu0
    %v196 = vadd.f32 %v143, %v195
    %v197 = vpop.f32.mrf.mxu0
    %v198 = vadd.f32 %v143, %v197
    %199 = vmatmul.bf16.gmra.mxu0 %v164
    %v200 = vpop.f32.mrf.mxu0
    %v201 = vadd.f32 %v143, %v200
    %v202 = vpop.f32.mrf.mxu0
    %v203 = vadd.f32 %v143, %v202
    %204 = vmatmul.bf16.gmra.mxu0 %v167
    %v205 = vpop.f32.mrf.mxu0
    %v206 = vadd.f32 %v143, %v205
    %v207 = vpop.f32.mrf.mxu0
    %v208 = vadd.f32 %v143, %v207
    %209 = vmatmul.bf16.gmra.mxu0 %v170
    %v210 = vpop.f32.mrf.mxu0
    %v211 = vadd.f32 %v143, %v210
    %v212 = vpop.f32.mrf.mxu0
    %v213 = vadd.f32 %v143, %v212
    %214 = vmatmul.bf16.gmra.mxu0 %v173
    %v215 = vpop.f32.mrf.mxu0
    %v216 = vadd.f32 %v143, %v215
    %v217 = vpop.f32.mrf.mxu0
    %v218 = vadd.f32 %v143, %v217
    %219 = vmatmul.bf16.gmra.mxu0 %v176
    %v220 = vpop.f32.mrf.mxu0
    %v221 = vadd.f32 %v143, %v220
    %v222 = vpop.f32.mrf.mxu0
    %v223 = vadd.f32 %v143, %v222
    %224 = vmatmul.bf16.gmra.mxu0 %v179
    %v225 = vpop.f32.mrf.mxu0
    %v226 = vadd.f32 %v143, %v225
    %v227 = vpop.f32.mrf.mxu0
    %v228 = vadd.f32 %v143, %v227
    %229 = vdwg.mxu0
    %v230 = vpack.c.bf16 %v191, %v191
    %v231 = vpack.c.bf16 %v193, %v193
    %v232 = vpack.c.bf16 %v196, %v196
    %v233 = vpack.c.bf16 %v198, %v198
    %v234 = vpack.c.bf16 %v201, %v201
    %v235 = vpack.c.bf16 %v203, %v203
    %v236 = vpack.c.bf16 %v206, %v206
    %v237 = vpack.c.bf16 %v208, %v208
    %v238 = vpack.c.bf16 %v211, %v211
    %v239 = vpack.c.bf16 %v213, %v213
    %v240 = vpack.c.bf16 %v216, %v216
    %v241 = vpack.c.bf16 %v218, %v218
    %v242 = vpack.c.bf16 %v221, %v221
    %v243 = vpack.c.bf16 %v223, %v223
    %v244 = vpack.c.bf16 %v226, %v226
    %v245 = vpack.c.bf16 %v228, %v228
    %v254 = vunpack.c.l.b16 %v230
    %v255 = vunpack.c.l.b16 %v231
    %v256 = vunpack.c.l.b16 %v232
    %v257 = vunpack.c.l.b16 %v233
    %v258 = vunpack.c.l.b16 %v234
    %v259 = vunpack.c.l.b16 %v235
    %v260 = vunpack.c.l.b16 %v236
    %v261 = vunpack.c.l.b16 %v237
    %v262 = vpack.c.b16 %v255, %v254
    %v263 = vpack.c.b16 %v257, %v256
    %v264 = vpack.c.b16 %v259, %v258
    %v265 = vpack.c.b16 %v261, %v260
    %266 = vrot.lane.b32.xlu0 %v262, 96
    %v267 = vpop.permute.xlu0 %266
    %268 = vrot.lane.b32.xlu0 %v263, 96
    %v269 = vpop.permute.xlu0 %268
    %270 = vrot.lane.b32.xlu0 %v264, 96
    %v271 = vpop.permute.xlu0 %270
    %272 = vrot.lane.b32.xlu0 %v265, 96
    %v273 = vpop.permute.xlu0 %272
    %vm274 = vcmask 130048
    %v276 = vsel %vm274, %v262, 0
    %v279 = vsel %vm274, %v263, 0
    %v282 = vsel %vm274, %v264, 0
    %v285 = vsel %vm274, %v265, 0
    %v288 = vsel %vm274, %v267, 0
    %v291 = vsel %vm274, %v269, 0
    %v294 = vsel %vm274, %v271, 0
    %v297 = vsel %vm274, %v273, 0
    %299 = vmatpush.bf16.xpose.msra.mxu0 0
    %300 = vmatpush.bf16.xpose.msra.mxu0 0
    %301 = vmatpush.bf16.xpose.msra.mxu0 0
    %302 = vmatpush.bf16.xpose.msra.mxu0 0
    %303 = vmatpush.bf16.xpose.msra.mxu0 %v297
    %304 = vmatpush.bf16.xpose.msra.mxu0 %v294
    %305 = vmatpush.bf16.xpose.msra.mxu0 %v291
    %306 = vmatpush.bf16.xpose.msra.mxu0 %v288
    %307 = vmatmul.bf16.gmra.mxu0 %v276
    %v308 = vpop.f32.mrf.mxu0
    %v309 = vadd.f32 0.0, %v308
    %v310 = vpop.f32.mrf.mxu0
    %v311 = vadd.f32 0.0, %v310
    %312 = vmatmul.bf16.gmra.mxu0 %v279
    %v313 = vpop.f32.mrf.mxu0
    %v314 = vadd.f32 0.0, %v313
    %v315 = vpop.f32.mrf.mxu0
    %v316 = vadd.f32 0.0, %v315
    %317 = vmatmul.bf16.gmra.mxu0 %v282
    %v318 = vpop.f32.mrf.mxu0
    %v319 = vadd.f32 0.0, %v318
    %v320 = vpop.f32.mrf.mxu0
    %v321 = vadd.f32 0.0, %v320
    %322 = vmatmul.bf16.gmra.mxu0 %v285
    %v323 = vpop.f32.mrf.mxu0
    %v324 = vadd.f32 0.0, %v323
    %v325 = vpop.f32.mrf.mxu0
    %v326 = vadd.f32 0.0, %v325
    %327 = vdwg.mxu0
    %v336 = vunpack.c.l.b16 %v238
    %v337 = vunpack.c.l.b16 %v239
    %v338 = vunpack.c.l.b16 %v240
    %v339 = vunpack.c.l.b16 %v241
    %v340 = vunpack.c.l.b16 %v242
    %v341 = vunpack.c.l.b16 %v243
    %v342 = vunpack.c.l.b16 %v244
    %v343 = vunpack.c.l.b16 %v245
    %v344 = vpack.c.b16 %v337, %v336
    %v345 = vpack.c.b16 %v339, %v338
    %v346 = vpack.c.b16 %v341, %v340
    %v347 = vpack.c.b16 %v343, %v342
    %348 = vrot.lane.b32.xlu0 %v344, 96
    %v349 = vpop.permute.xlu0 %348
    %350 = vrot.lane.b32.xlu0 %v345, 96
    %v351 = vpop.permute.xlu0 %350
    %352 = vrot.lane.b32.xlu0 %v346, 96
    %v353 = vpop.permute.xlu0 %352
    %354 = vrot.lane.b32.xlu0 %v347, 96
    %v355 = vpop.permute.xlu0 %354
    %v357 = vsel %vm274, %v344, 0
    %v360 = vsel %vm274, %v345, 0
    %v363 = vsel %vm274, %v346, 0
    %v366 = vsel %vm274, %v347, 0
    %v369 = vsel %vm274, %v349, 0
    %v372 = vsel %vm274, %v351, 0
    %v375 = vsel %vm274, %v353, 0
    %v378 = vsel %vm274, %v355, 0
    %380 = vmatpush.bf16.xpose.msra.mxu0 0
    %381 = vmatpush.bf16.xpose.msra.mxu0 0
    %382 = vmatpush.bf16.xpose.msra.mxu0 0
    %383 = vmatpush.bf16.xpose.msra.mxu0 0
    %384 = vmatpush.bf16.xpose.msra.mxu0 %v378
    %385 = vmatpush.bf16.xpose.msra.mxu0 %v375
    %386 = vmatpush.bf16.xpose.msra.mxu0 %v372
    %387 = vmatpush.bf16.xpose.msra.mxu0 %v369
    %388 = vmatmul.bf16.gmra.mxu0 %v357
    %v389 = vpop.f32.mrf.mxu0
    %v390 = vadd.f32 0.0, %v389
    %v391 = vpop.f32.mrf.mxu0
    %v392 = vadd.f32 0.0, %v391
    %393 = vmatmul.bf16.gmra.mxu0 %v360
    %v394 = vpop.f32.mrf.mxu0
    %v395 = vadd.f32 0.0, %v394
    %v396 = vpop.f32.mrf.mxu0
    %v397 = vadd.f32 0.0, %v396
    %398 = vmatmul.bf16.gmra.mxu0 %v363
    %v399 = vpop.f32.mrf.mxu0
    %v400 = vadd.f32 0.0, %v399
    %v401 = vpop.f32.mrf.mxu0
    %v402 = vadd.f32 0.0, %v401
    %403 = vmatmul.bf16.gmra.mxu0 %v366
    %v404 = vpop.f32.mrf.mxu0
    %v405 = vadd.f32 0.0, %v404
    %v406 = vpop.f32.mrf.mxu0
    %v407 = vadd.f32 0.0, %v406
    %408 = vdwg.mxu0
    %vm409 = vcmask 523264
    %v410 = vsel %vm409, %v309, -inf
    %411 = vmax.xlane.f32.xlu0 %v410
    %v412 = vpop.xlane.xlu0 %411
    %v413 = vsel %vm409, %v311, -inf
    %414 = vmax.xlane.f32.xlu0 %v413
    %v415 = vpop.xlane.xlu0 %414
    %v416 = vsel %vm409, %v314, -inf
    %417 = vmax.xlane.f32.xlu0 %v416
    %v418 = vpop.xlane.xlu0 %417
    %v419 = vsel %vm409, %v316, -inf
    %420 = vmax.xlane.f32.xlu0 %v419
    %v421 = vpop.xlane.xlu0 %420
    %v422 = vsel %vm409, %v319, -inf
    %423 = vmax.xlane.f32.xlu0 %v422
    %v424 = vpop.xlane.xlu0 %423
    %v425 = vsel %vm409, %v321, -inf
    %426 = vmax.xlane.f32.xlu0 %v425
    %v427 = vpop.xlane.xlu0 %426
    %v428 = vsel %vm409, %v324, -inf
    %429 = vmax.xlane.f32.xlu0 %v428
    %v430 = vpop.xlane.xlu0 %429
    %v431 = vsel %vm409, %v326, -inf
    %432 = vmax.xlane.f32.xlu0 %v431
    %v433 = vpop.xlane.xlu0 %432
    %v434 = vsel %vm409, %v390, -inf
    %435 = vmax.xlane.f32.xlu0 %v434
    %v436 = vpop.xlane.xlu0 %435
    %v437 = vsel %vm409, %v392, -inf
    %438 = vmax.xlane.f32.xlu0 %v437
    %v439 = vpop.xlane.xlu0 %438
    %v440 = vsel %vm409, %v395, -inf
    %441 = vmax.xlane.f32.xlu0 %v440
    %v442 = vpop.xlane.xlu0 %441
    %v443 = vsel %vm409, %v397, -inf
    %444 = vmax.xlane.f32.xlu0 %v443
    %v445 = vpop.xlane.xlu0 %444
    %v446 = vsel %vm409, %v400, -inf
    %447 = vmax.xlane.f32.xlu0 %v446
    %v448 = vpop.xlane.xlu0 %447
    %v449 = vsel %vm409, %v402, -inf
    %450 = vmax.xlane.f32.xlu0 %v449
    %v451 = vpop.xlane.xlu0 %450
    %v452 = vsel %vm409, %v405, -inf
    %453 = vmax.xlane.f32.xlu0 %v452
    %v454 = vpop.xlane.xlu0 %453
    %v455 = vsel %vm409, %v407, -inf
    %456 = vmax.xlane.f32.xlu0 %v455
    %v457 = vpop.xlane.xlu0 %456
    %v458 = vsub.f32 %v309, %v412
    %v459 = vsub.f32 %v311, %v415
    %v460 = vsub.f32 %v314, %v418
    %v461 = vsub.f32 %v316, %v421
    %v462 = vsub.f32 %v319, %v424
    %v463 = vsub.f32 %v321, %v427
    %v464 = vsub.f32 %v324, %v430
    %v465 = vsub.f32 %v326, %v433
    %v466 = vsub.f32 %v390, %v436
    %v467 = vsub.f32 %v392, %v439
    %v468 = vsub.f32 %v395, %v442
    %v469 = vsub.f32 %v397, %v445
    %v470 = vsub.f32 %v400, %v448
    %v471 = vsub.f32 %v402, %v451
    %v472 = vsub.f32 %v405, %v454
    %v473 = vsub.f32 %v407, %v457
    %v474 = vmul.f32 %v458, 1.442695
    %v475 = vpow.pop %v474
    %v476 = vmul.f32 %v459, 1.442695
    %v477 = vpow.pop %v476
    %v478 = vmul.f32 %v460, 1.442695
    %v479 = vpow.pop %v478
    %v480 = vmul.f32 %v461, 1.442695
    %v481 = vpow.pop %v480
    %v482 = vmul.f32 %v462, 1.442695
    %v483 = vpow.pop %v482
    %v484 = vmul.f32 %v463, 1.442695
    %v485 = vpow.pop %v484
    %v486 = vmul.f32 %v464, 1.442695
    %v487 = vpow.pop %v486
    %v488 = vmul.f32 %v465, 1.442695
    %v489 = vpow.pop %v488
    %v490 = vmul.f32 %v466, 1.442695
    %v491 = vpow.pop %v490
    %v492 = vmul.f32 %v467, 1.442695
    %v493 = vpow.pop %v492
    %v494 = vmul.f32 %v468, 1.442695
    %v495 = vpow.pop %v494
    %v496 = vmul.f32 %v469, 1.442695
    %v497 = vpow.pop %v496
    %v498 = vmul.f32 %v470, 1.442695
    %v499 = vpow.pop %v498
    %v500 = vmul.f32 %v471, 1.442695
    %v501 = vpow.pop %v500
    %v502 = vmul.f32 %v472, 1.442695
    %v503 = vpow.pop %v502
    %v504 = vmul.f32 %v473, 1.442695
    %v505 = vpow.pop %v504
    %v506 = vsel %vm409, %v475, 0.0
    %507 = vadd.xlane.f32.xlu0 %v506
    %v508 = vpop.xlane.xlu0 %507
    %v509 = vsel %vm409, %v477, 0.0
    %510 = vadd.xlane.f32.xlu0 %v509
    %v511 = vpop.xlane.xlu0 %510
    %v512 = vsel %vm409, %v479, 0.0
    %513 = vadd.xlane.f32.xlu0 %v512
    %v514 = vpop.xlane.xlu0 %513
    %v515 = vsel %vm409, %v481, 0.0
    %516 = vadd.xlane.f32.xlu0 %v515
    %v517 = vpop.xlane.xlu0 %516
    %v518 = vsel %vm409, %v483, 0.0
    %519 = vadd.xlane.f32.xlu0 %v518
    %v520 = vpop.xlane.xlu0 %519
    %v521 = vsel %vm409, %v485, 0.0
    %522 = vadd.xlane.f32.xlu0 %v521
    %v523 = vpop.xlane.xlu0 %522
    %v524 = vsel %vm409, %v487, 0.0
    %525 = vadd.xlane.f32.xlu0 %v524
    %v526 = vpop.xlane.xlu0 %525
    %v527 = vsel %vm409, %v489, 0.0
    %528 = vadd.xlane.f32.xlu0 %v527
    %v529 = vpop.xlane.xlu0 %528
    %v530 = vsel %vm409, %v491, 0.0
    %531 = vadd.xlane.f32.xlu0 %v530
    %v532 = vpop.xlane.xlu0 %531
    %v533 = vsel %vm409, %v493, 0.0
    %534 = vadd.xlane.f32.xlu0 %v533
    %v535 = vpop.xlane.xlu0 %534
    %v536 = vsel %vm409, %v495, 0.0
    %537 = vadd.xlane.f32.xlu0 %v536
    %v538 = vpop.xlane.xlu0 %537
    %v539 = vsel %vm409, %v497, 0.0
    %540 = vadd.xlane.f32.xlu0 %v539
    %v541 = vpop.xlane.xlu0 %540
    %v542 = vsel %vm409, %v499, 0.0
    %543 = vadd.xlane.f32.xlu0 %v542
    %v544 = vpop.xlane.xlu0 %543
    %v545 = vsel %vm409, %v501, 0.0
    %546 = vadd.xlane.f32.xlu0 %v545
    %v547 = vpop.xlane.xlu0 %546
    %v548 = vsel %vm409, %v503, 0.0
    %549 = vadd.xlane.f32.xlu0 %v548
    %v550 = vpop.xlane.xlu0 %549
    %v551 = vsel %vm409, %v505, 0.0
    %552 = vadd.xlane.f32.xlu0 %v551
    %v553 = vpop.xlane.xlu0 %552
    %v554 = vrcp.pop %v508
    %v555 = vrcp.pop %v511
    %v556 = vrcp.pop %v514
    %v557 = vrcp.pop %v517
    %v558 = vrcp.pop %v520
    %v559 = vrcp.pop %v523
    %v560 = vrcp.pop %v526
    %v561 = vrcp.pop %v529
    %v562 = vrcp.pop %v532
    %v563 = vrcp.pop %v535
    %v564 = vrcp.pop %v538
    %v565 = vrcp.pop %v541
    %v566 = vrcp.pop %v544
    %v567 = vrcp.pop %v547
    %v568 = vrcp.pop %v550
    %v569 = vrcp.pop %v553
    %v570 = vmul.f32 %v475, %v554
    %v571 = vmul.f32 %v477, %v555
    %v572 = vmul.f32 %v479, %v556
    %v573 = vmul.f32 %v481, %v557
    %v574 = vmul.f32 %v483, %v558
    %v575 = vmul.f32 %v485, %v559
    %v576 = vmul.f32 %v487, %v560
    %v577 = vmul.f32 %v489, %v561
    %v578 = vmul.f32 %v491, %v562
    %v579 = vmul.f32 %v493, %v563
    %v580 = vmul.f32 %v495, %v564
    %v581 = vmul.f32 %v497, %v565
    %v582 = vmul.f32 %v499, %v566
    %v583 = vmul.f32 %v501, %v567
    %v584 = vmul.f32 %v503, %v568
    %v585 = vmul.f32 %v505, %v569
    %v586 = vpack.c.bf16 %v570, %v570
    %v587 = vpack.c.bf16 %v571, %v571
    %v588 = vpack.c.bf16 %v572, %v572
    %v589 = vpack.c.bf16 %v573, %v573
    %v590 = vpack.c.bf16 %v574, %v574
    %v591 = vpack.c.bf16 %v575, %v575
    %v592 = vpack.c.bf16 %v576, %v576
    %v593 = vpack.c.bf16 %v577, %v577
    %v594 = vpack.c.bf16 %v578, %v578
    %v595 = vpack.c.bf16 %v579, %v579
    %v596 = vpack.c.bf16 %v580, %v580
    %v597 = vpack.c.bf16 %v581, %v581
    %v598 = vpack.c.bf16 %v582, %v582
    %v599 = vpack.c.bf16 %v583, %v583
    %v600 = vpack.c.bf16 %v584, %v584
    %v601 = vpack.c.bf16 %v585, %v585
    %v610 = vunpack.c.l.b16 %v586
    %v611 = vunpack.c.l.b16 %v587
    %v612 = vunpack.c.l.b16 %v588
    %v613 = vunpack.c.l.b16 %v589
    %v614 = vunpack.c.l.b16 %v590
    %v615 = vunpack.c.l.b16 %v591
    %v616 = vunpack.c.l.b16 %v592
    %v617 = vunpack.c.l.b16 %v593
    %v618 = vpack.c.b16 %v611, %v610
    %v619 = vpack.c.b16 %v613, %v612
    %v620 = vpack.c.b16 %v615, %v614
    %v621 = vpack.c.b16 %v617, %v616
    %622 = vrot.lane.b32.xlu0 %v262, 64
    %v623 = vpop.permute.xlu0 %622
    %624 = vrot.lane.b32.xlu0 %v263, 64
    %v625 = vpop.permute.xlu0 %624
    %626 = vrot.lane.b32.xlu0 %v264, 64
    %v627 = vpop.permute.xlu0 %626
    %628 = vrot.lane.b32.xlu0 %v265, 64
    %v629 = vpop.permute.xlu0 %628
    %v635 = vsel %vm409, %v618, 0
    %v638 = vsel %vm409, %v619, 0
    %v641 = vsel %vm409, %v620, 0
    %v644 = vsel %vm409, %v621, 0
    %646 = vmatpush.bf16.msra.mxu0 0
    %647 = vmatpush.bf16.msra.mxu0 0
    %648 = vmatpush.bf16.msra.mxu0 0
    %649 = vmatpush.bf16.msra.mxu0 0
    %650 = vmatpush.bf16.msra.mxu0 %v629
    %651 = vmatpush.bf16.msra.mxu0 %v627
    %652 = vmatpush.bf16.msra.mxu0 %v625
    %653 = vmatpush.bf16.msra.mxu0 %v623
    %654 = vmatmul.bf16.gmra.mxu0 %v635
    %v655 = vpop.f32.mrf.mxu0
    %v656 = vadd.f32 0.0, %v655
    %v657 = vpop.f32.mrf.mxu0
    %v658 = vadd.f32 0.0, %v657
    %659 = vmatmul.bf16.gmra.mxu0 %v638
    %v660 = vpop.f32.mrf.mxu0
    %v661 = vadd.f32 0.0, %v660
    %v662 = vpop.f32.mrf.mxu0
    %v663 = vadd.f32 0.0, %v662
    %664 = vmatmul.bf16.gmra.mxu0 %v641
    %v665 = vpop.f32.mrf.mxu0
    %v666 = vadd.f32 0.0, %v665
    %v667 = vpop.f32.mrf.mxu0
    %v668 = vadd.f32 0.0, %v667
    %669 = vmatmul.bf16.gmra.mxu0 %v644
    %v670 = vpop.f32.mrf.mxu0
    %v671 = vadd.f32 0.0, %v670
    %v672 = vpop.f32.mrf.mxu0
    %v673 = vadd.f32 0.0, %v672
    %674 = vdwg.mxu0
    %v683 = vunpack.c.l.b16 %v594
    %v684 = vunpack.c.l.b16 %v595
    %v685 = vunpack.c.l.b16 %v596
    %v686 = vunpack.c.l.b16 %v597
    %v687 = vunpack.c.l.b16 %v598
    %v688 = vunpack.c.l.b16 %v599
    %v689 = vunpack.c.l.b16 %v600
    %v690 = vunpack.c.l.b16 %v601
    %v691 = vpack.c.b16 %v684, %v683
    %v692 = vpack.c.b16 %v686, %v685
    %v693 = vpack.c.b16 %v688, %v687
    %v694 = vpack.c.b16 %v690, %v689
    %695 = vrot.lane.b32.xlu0 %v344, 64
    %v696 = vpop.permute.xlu0 %695
    %697 = vrot.lane.b32.xlu0 %v345, 64
    %v698 = vpop.permute.xlu0 %697
    %699 = vrot.lane.b32.xlu0 %v346, 64
    %v700 = vpop.permute.xlu0 %699
    %701 = vrot.lane.b32.xlu0 %v347, 64
    %v702 = vpop.permute.xlu0 %701
    %v708 = vsel %vm409, %v691, 0
    %v711 = vsel %vm409, %v692, 0
    %v714 = vsel %vm409, %v693, 0
    %v717 = vsel %vm409, %v694, 0
    %719 = vmatpush.bf16.msra.mxu0 0
    %720 = vmatpush.bf16.msra.mxu0 0
    %721 = vmatpush.bf16.msra.mxu0 0
    %722 = vmatpush.bf16.msra.mxu0 0
    %723 = vmatpush.bf16.msra.mxu0 %v702
    %724 = vmatpush.bf16.msra.mxu0 %v700
    %725 = vmatpush.bf16.msra.mxu0 %v698
    %726 = vmatpush.bf16.msra.mxu0 %v696
    %727 = vmatmul.bf16.gmra.mxu0 %v708
    %v728 = vpop.f32.mrf.mxu0
    %v729 = vadd.f32 0.0, %v728
    %v730 = vpop.f32.mrf.mxu0
    %v731 = vadd.f32 0.0, %v730
    %732 = vmatmul.bf16.gmra.mxu0 %v711
    %v733 = vpop.f32.mrf.mxu0
    %v734 = vadd.f32 0.0, %v733
    %v735 = vpop.f32.mrf.mxu0
    %v736 = vadd.f32 0.0, %v735
    %737 = vmatmul.bf16.gmra.mxu0 %v714
    %v738 = vpop.f32.mrf.mxu0
    %v739 = vadd.f32 0.0, %v738
    %v740 = vpop.f32.mrf.mxu0
    %v741 = vadd.f32 0.0, %v740
    %742 = vmatmul.bf16.gmra.mxu0 %v717
    %v743 = vpop.f32.mrf.mxu0
    %v744 = vadd.f32 0.0, %v743
    %v745 = vpop.f32.mrf.mxu0
    %v746 = vadd.f32 0.0, %v745
    %747 = vdwg.mxu0
    %748 = vrot.lane.b32.xlu0 %v262, 112
    %v749 = vpop.permute.xlu0 %748
    %750 = vrot.lane.b32.xlu0 %v263, 112
    %v751 = vpop.permute.xlu0 %750
    %752 = vrot.lane.b32.xlu0 %v264, 112
    %v753 = vpop.permute.xlu0 %752
    %754 = vrot.lane.b32.xlu0 %v265, 112
    %v755 = vpop.permute.xlu0 %754
    %756 = vrot.lane.b32.xlu0 %v262, 80
    %v757 = vpop.permute.xlu0 %756
    %758 = vrot.lane.b32.xlu0 %v263, 80
    %v759 = vpop.permute.xlu0 %758
    %760 = vrot.lane.b32.xlu0 %v264, 80
    %v761 = vpop.permute.xlu0 %760
    %762 = vrot.lane.b32.xlu0 %v265, 80
    %v763 = vpop.permute.xlu0 %762
    %v765 = vsel %vm274, %v749, 0
    %v768 = vsel %vm274, %v751, 0
    %v771 = vsel %vm274, %v753, 0
    %v774 = vsel %vm274, %v755, 0
    %v777 = vsel %vm274, %v757, 0
    %v780 = vsel %vm274, %v759, 0
    %v783 = vsel %vm274, %v761, 0
    %v786 = vsel %vm274, %v763, 0
    %788 = vmatpush.bf16.xpose.msra.mxu0 0
    %789 = vmatpush.bf16.xpose.msra.mxu0 0
    %790 = vmatpush.bf16.xpose.msra.mxu0 0
    %791 = vmatpush.bf16.xpose.msra.mxu0 0
    %792 = vmatpush.bf16.xpose.msra.mxu0 %v786
    %793 = vmatpush.bf16.xpose.msra.mxu0 %v783
    %794 = vmatpush.bf16.xpose.msra.mxu0 %v780
    %795 = vmatpush.bf16.xpose.msra.mxu0 %v777
    %796 = vmatmul.bf16.gmra.mxu0 %v765
    %v797 = vpop.f32.mrf.mxu0
    %v798 = vadd.f32 0.0, %v797
    %v799 = vpop.f32.mrf.mxu0
    %v800 = vadd.f32 0.0, %v799
    %801 = vmatmul.bf16.gmra.mxu0 %v768
    %v802 = vpop.f32.mrf.mxu0
    %v803 = vadd.f32 0.0, %v802
    %v804 = vpop.f32.mrf.mxu0
    %v805 = vadd.f32 0.0, %v804
    %806 = vmatmul.bf16.gmra.mxu0 %v771
    %v807 = vpop.f32.mrf.mxu0
    %v808 = vadd.f32 0.0, %v807
    %v809 = vpop.f32.mrf.mxu0
    %v810 = vadd.f32 0.0, %v809
    %811 = vmatmul.bf16.gmra.mxu0 %v774
    %v812 = vpop.f32.mrf.mxu0
    %v813 = vadd.f32 0.0, %v812
    %v814 = vpop.f32.mrf.mxu0
    %v815 = vadd.f32 0.0, %v814
    %816 = vdwg.mxu0
    %817 = vrot.lane.b32.xlu0 %v344, 112
    %v818 = vpop.permute.xlu0 %817
    %819 = vrot.lane.b32.xlu0 %v345, 112
    %v820 = vpop.permute.xlu0 %819
    %821 = vrot.lane.b32.xlu0 %v346, 112
    %v822 = vpop.permute.xlu0 %821
    %823 = vrot.lane.b32.xlu0 %v347, 112
    %v824 = vpop.permute.xlu0 %823
    %825 = vrot.lane.b32.xlu0 %v344, 80
    %v826 = vpop.permute.xlu0 %825
    %827 = vrot.lane.b32.xlu0 %v345, 80
    %v828 = vpop.permute.xlu0 %827
    %829 = vrot.lane.b32.xlu0 %v346, 80
    %v830 = vpop.permute.xlu0 %829
    %831 = vrot.lane.b32.xlu0 %v347, 80
    %v832 = vpop.permute.xlu0 %831
    %v834 = vsel %vm274, %v818, 0
    %v837 = vsel %vm274, %v820, 0
    %v840 = vsel %vm274, %v822, 0
    %v843 = vsel %vm274, %v824, 0
    %v846 = vsel %vm274, %v826, 0
    %v849 = vsel %vm274, %v828, 0
    %v852 = vsel %vm274, %v830, 0
    %v855 = vsel %vm274, %v832, 0
    %857 = vmatpush.bf16.xpose.msra.mxu0 0
    %858 = vmatpush.bf16.xpose.msra.mxu0 0
    %859 = vmatpush.bf16.xpose.msra.mxu0 0
    %860 = vmatpush.bf16.xpose.msra.mxu0 0
    %861 = vmatpush.bf16.xpose.msra.mxu0 %v855
    %862 = vmatpush.bf16.xpose.msra.mxu0 %v852
    %863 = vmatpush.bf16.xpose.msra.mxu0 %v849
    %864 = vmatpush.bf16.xpose.msra.mxu0 %v846
    %865 = vmatmul.bf16.gmra.mxu0 %v834
    %v866 = vpop.f32.mrf.mxu0
    %v867 = vadd.f32 0.0, %v866
    %v868 = vpop.f32.mrf.mxu0
    %v869 = vadd.f32 0.0, %v868
    %870 = vmatmul.bf16.gmra.mxu0 %v837
    %v871 = vpop.f32.mrf.mxu0
    %v872 = vadd.f32 0.0, %v871
    %v873 = vpop.f32.mrf.mxu0
    %v874 = vadd.f32 0.0, %v873
    %875 = vmatmul.bf16.gmra.mxu0 %v840
    %v876 = vpop.f32.mrf.mxu0
    %v877 = vadd.f32 0.0, %v876
    %v878 = vpop.f32.mrf.mxu0
    %v879 = vadd.f32 0.0, %v878
    %880 = vmatmul.bf16.gmra.mxu0 %v843
    %v881 = vpop.f32.mrf.mxu0
    %v882 = vadd.f32 0.0, %v881
    %v883 = vpop.f32.mrf.mxu0
    %v884 = vadd.f32 0.0, %v883
    %885 = vdwg.mxu0
    %v886 = vsel %vm409, %v798, -inf
    %887 = vmax.xlane.f32.xlu0 %v886
    %v888 = vpop.xlane.xlu0 %887
    %v889 = vsel %vm409, %v800, -inf
    %890 = vmax.xlane.f32.xlu0 %v889
    %v891 = vpop.xlane.xlu0 %890
    %v892 = vsel %vm409, %v803, -inf
    %893 = vmax.xlane.f32.xlu0 %v892
    %v894 = vpop.xlane.xlu0 %893
    %v895 = vsel %vm409, %v805, -inf
    %896 = vmax.xlane.f32.xlu0 %v895
    %v897 = vpop.xlane.xlu0 %896
    %v898 = vsel %vm409, %v808, -inf
    %899 = vmax.xlane.f32.xlu0 %v898
    %v900 = vpop.xlane.xlu0 %899
    %v901 = vsel %vm409, %v810, -inf
    %902 = vmax.xlane.f32.xlu0 %v901
    %v903 = vpop.xlane.xlu0 %902
    %v904 = vsel %vm409, %v813, -inf
    %905 = vmax.xlane.f32.xlu0 %v904
    %v906 = vpop.xlane.xlu0 %905
    %v907 = vsel %vm409, %v815, -inf
    %908 = vmax.xlane.f32.xlu0 %v907
    %v909 = vpop.xlane.xlu0 %908
    %v910 = vsel %vm409, %v867, -inf
    %911 = vmax.xlane.f32.xlu0 %v910
    %v912 = vpop.xlane.xlu0 %911
    %v913 = vsel %vm409, %v869, -inf
    %914 = vmax.xlane.f32.xlu0 %v913
    %v915 = vpop.xlane.xlu0 %914
    %v916 = vsel %vm409, %v872, -inf
    %917 = vmax.xlane.f32.xlu0 %v916
    %v918 = vpop.xlane.xlu0 %917
    %v919 = vsel %vm409, %v874, -inf
    %920 = vmax.xlane.f32.xlu0 %v919
    %v921 = vpop.xlane.xlu0 %920
    %v922 = vsel %vm409, %v877, -inf
    %923 = vmax.xlane.f32.xlu0 %v922
    %v924 = vpop.xlane.xlu0 %923
    %v925 = vsel %vm409, %v879, -inf
    %926 = vmax.xlane.f32.xlu0 %v925
    %v927 = vpop.xlane.xlu0 %926
    %v928 = vsel %vm409, %v882, -inf
    %929 = vmax.xlane.f32.xlu0 %v928
    %v930 = vpop.xlane.xlu0 %929
    %v931 = vsel %vm409, %v884, -inf
    %932 = vmax.xlane.f32.xlu0 %v931
    %v933 = vpop.xlane.xlu0 %932
    %v934 = vsub.f32 %v798, %v888
    %v935 = vsub.f32 %v800, %v891
    %v936 = vsub.f32 %v803, %v894
    %v937 = vsub.f32 %v805, %v897
    %v938 = vsub.f32 %v808, %v900
    %v939 = vsub.f32 %v810, %v903
    %v940 = vsub.f32 %v813, %v906
    %v941 = vsub.f32 %v815, %v909
    %v942 = vsub.f32 %v867, %v912
    %v943 = vsub.f32 %v869, %v915
    %v944 = vsub.f32 %v872, %v918
    %v945 = vsub.f32 %v874, %v921
    %v946 = vsub.f32 %v877, %v924
    %v947 = vsub.f32 %v879, %v927
    %v948 = vsub.f32 %v882, %v930
    %v949 = vsub.f32 %v884, %v933
    %v950 = vmul.f32 %v934, 1.442695
    %v951 = vpow.pop %v950
    %v952 = vmul.f32 %v935, 1.442695
    %v953 = vpow.pop %v952
    %v954 = vmul.f32 %v936, 1.442695
    %v955 = vpow.pop %v954
    %v956 = vmul.f32 %v937, 1.442695
    %v957 = vpow.pop %v956
    %v958 = vmul.f32 %v938, 1.442695
    %v959 = vpow.pop %v958
    %v960 = vmul.f32 %v939, 1.442695
    %v961 = vpow.pop %v960
    %v962 = vmul.f32 %v940, 1.442695
    %v963 = vpow.pop %v962
    %v964 = vmul.f32 %v941, 1.442695
    %v965 = vpow.pop %v964
    %v966 = vmul.f32 %v942, 1.442695
    %v967 = vpow.pop %v966
    %v968 = vmul.f32 %v943, 1.442695
    %v969 = vpow.pop %v968
    %v970 = vmul.f32 %v944, 1.442695
    %v971 = vpow.pop %v970
    %v972 = vmul.f32 %v945, 1.442695
    %v973 = vpow.pop %v972
    %v974 = vmul.f32 %v946, 1.442695
    %v975 = vpow.pop %v974
    %v976 = vmul.f32 %v947, 1.442695
    %v977 = vpow.pop %v976
    %v978 = vmul.f32 %v948, 1.442695
    %v979 = vpow.pop %v978
    %v980 = vmul.f32 %v949, 1.442695
    %v981 = vpow.pop %v980
    %v982 = vsel %vm409, %v951, 0.0
    %983 = vadd.xlane.f32.xlu0 %v982
    %v984 = vpop.xlane.xlu0 %983
    %v985 = vsel %vm409, %v953, 0.0
    %986 = vadd.xlane.f32.xlu0 %v985
    %v987 = vpop.xlane.xlu0 %986
    %v988 = vsel %vm409, %v955, 0.0
    %989 = vadd.xlane.f32.xlu0 %v988
    %v990 = vpop.xlane.xlu0 %989
    %v991 = vsel %vm409, %v957, 0.0
    %992 = vadd.xlane.f32.xlu0 %v991
    %v993 = vpop.xlane.xlu0 %992
    %v994 = vsel %vm409, %v959, 0.0
    %995 = vadd.xlane.f32.xlu0 %v994
    %v996 = vpop.xlane.xlu0 %995
    %v997 = vsel %vm409, %v961, 0.0
    %998 = vadd.xlane.f32.xlu0 %v997
    %v999 = vpop.xlane.xlu0 %998
    %v1000 = vsel %vm409, %v963, 0.0
    %1001 = vadd.xlane.f32.xlu0 %v1000
    %v1002 = vpop.xlane.xlu0 %1001
    %v1003 = vsel %vm409, %v965, 0.0
    %1004 = vadd.xlane.f32.xlu0 %v1003
    %v1005 = vpop.xlane.xlu0 %1004
    %v1006 = vsel %vm409, %v967, 0.0
    %1007 = vadd.xlane.f32.xlu0 %v1006
    %v1008 = vpop.xlane.xlu0 %1007
    %v1009 = vsel %vm409, %v969, 0.0
    %1010 = vadd.xlane.f32.xlu0 %v1009
    %v1011 = vpop.xlane.xlu0 %1010
    %v1012 = vsel %vm409, %v971, 0.0
    %1013 = vadd.xlane.f32.xlu0 %v1012
    %v1014 = vpop.xlane.xlu0 %1013
    %v1015 = vsel %vm409, %v973, 0.0
    %1016 = vadd.xlane.f32.xlu0 %v1015
    %v1017 = vpop.xlane.xlu0 %1016
    %v1018 = vsel %vm409, %v975, 0.0
    %1019 = vadd.xlane.f32.xlu0 %v1018
    %v1020 = vpop.xlane.xlu0 %1019
    %v1021 = vsel %vm409, %v977, 0.0
    %1022 = vadd.xlane.f32.xlu0 %v1021
    %v1023 = vpop.xlane.xlu0 %1022
    %v1024 = vsel %vm409, %v979, 0.0
    %1025 = vadd.xlane.f32.xlu0 %v1024
    %v1026 = vpop.xlane.xlu0 %1025
    %v1027 = vsel %vm409, %v981, 0.0
    %1028 = vadd.xlane.f32.xlu0 %v1027
    %v1029 = vpop.xlane.xlu0 %1028
    %v1030 = vrcp.pop %v984
    %v1031 = vrcp.pop %v987
    %v1032 = vrcp.pop %v990
    %v1033 = vrcp.pop %v993
    %v1034 = vrcp.pop %v996
    %v1035 = vrcp.pop %v999
    %v1036 = vrcp.pop %v1002
    %v1037 = vrcp.pop %v1005
    %v1038 = vrcp.pop %v1008
    %v1039 = vrcp.pop %v1011
    %v1040 = vrcp.pop %v1014
    %v1041 = vrcp.pop %v1017
    %v1042 = vrcp.pop %v1020
    %v1043 = vrcp.pop %v1023
    %v1044 = vrcp.pop %v1026
    %v1045 = vrcp.pop %v1029
    %v1046 = vmul.f32 %v951, %v1030
    %v1047 = vmul.f32 %v953, %v1031
    %v1048 = vmul.f32 %v955, %v1032
    %v1049 = vmul.f32 %v957, %v1033
    %v1050 = vmul.f32 %v959, %v1034
    %v1051 = vmul.f32 %v961, %v1035
    %v1052 = vmul.f32 %v963, %v1036
    %v1053 = vmul.f32 %v965, %v1037
    %v1054 = vmul.f32 %v967, %v1038
    %v1055 = vmul.f32 %v969, %v1039
    %v1056 = vmul.f32 %v971, %v1040
    %v1057 = vmul.f32 %v973, %v1041
    %v1058 = vmul.f32 %v975, %v1042
    %v1059 = vmul.f32 %v977, %v1043
    %v1060 = vmul.f32 %v979, %v1044
    %v1061 = vmul.f32 %v981, %v1045
    %v1062 = vpack.c.bf16 %v1046, %v1046
    %v1063 = vpack.c.bf16 %v1047, %v1047
    %v1064 = vpack.c.bf16 %v1048, %v1048
    %v1065 = vpack.c.bf16 %v1049, %v1049
    %v1066 = vpack.c.bf16 %v1050, %v1050
    %v1067 = vpack.c.bf16 %v1051, %v1051
    %v1068 = vpack.c.bf16 %v1052, %v1052
    %v1069 = vpack.c.bf16 %v1053, %v1053
    %v1070 = vpack.c.bf16 %v1054, %v1054
    %v1071 = vpack.c.bf16 %v1055, %v1055
    %v1072 = vpack.c.bf16 %v1056, %v1056
    %v1073 = vpack.c.bf16 %v1057, %v1057
    %v1074 = vpack.c.bf16 %v1058, %v1058
    %v1075 = vpack.c.bf16 %v1059, %v1059
    %v1076 = vpack.c.bf16 %v1060, %v1060
    %v1077 = vpack.c.bf16 %v1061, %v1061
    %v1086 = vunpack.c.l.b16 %v1062
    %v1087 = vunpack.c.l.b16 %v1063
    %v1088 = vunpack.c.l.b16 %v1064
    %v1089 = vunpack.c.l.b16 %v1065
    %v1090 = vunpack.c.l.b16 %v1066
    %v1091 = vunpack.c.l.b16 %v1067
    %v1092 = vunpack.c.l.b16 %v1068
    %v1093 = vunpack.c.l.b16 %v1069
    %v1094 = vpack.c.b16 %v1087, %v1086
    %v1095 = vpack.c.b16 %v1089, %v1088
    %v1096 = vpack.c.b16 %v1091, %v1090
    %v1097 = vpack.c.b16 %v1093, %v1092
    %1098 = vrot.lane.b32.xlu0 %v262, 48
    %v1099 = vpop.permute.xlu0 %1098
    %1100 = vrot.lane.b32.xlu0 %v263, 48
    %v1101 = vpop.permute.xlu0 %1100
    %1102 = vrot.lane.b32.xlu0 %v264, 48
    %v1103 = vpop.permute.xlu0 %1102
    %1104 = vrot.lane.b32.xlu0 %v265, 48
    %v1105 = vpop.permute.xlu0 %1104
    %v1111 = vsel %vm409, %v1094, 0
    %v1114 = vsel %vm409, %v1095, 0
    %v1117 = vsel %vm409, %v1096, 0
    %v1120 = vsel %vm409, %v1097, 0
    %1122 = vmatpush.bf16.msra.mxu0 0
    %1123 = vmatpush.bf16.msra.mxu0 0
    %1124 = vmatpush.bf16.msra.mxu0 0
    %1125 = vmatpush.bf16.msra.mxu0 0
    %1126 = vmatpush.bf16.msra.mxu0 %v1105
    %1127 = vmatpush.bf16.msra.mxu0 %v1103
    %1128 = vmatpush.bf16.msra.mxu0 %v1101
    %1129 = vmatpush.bf16.msra.mxu0 %v1099
    %1130 = vmatmul.bf16.gmra.mxu0 %v1111
    %v1131 = vpop.f32.mrf.mxu0
    %v1132 = vadd.f32 0.0, %v1131
    %v1133 = vpop.f32.mrf.mxu0
    %v1134 = vadd.f32 0.0, %v1133
    %1135 = vmatmul.bf16.gmra.mxu0 %v1114
    %v1136 = vpop.f32.mrf.mxu0
    %v1137 = vadd.f32 0.0, %v1136
    %v1138 = vpop.f32.mrf.mxu0
    %v1139 = vadd.f32 0.0, %v1138
    %1140 = vmatmul.bf16.gmra.mxu0 %v1117
    %v1141 = vpop.f32.mrf.mxu0
    %v1142 = vadd.f32 0.0, %v1141
    %v1143 = vpop.f32.mrf.mxu0
    %v1144 = vadd.f32 0.0, %v1143
    %1145 = vmatmul.bf16.gmra.mxu0 %v1120
    %v1146 = vpop.f32.mrf.mxu0
    %v1147 = vadd.f32 0.0, %v1146
    %v1148 = vpop.f32.mrf.mxu0
    %v1149 = vadd.f32 0.0, %v1148
    %1150 = vdwg.mxu0
    %v1159 = vunpack.c.l.b16 %v1070
    %v1160 = vunpack.c.l.b16 %v1071
    %v1161 = vunpack.c.l.b16 %v1072
    %v1162 = vunpack.c.l.b16 %v1073
    %v1163 = vunpack.c.l.b16 %v1074
    %v1164 = vunpack.c.l.b16 %v1075
    %v1165 = vunpack.c.l.b16 %v1076
    %v1166 = vunpack.c.l.b16 %v1077
    %v1167 = vpack.c.b16 %v1160, %v1159
    %v1168 = vpack.c.b16 %v1162, %v1161
    %v1169 = vpack.c.b16 %v1164, %v1163
    %v1170 = vpack.c.b16 %v1166, %v1165
    %1171 = vrot.lane.b32.xlu0 %v344, 48
    %v1172 = vpop.permute.xlu0 %1171
    %1173 = vrot.lane.b32.xlu0 %v345, 48
    %v1174 = vpop.permute.xlu0 %1173
    %1175 = vrot.lane.b32.xlu0 %v346, 48
    %v1176 = vpop.permute.xlu0 %1175
    %1177 = vrot.lane.b32.xlu0 %v347, 48
    %v1178 = vpop.permute.xlu0 %1177
    %v1184 = vsel %vm409, %v1167, 0
    %v1187 = vsel %vm409, %v1168, 0
    %v1190 = vsel %vm409, %v1169, 0
    %v1193 = vsel %vm409, %v1170, 0
    %1195 = vmatpush.bf16.msra.mxu0 0
    %1196 = vmatpush.bf16.msra.mxu0 0
    %1197 = vmatpush.bf16.msra.mxu0 0
    %1198 = vmatpush.bf16.msra.mxu0 0
    %1199 = vmatpush.bf16.msra.mxu0 %v1178
    %1200 = vmatpush.bf16.msra.mxu0 %v1176
    %1201 = vmatpush.bf16.msra.mxu0 %v1174
    %1202 = vmatpush.bf16.msra.mxu0 %v1172
    %1203 = vmatmul.bf16.gmra.mxu0 %v1184
    %v1204 = vpop.f32.mrf.mxu0
    %v1205 = vadd.f32 0.0, %v1204
    %v1206 = vpop.f32.mrf.mxu0
    %v1207 = vadd.f32 0.0, %v1206
    %1208 = vmatmul.bf16.gmra.mxu0 %v1187
    %v1209 = vpop.f32.mrf.mxu0
    %v1210 = vadd.f32 0.0, %v1209
    %v1211 = vpop.f32.mrf.mxu0
    %v1212 = vadd.f32 0.0, %v1211
    %1213 = vmatmul.bf16.gmra.mxu0 %v1190
    %v1214 = vpop.f32.mrf.mxu0
    %v1215 = vadd.f32 0.0, %v1214
    %v1216 = vpop.f32.mrf.mxu0
    %v1217 = vadd.f32 0.0, %v1216
    %1218 = vmatmul.bf16.gmra.mxu0 %v1193
    %v1219 = vpop.f32.mrf.mxu0
    %v1220 = vadd.f32 0.0, %v1219
    %v1221 = vpop.f32.mrf.mxu0
    %v1222 = vadd.f32 0.0, %v1221
    %1223 = vdwg.mxu0
    %1240 = vrot.lane.b32.xlu0 %v1132, 16
    %v1241 = vpop.permute.xlu0 %1240
    %1242 = vrot.lane.b32.xlu0 %v1134, 16
    %v1243 = vpop.permute.xlu0 %1242
    %1244 = vrot.lane.b32.xlu0 %v1137, 16
    %v1245 = vpop.permute.xlu0 %1244
    %1246 = vrot.lane.b32.xlu0 %v1139, 16
    %v1247 = vpop.permute.xlu0 %1246
    %1248 = vrot.lane.b32.xlu0 %v1142, 16
    %v1249 = vpop.permute.xlu0 %1248
    %1250 = vrot.lane.b32.xlu0 %v1144, 16
    %v1251 = vpop.permute.xlu0 %1250
    %1252 = vrot.lane.b32.xlu0 %v1147, 16
    %v1253 = vpop.permute.xlu0 %1252
    %1254 = vrot.lane.b32.xlu0 %v1149, 16
    %v1255 = vpop.permute.xlu0 %1254
    %1256 = vrot.lane.b32.xlu0 %v1205, 16
    %v1257 = vpop.permute.xlu0 %1256
    %1258 = vrot.lane.b32.xlu0 %v1207, 16
    %v1259 = vpop.permute.xlu0 %1258
    %1260 = vrot.lane.b32.xlu0 %v1210, 16
    %v1261 = vpop.permute.xlu0 %1260
    %1262 = vrot.lane.b32.xlu0 %v1212, 16
    %v1263 = vpop.permute.xlu0 %1262
    %1264 = vrot.lane.b32.xlu0 %v1215, 16
    %v1265 = vpop.permute.xlu0 %1264
    %1266 = vrot.lane.b32.xlu0 %v1217, 16
    %v1267 = vpop.permute.xlu0 %1266
    %1268 = vrot.lane.b32.xlu0 %v1220, 16
    %v1269 = vpop.permute.xlu0 %1268
    %1270 = vrot.lane.b32.xlu0 %v1222, 16
    %v1271 = vpop.permute.xlu0 %1270
    %v1288 = vsel %vm274, %v656, %v1241
    %v1289 = vsel %vm274, %v658, %v1243
    %v1290 = vsel %vm274, %v661, %v1245
    %v1291 = vsel %vm274, %v663, %v1247
    %v1292 = vsel %vm274, %v666, %v1249
    %v1293 = vsel %vm274, %v668, %v1251
    %v1294 = vsel %vm274, %v671, %v1253
    %v1295 = vsel %vm274, %v673, %v1255
    %v1296 = vsel %vm274, %v729, %v1257
    %v1297 = vsel %vm274, %v731, %v1259
    %v1298 = vsel %vm274, %v734, %v1261
    %v1299 = vsel %vm274, %v736, %v1263
    %v1300 = vsel %vm274, %v739, %v1265
    %v1301 = vsel %vm274, %v741, %v1267
    %v1302 = vsel %vm274, %v744, %v1269
    %v1303 = vsel %vm274, %v746, %v1271
    %v1304 = vld [vmem:[%s1 + $0x28] sm:$0xf]
    %v1305 = vld [vmem:[%s1 + $0x2c] sm:$0xf]
    %v1306 = vld [vmem:[%s1 + $0x30] sm:$0xf]
    %v1307 = vld [vmem:[%s1 + $0x34] sm:$0xf]
    %v1308 = vpack.c.bf16 %v1289, %v1288
    %v1309 = vpack.c.bf16 %v1291, %v1290
    %v1310 = vpack.c.bf16 %v1293, %v1292
    %v1311 = vpack.c.bf16 %v1295, %v1294
    %v1312 = vpack.c.bf16 %v1297, %v1296
    %v1313 = vpack.c.bf16 %v1299, %v1298
    %v1314 = vpack.c.bf16 %v1301, %v1300
    %v1315 = vpack.c.bf16 %v1303, %v1302
    %v1316 = vld [vmem:[%s2 + $0x3] sm:$0x1]
    %v1317 = vperm.slane %v1316, 0
    %v1322 = vunpack.c.l.b16 %v1304
    %v1323 = vunpack.c.l.b16 %v1305
    %v1324 = vunpack.c.l.b16 %v1306
    %v1325 = vunpack.c.l.b16 %v1307
    %v1326 = vpack.c.b16 %v1323, %v1322
    %v1327 = vpack.c.b16 %v1325, %v1324
    %v1331 = vsel %vm156, %v1308, 0
    %v1334 = vsel %vm156, %v1309, 0
    %v1337 = vsel %vm156, %v1310, 0
    %v1340 = vsel %vm156, %v1311, 0
    %v1343 = vsel %vm156, %v1312, 0
    %v1346 = vsel %vm156, %v1313, 0
    %v1349 = vsel %vm156, %v1314, 0
    %v1352 = vsel %vm156, %v1315, 0
    %1354 = vmatpush.bf16.msra.mxu0 0
    %1355 = vmatpush.bf16.msra.mxu0 0
    %1356 = vmatpush.bf16.msra.mxu0 0
    %1357 = vmatpush.bf16.msra.mxu0 0
    %1358 = vmatpush.bf16.msra.mxu0 0
    %1359 = vmatpush.bf16.msra.mxu0 0
    %1360 = vmatpush.bf16.msra.mxu0 %v1327
    %1361 = vmatpush.bf16.msra.mxu0 %v1326
    %1362 = vmatmul.bf16.gmra.mxu0 %v1331
    %v1363 = vpop.f32.mrf.mxu0
    %v1364 = vadd.f32 %v1317, %v1363
    %v1365 = vpop.f32.mrf.mxu0
    %v1366 = vadd.f32 %v1317, %v1365
    %1367 = vmatmul.bf16.gmra.mxu0 %v1334
    %v1368 = vpop.f32.mrf.mxu0
    %v1369 = vadd.f32 %v1317, %v1368
    %v1370 = vpop.f32.mrf.mxu0
    %v1371 = vadd.f32 %v1317, %v1370
    %1372 = vmatmul.bf16.gmra.mxu0 %v1337
    %v1373 = vpop.f32.mrf.mxu0
    %v1374 = vadd.f32 %v1317, %v1373
    %v1375 = vpop.f32.mrf.mxu0
    %v1376 = vadd.f32 %v1317, %v1375
    %1377 = vmatmul.bf16.gmra.mxu0 %v1340
    %v1378 = vpop.f32.mrf.mxu0
    %v1379 = vadd.f32 %v1317, %v1378
    %v1380 = vpop.f32.mrf.mxu0
    %v1381 = vadd.f32 %v1317, %v1380
    %1382 = vmatmul.bf16.gmra.mxu0 %v1343
    %v1383 = vpop.f32.mrf.mxu0
    %v1384 = vadd.f32 %v1317, %v1383
    %v1385 = vpop.f32.mrf.mxu0
    %v1386 = vadd.f32 %v1317, %v1385
    %1387 = vmatmul.bf16.gmra.mxu0 %v1346
    %v1388 = vpop.f32.mrf.mxu0
    %v1389 = vadd.f32 %v1317, %v1388
    %v1390 = vpop.f32.mrf.mxu0
    %v1391 = vadd.f32 %v1317, %v1390
    %1392 = vmatmul.bf16.gmra.mxu0 %v1349
    %v1393 = vpop.f32.mrf.mxu0
    %v1394 = vadd.f32 %v1317, %v1393
    %v1395 = vpop.f32.mrf.mxu0
    %v1396 = vadd.f32 %v1317, %v1395
    %1397 = vmatmul.bf16.gmra.mxu0 %v1352
    %v1398 = vpop.f32.mrf.mxu0
    %v1399 = vadd.f32 %v1317, %v1398
    %v1400 = vpop.f32.mrf.mxu0
    %v1401 = vadd.f32 %v1317, %v1400
    %1402 = vdwg.mxu0
    %v1403 = vadd.f32 %v91, %v1364
    %v1404 = vadd.f32 %v93, %v1366
    %v1405 = vadd.f32 %v96, %v1369
    %v1406 = vadd.f32 %v98, %v1371
    %v1407 = vadd.f32 %v101, %v1374
    %v1408 = vadd.f32 %v103, %v1376
    %v1409 = vadd.f32 %v106, %v1379
    %v1410 = vadd.f32 %v108, %v1381
    %v1411 = vadd.f32 %v111, %v1384
    %v1412 = vadd.f32 %v113, %v1386
    %v1413 = vadd.f32 %v116, %v1389
    %v1414 = vadd.f32 %v118, %v1391
    %v1415 = vadd.f32 %v121, %v1394
    %v1416 = vadd.f32 %v123, %v1396
    %v1417 = vadd.f32 %v126, %v1399
    %v1418 = vadd.f32 %v128, %v1401
    %v1419 = vld [vmem:[%s2 + $0x5] sm:$0x1]
    %v1420 = vld [vmem:[%s2 + $0x7] sm:$0x1]
    %v1421 = vsel %vm156, %v1403, 0.0
    %1422 = vadd.xlane.f32.xlu0 %v1421
    %v1423 = vpop.xlane.xlu0 %1422
    %v1424 = vsel %vm156, %v1404, 0.0
    %1425 = vadd.xlane.f32.xlu0 %v1424
    %v1426 = vpop.xlane.xlu0 %1425
    %v1427 = vsel %vm156, %v1405, 0.0
    %1428 = vadd.xlane.f32.xlu0 %v1427
    %v1429 = vpop.xlane.xlu0 %1428
    %v1430 = vsel %vm156, %v1406, 0.0
    %1431 = vadd.xlane.f32.xlu0 %v1430
    %v1432 = vpop.xlane.xlu0 %1431
    %v1433 = vsel %vm156, %v1407, 0.0
    %1434 = vadd.xlane.f32.xlu0 %v1433
    %v1435 = vpop.xlane.xlu0 %1434
    %v1436 = vsel %vm156, %v1408, 0.0
    %1437 = vadd.xlane.f32.xlu0 %v1436
    %v1438 = vpop.xlane.xlu0 %1437
    %v1439 = vsel %vm156, %v1409, 0.0
    %1440 = vadd.xlane.f32.xlu0 %v1439
    %v1441 = vpop.xlane.xlu0 %1440
    %v1442 = vsel %vm156, %v1410, 0.0
    %1443 = vadd.xlane.f32.xlu0 %v1442
    %v1444 = vpop.xlane.xlu0 %1443
    %v1445 = vsel %vm156, %v1411, 0.0
    %1446 = vadd.xlane.f32.xlu0 %v1445
    %v1447 = vpop.xlane.xlu0 %1446
    %v1448 = vsel %vm156, %v1412, 0.0
    %1449 = vadd.xlane.f32.xlu0 %v1448
    %v1450 = vpop.xlane.xlu0 %1449
    %v1451 = vsel %vm156, %v1413, 0.0
    %1452 = vadd.xlane.f32.xlu0 %v1451
    %v1453 = vpop.xlane.xlu0 %1452
    %v1454 = vsel %vm156, %v1414, 0.0
    %1455 = vadd.xlane.f32.xlu0 %v1454
    %v1456 = vpop.xlane.xlu0 %1455
    %v1457 = vsel %vm156, %v1415, 0.0
    %1458 = vadd.xlane.f32.xlu0 %v1457
    %v1459 = vpop.xlane.xlu0 %1458
    %v1460 = vsel %vm156, %v1416, 0.0
    %1461 = vadd.xlane.f32.xlu0 %v1460
    %v1462 = vpop.xlane.xlu0 %1461
    %v1463 = vsel %vm156, %v1417, 0.0
    %1464 = vadd.xlane.f32.xlu0 %v1463
    %v1465 = vpop.xlane.xlu0 %1464
    %v1466 = vsel %vm156, %v1418, 0.0
    %1467 = vadd.xlane.f32.xlu0 %v1466
    %v1468 = vpop.xlane.xlu0 %1467
    %v1469 = vrcp.pop 32.0
    %v1470 = vmul.f32 32.0, %v1469
    %v1471 = vsub.f32 1.0, %v1470
    %v1472 = vmul.f32 %v1469, %v1471
    %v1473 = vadd.f32 %v1469, %v1472
    %vm1474 = vweird.f32 %v1469
    %v1475 = vsel %vm1474, %v1469, %v1473
    %v1476 = vmul.f32 %v1423, %v1475
    %v1477 = vmul.f32 %v1426, %v1475
    %v1478 = vmul.f32 %v1429, %v1475
    %v1479 = vmul.f32 %v1432, %v1475
    %v1480 = vmul.f32 %v1435, %v1475
    %v1481 = vmul.f32 %v1438, %v1475
    %v1482 = vmul.f32 %v1441, %v1475
    %v1483 = vmul.f32 %v1444, %v1475
    %v1484 = vmul.f32 %v1447, %v1475
    %v1485 = vmul.f32 %v1450, %v1475
    %v1486 = vmul.f32 %v1453, %v1475
    %v1487 = vmul.f32 %v1456, %v1475
    %v1488 = vmul.f32 %v1459, %v1475
    %v1489 = vmul.f32 %v1462, %v1475
    %v1490 = vmul.f32 %v1465, %v1475
    %v1491 = vmul.f32 %v1468, %v1475
    %v1492 = vsub.f32 %v1403, %v1476
    %v1493 = vsub.f32 %v1404, %v1477
    %v1494 = vsub.f32 %v1405, %v1478
    %v1495 = vsub.f32 %v1406, %v1479
    %v1496 = vsub.f32 %v1407, %v1480
    %v1497 = vsub.f32 %v1408, %v1481
    %v1498 = vsub.f32 %v1409, %v1482
    %v1499 = vsub.f32 %v1410, %v1483
    %v1500 = vsub.f32 %v1411, %v1484
    %v1501 = vsub.f32 %v1412, %v1485
    %v1502 = vsub.f32 %v1413, %v1486
    %v1503 = vsub.f32 %v1414, %v1487
    %v1504 = vsub.f32 %v1415, %v1488
    %v1505 = vsub.f32 %v1416, %v1489
    %v1506 = vsub.f32 %v1417, %v1490
    %v1507 = vsub.f32 %v1418, %v1491
    %v1508 = vmul.f32 %v1492, %v1492
    %v1509 = vmul.f32 %v1493, %v1493
    %v1510 = vmul.f32 %v1494, %v1494
    %v1511 = vmul.f32 %v1495, %v1495
    %v1512 = vmul.f32 %v1496, %v1496
    %v1513 = vmul.f32 %v1497, %v1497
    %v1514 = vmul.f32 %v1498, %v1498
    %v1515 = vmul.f32 %v1499, %v1499
    %v1516 = vmul.f32 %v1500, %v1500
    %v1517 = vmul.f32 %v1501, %v1501
    %v1518 = vmul.f32 %v1502, %v1502
    %v1519 = vmul.f32 %v1503, %v1503
    %v1520 = vmul.f32 %v1504, %v1504
    %v1521 = vmul.f32 %v1505, %v1505
    %v1522 = vmul.f32 %v1506, %v1506
    %v1523 = vmul.f32 %v1507, %v1507
    %v1524 = vsel %vm156, %v1508, 0.0
    %1525 = vadd.xlane.f32.xlu0 %v1524
    %v1526 = vpop.xlane.xlu0 %1525
    %v1527 = vsel %vm156, %v1509, 0.0
    %1528 = vadd.xlane.f32.xlu0 %v1527
    %v1529 = vpop.xlane.xlu0 %1528
    %v1530 = vsel %vm156, %v1510, 0.0
    %1531 = vadd.xlane.f32.xlu0 %v1530
    %v1532 = vpop.xlane.xlu0 %1531
    %v1533 = vsel %vm156, %v1511, 0.0
    %1534 = vadd.xlane.f32.xlu0 %v1533
    %v1535 = vpop.xlane.xlu0 %1534
    %v1536 = vsel %vm156, %v1512, 0.0
    %1537 = vadd.xlane.f32.xlu0 %v1536
    %v1538 = vpop.xlane.xlu0 %1537
    %v1539 = vsel %vm156, %v1513, 0.0
    %1540 = vadd.xlane.f32.xlu0 %v1539
    %v1541 = vpop.xlane.xlu0 %1540
    %v1542 = vsel %vm156, %v1514, 0.0
    %1543 = vadd.xlane.f32.xlu0 %v1542
    %v1544 = vpop.xlane.xlu0 %1543
    %v1545 = vsel %vm156, %v1515, 0.0
    %1546 = vadd.xlane.f32.xlu0 %v1545
    %v1547 = vpop.xlane.xlu0 %1546
    %v1548 = vsel %vm156, %v1516, 0.0
    %1549 = vadd.xlane.f32.xlu0 %v1548
    %v1550 = vpop.xlane.xlu0 %1549
    %v1551 = vsel %vm156, %v1517, 0.0
    %1552 = vadd.xlane.f32.xlu0 %v1551
    %v1553 = vpop.xlane.xlu0 %1552
    %v1554 = vsel %vm156, %v1518, 0.0
    %1555 = vadd.xlane.f32.xlu0 %v1554
    %v1556 = vpop.xlane.xlu0 %1555
    %v1557 = vsel %vm156, %v1519, 0.0
    %1558 = vadd.xlane.f32.xlu0 %v1557
    %v1559 = vpop.xlane.xlu0 %1558
    %v1560 = vsel %vm156, %v1520, 0.0
    %1561 = vadd.xlane.f32.xlu0 %v1560
    %v1562 = vpop.xlane.xlu0 %1561
    %v1563 = vsel %vm156, %v1521, 0.0
    %1564 = vadd.xlane.f32.xlu0 %v1563
    %v1565 = vpop.xlane.xlu0 %1564
    %v1566 = vsel %vm156, %v1522, 0.0
    %1567 = vadd.xlane.f32.xlu0 %v1566
    %v1568 = vpop.xlane.xlu0 %1567
    %v1569 = vsel %vm156, %v1523, 0.0
    %1570 = vadd.xlane.f32.xlu0 %v1569
    %v1571 = vpop.xlane.xlu0 %1570
    %v1572 = vmul.f32 %v1526, %v1475
    %v1573 = vmul.f32 %v1529, %v1475
    %v1574 = vmul.f32 %v1532, %v1475
    %v1575 = vmul.f32 %v1535, %v1475
    %v1576 = vmul.f32 %v1538, %v1475
    %v1577 = vmul.f32 %v1541, %v1475
    %v1578 = vmul.f32 %v1544, %v1475
    %v1579 = vmul.f32 %v1547, %v1475
    %v1580 = vmul.f32 %v1550, %v1475
    %v1581 = vmul.f32 %v1553, %v1475
    %v1582 = vmul.f32 %v1556, %v1475
    %v1583 = vmul.f32 %v1559, %v1475
    %v1584 = vmul.f32 %v1562, %v1475
    %v1585 = vmul.f32 %v1565, %v1475
    %v1586 = vmul.f32 %v1568, %v1475
    %v1587 = vmul.f32 %v1571, %v1475
    %v1588 = vadd.f32 %v1572, 1e-05
    %v1589 = vadd.f32 %v1573, 1e-05
    %v1590 = vadd.f32 %v1574, 1e-05
    %v1591 = vadd.f32 %v1575, 1e-05
    %v1592 = vadd.f32 %v1576, 1e-05
    %v1593 = vadd.f32 %v1577, 1e-05
    %v1594 = vadd.f32 %v1578, 1e-05
    %v1595 = vadd.f32 %v1579, 1e-05
    %v1596 = vadd.f32 %v1580, 1e-05
    %v1597 = vadd.f32 %v1581, 1e-05
    %v1598 = vadd.f32 %v1582, 1e-05
    %v1599 = vadd.f32 %v1583, 1e-05
    %v1600 = vadd.f32 %v1584, 1e-05
    %v1601 = vadd.f32 %v1585, 1e-05
    %v1602 = vadd.f32 %v1586, 1e-05
    %v1603 = vadd.f32 %v1587, 1e-05
    %v1604 = vrsqrt.pop %v1588
    %v1605 = vmul.f32 %v1604, %v1588
    %v1606 = vmul.f32 %v1605, %v1604
    %v1607 = vmul.f32 0.5, %v1606
    %v1608 = vsub.f32 1.5, %v1607
    %v1609 = vmul.f32 %v1604, %v1608
    %vm1610 = vweird.f32 %v1588
    %vm1611 = vweird.f32 %v1604
    %vm1612 = vmor %vm1610, %vm1611
    %v1613 = vsel %vm1612, %v1604, %v1609
    %v1614 = vrsqrt.pop %v1589
    %v1615 = vmul.f32 %v1614, %v1589
    %v1616 = vmul.f32 %v1615, %v1614
    %v1617 = vmul.f32 0.5, %v1616
    %v1618 = vsub.f32 1.5, %v1617
    %v1619 = vmul.f32 %v1614, %v1618
    %vm1620 = vweird.f32 %v1589
    %vm1621 = vweird.f32 %v1614
    %vm1622 = vmor %vm1620, %vm1621
    %v1623 = vsel %vm1622, %v1614, %v1619
    %v1624 = vrsqrt.pop %v1590
    %v1625 = vmul.f32 %v1624, %v1590
    %v1626 = vmul.f32 %v1625, %v1624
    %v1627 = vmul.f32 0.5, %v1626
    %v1628 = vsub.f32 1.5, %v1627
    %v1629 = vmul.f32 %v1624, %v1628
    %vm1630 = vweird.f32 %v1590
    %vm1631 = vweird.f32 %v1624
    %vm1632 = vmor %vm1630, %vm1631
    %v1633 = vsel %vm1632, %v1624, %v1629
    %v1634 = vrsqrt.pop %v1591
    %v1635 = vmul.f32 %v1634, %v1591
    %v1636 = vmul.f32 %v1635, %v1634
    %v1637 = vmul.f32 0.5, %v1636
    %v1638 = vsub.f32 1.5, %v1637
    %v1639 = vmul.f32 %v1634, %v1638
    %vm1640 = vweird.f32 %v1591
    %vm1641 = vweird.f32 %v1634
    %vm1642 = vmor %vm1640, %vm1641
    %v1643 = vsel %vm1642, %v1634, %v1639
    %v1644 = vrsqrt.pop %v1592
    %v1645 = vmul.f32 %v1644, %v1592
    %v1646 = vmul.f32 %v1645, %v1644
    %v1647 = vmul.f32 0.5, %v1646
    %v1648 = vsub.f32 1.5, %v1647
    %v1649 = vmul.f32 %v1644, %v1648
    %vm1650 = vweird.f32 %v1592
    %vm1651 = vweird.f32 %v1644
    %vm1652 = vmor %vm1650, %vm1651
    %v1653 = vsel %vm1652, %v1644, %v1649
    %v1654 = vrsqrt.pop %v1593
    %v1655 = vmul.f32 %v1654, %v1593
    %v1656 = vmul.f32 %v1655, %v1654
    %v1657 = vmul.f32 0.5, %v1656
    %v1658 = vsub.f32 1.5, %v1657
    %v1659 = vmul.f32 %v1654, %v1658
    %vm1660 = vweird.f32 %v1593
    %vm1661 = vweird.f32 %v1654
    %vm1662 = vmor %vm1660, %vm1661
    %v1663 = vsel %vm1662, %v1654, %v1659
    %v1664 = vrsqrt.pop %v1594
    %v1665 = vmul.f32 %v1664, %v1594
    %v1666 = vmul.f32 %v1665, %v1664
    %v1667 = vmul.f32 0.5, %v1666
    %v1668 = vsub.f32 1.5, %v1667
    %v1669 = vmul.f32 %v1664, %v1668
    %vm1670 = vweird.f32 %v1594
    %vm1671 = vweird.f32 %v1664
    %vm1672 = vmor %vm1670, %vm1671
    %v1673 = vsel %vm1672, %v1664, %v1669
    %v1674 = vrsqrt.pop %v1595
    %v1675 = vmul.f32 %v1674, %v1595
    %v1676 = vmul.f32 %v1675, %v1674
    %v1677 = vmul.f32 0.5, %v1676
    %v1678 = vsub.f32 1.5, %v1677
    %v1679 = vmul.f32 %v1674, %v1678
    %vm1680 = vweird.f32 %v1595
    %vm1681 = vweird.f32 %v1674
    %vm1682 = vmor %vm1680, %vm1681
    %v1683 = vsel %vm1682, %v1674, %v1679
    %v1684 = vrsqrt.pop %v1596
    %v1685 = vmul.f32 %v1684, %v1596
    %v1686 = vmul.f32 %v1685, %v1684
    %v1687 = vmul.f32 0.5, %v1686
    %v1688 = vsub.f32 1.5, %v1687
    %v1689 = vmul.f32 %v1684, %v1688
    %vm1690 = vweird.f32 %v1596
    %vm1691 = vweird.f32 %v1684
    %vm1692 = vmor %vm1690, %vm1691
    %v1693 = vsel %vm1692, %v1684, %v1689
    %v1694 = vrsqrt.pop %v1597
    %v1695 = vmul.f32 %v1694, %v1597
    %v1696 = vmul.f32 %v1695, %v1694
    %v1697 = vmul.f32 0.5, %v1696
    %v1698 = vsub.f32 1.5, %v1697
    %v1699 = vmul.f32 %v1694, %v1698
    %vm1700 = vweird.f32 %v1597
    %vm1701 = vweird.f32 %v1694
    %vm1702 = vmor %vm1700, %vm1701
    %v1703 = vsel %vm1702, %v1694, %v1699
    %v1704 = vrsqrt.pop %v1598
    %v1705 = vmul.f32 %v1704, %v1598
    %v1706 = vmul.f32 %v1705, %v1704
    %v1707 = vmul.f32 0.5, %v1706
    %v1708 = vsub.f32 1.5, %v1707
    %v1709 = vmul.f32 %v1704, %v1708
    %vm1710 = vweird.f32 %v1598
    %vm1711 = vweird.f32 %v1704
    %vm1712 = vmor %vm1710, %vm1711
    %v1713 = vsel %vm1712, %v1704, %v1709
    %v1714 = vrsqrt.pop %v1599
    %v1715 = vmul.f32 %v1714, %v1599
    %v1716 = vmul.f32 %v1715, %v1714
    %v1717 = vmul.f32 0.5, %v1716
    %v1718 = vsub.f32 1.5, %v1717
    %v1719 = vmul.f32 %v1714, %v1718
    %vm1720 = vweird.f32 %v1599
    %vm1721 = vweird.f32 %v1714
    %vm1722 = vmor %vm1720, %vm1721
    %v1723 = vsel %vm1722, %v1714, %v1719
    %v1724 = vrsqrt.pop %v1600
    %v1725 = vmul.f32 %v1724, %v1600
    %v1726 = vmul.f32 %v1725, %v1724
    %v1727 = vmul.f32 0.5, %v1726
    %v1728 = vsub.f32 1.5, %v1727
    %v1729 = vmul.f32 %v1724, %v1728
    %vm1730 = vweird.f32 %v1600
    %vm1731 = vweird.f32 %v1724
    %vm1732 = vmor %vm1730, %vm1731
    %v1733 = vsel %vm1732, %v1724, %v1729
    %v1734 = vrsqrt.pop %v1601
    %v1735 = vmul.f32 %v1734, %v1601
    %v1736 = vmul.f32 %v1735, %v1734
    %v1737 = vmul.f32 0.5, %v1736
    %v1738 = vsub.f32 1.5, %v1737
    %v1739 = vmul.f32 %v1734, %v1738
    %vm1740 = vweird.f32 %v1601
    %vm1741 = vweird.f32 %v1734
    %vm1742 = vmor %vm1740, %vm1741
    %v1743 = vsel %vm1742, %v1734, %v1739
    %v1744 = vrsqrt.pop %v1602
    %v1745 = vmul.f32 %v1744, %v1602
    %v1746 = vmul.f32 %v1745, %v1744
    %v1747 = vmul.f32 0.5, %v1746
    %v1748 = vsub.f32 1.5, %v1747
    %v1749 = vmul.f32 %v1744, %v1748
    %vm1750 = vweird.f32 %v1602
    %vm1751 = vweird.f32 %v1744
    %vm1752 = vmor %vm1750, %vm1751
    %v1753 = vsel %vm1752, %v1744, %v1749
    %v1754 = vrsqrt.pop %v1603
    %v1755 = vmul.f32 %v1754, %v1603
    %v1756 = vmul.f32 %v1755, %v1754
    %v1757 = vmul.f32 0.5, %v1756
    %v1758 = vsub.f32 1.5, %v1757
    %v1759 = vmul.f32 %v1754, %v1758
    %vm1760 = vweird.f32 %v1603
    %vm1761 = vweird.f32 %v1754
    %vm1762 = vmor %vm1760, %vm1761
    %v1763 = vsel %vm1762, %v1754, %v1759
    %v1764 = vmul.f32 %v1492, %v1613
    %v1765 = vmul.f32 %v1493, %v1623
    %v1766 = vmul.f32 %v1494, %v1633
    %v1767 = vmul.f32 %v1495, %v1643
    %v1768 = vmul.f32 %v1496, %v1653
    %v1769 = vmul.f32 %v1497, %v1663
    %v1770 = vmul.f32 %v1498, %v1673
    %v1771 = vmul.f32 %v1499, %v1683
    %v1772 = vmul.f32 %v1500, %v1693
    %v1773 = vmul.f32 %v1501, %v1703
    %v1774 = vmul.f32 %v1502, %v1713
    %v1775 = vmul.f32 %v1503, %v1723
    %v1776 = vmul.f32 %v1504, %v1733
    %v1777 = vmul.f32 %v1505, %v1743
    %v1778 = vmul.f32 %v1506, %v1753
    %v1779 = vmul.f32 %v1507, %v1763
    %v1780 = vperm.slane %v1419, 0
    %v1781 = vmul.f32 %v1764, %v1780
    %v1782 = vmul.f32 %v1765, %v1780
    %v1783 = vmul.f32 %v1766, %v1780
    %v1784 = vmul.f32 %v1767, %v1780
    %v1785 = vmul.f32 %v1768, %v1780
    %v1786 = vmul.f32 %v1769, %v1780
    %v1787 = vmul.f32 %v1770, %v1780
    %v1788 = vmul.f32 %v1771, %v1780
    %v1789 = vmul.f32 %v1772, %v1780
    %v1790 = vmul.f32 %v1773, %v1780
    %v1791 = vmul.f32 %v1774, %v1780
    %v1792 = vmul.f32 %v1775, %v1780
    %v1793 = vmul.f32 %v1776, %v1780
    %v1794 = vmul.f32 %v1777, %v1780
    %v1795 = vmul.f32 %v1778, %v1780
    %v1796 = vmul.f32 %v1779, %v1780
    %v1797 = vperm.slane %v1420, 0
    %v1798 = vadd.f32 %v1781, %v1797
    %v1799 = vadd.f32 %v1782, %v1797
    %v1800 = vadd.f32 %v1783, %v1797
    %v1801 = vadd.f32 %v1784, %v1797
    %v1802 = vadd.f32 %v1785, %v1797
    %v1803 = vadd.f32 %v1786, %v1797
    %v1804 = vadd.f32 %v1787, %v1797
    %v1805 = vadd.f32 %v1788, %v1797
    %v1806 = vadd.f32 %v1789, %v1797
    %v1807 = vadd.f32 %v1790, %v1797
    %v1808 = vadd.f32 %v1791, %v1797
    %v1809 = vadd.f32 %v1792, %v1797
    %v1810 = vadd.f32 %v1793, %v1797
    %v1811 = vadd.f32 %v1794, %v1797
    %v1812 = vadd.f32 %v1795, %v1797
    %v1813 = vadd.f32 %v1796, %v1797
    %v1814 = vld [vmem:[%s1 + $0x48] sm:$0xf]
    %v1815 = vld [vmem:[%s1 + $0x4c] sm:$0xf]
    %v1816 = vld [vmem:[%s1 + $0x50] sm:$0xf]
    %v1817 = vld [vmem:[%s1 + $0x54] sm:$0xf]
    %v1818 = vld [vmem:[%s1 + $0x68] sm:$0xf]
    %v1819 = vld [vmem:[%s1 + $0x6c] sm:$0xf]
    %v1820 = vpack.c.bf16 %v1799, %v1798
    %v1821 = vpack.c.bf16 %v1801, %v1800
    %v1822 = vpack.c.bf16 %v1803, %v1802
    %v1823 = vpack.c.bf16 %v1805, %v1804
    %v1824 = vpack.c.bf16 %v1807, %v1806
    %v1825 = vpack.c.bf16 %v1809, %v1808
    %v1826 = vpack.c.bf16 %v1811, %v1810
    %v1827 = vpack.c.bf16 %v1813, %v1812
    %v1828 = vld [vmem:[%s2 + $0x9] sm:$0x1]
    %v1829 = vperm.slane %v1828, 0
    %v1834 = vunpack.c.l.b16 %v1814
    %v1835 = vunpack.c.l.b16 %v1815
    %v1836 = vunpack.c.l.b16 %v1816
    %v1837 = vunpack.c.l.b16 %v1817
    %v1838 = vpack.c.b16 %v1835, %v1834
    %v1839 = vpack.c.b16 %v1837, %v1836
    %v1843 = vsel %vm156, %v1820, 0
    %v1846 = vsel %vm156, %v1821, 0
    %v1849 = vsel %vm156, %v1822, 0
    %v1852 = vsel %vm156, %v1823, 0
    %v1855 = vsel %vm156, %v1824, 0
    %v1858 = vsel %vm156, %v1825, 0
    %v1861 = vsel %vm156, %v1826, 0
    %v1864 = vsel %vm156, %v1827, 0
    %1866 = vmatpush.bf16.msra.mxu0 0
    %1867 = vmatpush.bf16.msra.mxu0 0
    %1868 = vmatpush.bf16.msra.mxu0 0
    %1869 = vmatpush.bf16.msra.mxu0 0
    %1870 = vmatpush.bf16.msra.mxu0 0
    %1871 = vmatpush.bf16.msra.mxu0 0
    %1872 = vmatpush.bf16.msra.mxu0 %v1839
    %1873 = vmatpush.bf16.msra.mxu0 %v1838
    %1874 = vmatmul.bf16.gmra.mxu0 %v1843
    %v1875 = vpop.f32.mrf.mxu0
    %v1876 = vadd.f32 %v1829, %v1875
    %v1877 = vpop.f32.mrf.mxu0
    %v1878 = vadd.f32 %v1829, %v1877
    %1879 = vmatmul.bf16.gmra.mxu0 %v1846
    %v1880 = vpop.f32.mrf.mxu0
    %v1881 = vadd.f32 %v1829, %v1880
    %v1882 = vpop.f32.mrf.mxu0
    %v1883 = vadd.f32 %v1829, %v1882
    %1884 = vmatmul.bf16.gmra.mxu0 %v1849
    %v1885 = vpop.f32.mrf.mxu0
    %v1886 = vadd.f32 %v1829, %v1885
    %v1887 = vpop.f32.mrf.mxu0
    %v1888 = vadd.f32 %v1829, %v1887
    %1889 = vmatmul.bf16.gmra.mxu0 %v1852
    %v1890 = vpop.f32.mrf.mxu0
    %v1891 = vadd.f32 %v1829, %v1890
    %v1892 = vpop.f32.mrf.mxu0
    %v1893 = vadd.f32 %v1829, %v1892
    %1894 = vmatmul.bf16.gmra.mxu0 %v1855
    %v1895 = vpop.f32.mrf.mxu0
    %v1896 = vadd.f32 %v1829, %v1895
    %v1897 = vpop.f32.mrf.mxu0
    %v1898 = vadd.f32 %v1829, %v1897
    %1899 = vmatmul.bf16.gmra.mxu0 %v1858
    %v1900 = vpop.f32.mrf.mxu0
    %v1901 = vadd.f32 %v1829, %v1900
    %v1902 = vpop.f32.mrf.mxu0
    %v1903 = vadd.f32 %v1829, %v1902
    %1904 = vmatmul.bf16.gmra.mxu0 %v1861
    %v1905 = vpop.f32.mrf.mxu0
    %v1906 = vadd.f32 %v1829, %v1905
    %v1907 = vpop.f32.mrf.mxu0
    %v1908 = vadd.f32 %v1829, %v1907
    %1909 = vmatmul.bf16.gmra.mxu0 %v1864
    %v1910 = vpop.f32.mrf.mxu0
    %v1911 = vadd.f32 %v1829, %v1910
    %v1912 = vpop.f32.mrf.mxu0
    %v1913 = vadd.f32 %v1829, %v1912
    %1914 = vdwg.mxu0
    %v1915 = vmax.f32 %v1876, 0.0
    %v1916 = vmax.f32 %v1878, 0.0
    %v1917 = vmax.f32 %v1881, 0.0
    %v1918 = vmax.f32 %v1883, 0.0
    %v1919 = vmax.f32 %v1886, 0.0
    %v1920 = vmax.f32 %v1888, 0.0
    %v1921 = vmax.f32 %v1891, 0.0
    %v1922 = vmax.f32 %v1893, 0.0
    %v1923 = vmax.f32 %v1896, 0.0
    %v1924 = vmax.f32 %v1898, 0.0
    %v1925 = vmax.f32 %v1901, 0.0
    %v1926 = vmax.f32 %v1903, 0.0
    %v1927 = vmax.f32 %v1906, 0.0
    %v1928 = vmax.f32 %v1908, 0.0
    %v1929 = vmax.f32 %v1911, 0.0
    %v1930 = vmax.f32 %v1913, 0.0
    %v1931 = vpack.c.bf16 %v1916, %v1915
    %v1932 = vpack.c.bf16 %v1918, %v1917
    %v1933 = vpack.c.bf16 %v1920, %v1919
    %v1934 = vpack.c.bf16 %v1922, %v1921
    %v1935 = vpack.c.bf16 %v1924, %v1923
    %v1936 = vpack.c.bf16 %v1926, %v1925
    %v1937 = vpack.c.bf16 %v1928, %v1927
    %v1938 = vpack.c.bf16 %v1930, %v1929
    %v1939 = vld [vmem:[%s2 + $0xb] sm:$0x1]
    %v1940 = vperm.slane %v1939, 0
    %v1943 = vunpack.c.l.b16 %v1818
    %v1944 = vunpack.c.l.b16 %v1819
    %v1945 = vpack.c.b16 %v1944, %v1943
    %v1948 = vsel %vm274, %v1931, 0
    %v1951 = vsel %vm274, %v1932, 0
    %v1954 = vsel %vm274, %v1933, 0
    %v1957 = vsel %vm274, %v1934, 0
    %v1960 = vsel %vm274, %v1935, 0
    %v1963 = vsel %vm274, %v1936, 0
    %v1966 = vsel %vm274, %v1937, 0
    %v1969 = vsel %vm274, %v1938, 0
    %1971 = vmatpush.bf16.msra.mxu0 0
    %1972 = vmatpush.bf16.msra.mxu0 0
    %1973 = vmatpush.bf16.msra.mxu0 0
    %1974 = vmatpush.bf16.msra.mxu0 0
    %1975 = vmatpush.bf16.msra.mxu0 0
    %1976 = vmatpush.bf16.msra.mxu0 0
    %1977 = vmatpush.bf16.msra.mxu0 0
    %1978 = vmatpush.bf16.msra.mxu0 %v1945
    %1979 = vmatmul.bf16.gmra.mxu0 %v1948
    %v1980 = vpop.f32.mrf.mxu0
    %v1981 = vadd.f32 %v1940, %v1980
    %v1982 = vpop.f32.mrf.mxu0
    %v1983 = vadd.f32 %v1940, %v1982
    %1984 = vmatmul.bf16.gmra.mxu0 %v1951
    %v1985 = vpop.f32.mrf.mxu0
    %v1986 = vadd.f32 %v1940, %v1985
    %v1987 = vpop.f32.mrf.mxu0
    %v1988 = vadd.f32 %v1940, %v1987
    %1989 = vmatmul.bf16.gmra.mxu0 %v1954
    %v1990 = vpop.f32.mrf.mxu0
    %v1991 = vadd.f32 %v1940, %v1990
    %v1992 = vpop.f32.mrf.mxu0
    %v1993 = vadd.f32 %v1940, %v1992
    %1994 = vmatmul.bf16.gmra.mxu0 %v1957
    %v1995 = vpop.f32.mrf.mxu0
    %v1996 = vadd.f32 %v1940, %v1995
    %v1997 = vpop.f32.mrf.mxu0
    %v1998 = vadd.f32 %v1940, %v1997
    %1999 = vmatmul.bf16.gmra.mxu0 %v1960
    %v2000 = vpop.f32.mrf.mxu0
    %v2001 = vadd.f32 %v1940, %v2000
    %v2002 = vpop.f32.mrf.mxu0
    %v2003 = vadd.f32 %v1940, %v2002
    %2004 = vmatmul.bf16.gmra.mxu0 %v1963
    %v2005 = vpop.f32.mrf.mxu0
    %v2006 = vadd.f32 %v1940, %v2005
    %v2007 = vpop.f32.mrf.mxu0
    %v2008 = vadd.f32 %v1940, %v2007
    %2009 = vmatmul.bf16.gmra.mxu0 %v1966
    %v2010 = vpop.f32.mrf.mxu0
    %v2011 = vadd.f32 %v1940, %v2010
    %v2012 = vpop.f32.mrf.mxu0
    %v2013 = vadd.f32 %v1940, %v2012
    %2014 = vmatmul.bf16.gmra.mxu0 %v1969
    %v2015 = vpop.f32.mrf.mxu0
    %v2016 = vadd.f32 %v1940, %v2015
    %v2017 = vpop.f32.mrf.mxu0
    %v2018 = vadd.f32 %v1940, %v2017
    %2019 = vdwg.mxu0
    %v2020 = vadd.f32 %v1798, %v1981
    %v2021 = vadd.f32 %v1799, %v1983
    %v2022 = vadd.f32 %v1800, %v1986
    %v2023 = vadd.f32 %v1801, %v1988
    %v2024 = vadd.f32 %v1802, %v1991
    %v2025 = vadd.f32 %v1803, %v1993
    %v2026 = vadd.f32 %v1804, %v1996
    %v2027 = vadd.f32 %v1805, %v1998
    %v2028 = vadd.f32 %v1806, %v2001
    %v2029 = vadd.f32 %v1807, %v2003
    %v2030 = vadd.f32 %v1808, %v2006
    %v2031 = vadd.f32 %v1809, %v2008
    %v2032 = vadd.f32 %v1810, %v2011
    %v2033 = vadd.f32 %v1811, %v2013
    %v2034 = vadd.f32 %v1812, %v2016
    %v2035 = vadd.f32 %v1813, %v2018
    %v2036 = vld [vmem:[%s2 + $0xd] sm:$0x1]
    %v2037 = vld [vmem:[%s2 + $0xf] sm:$0x1]
    %v2038 = vsel %vm156, %v2020, 0.0
    %2039 = vadd.xlane.f32.xlu0 %v2038
    %v2040 = vpop.xlane.xlu0 %2039
    %v2041 = vsel %vm156, %v2021, 0.0
    %2042 = vadd.xlane.f32.xlu0 %v2041
    %v2043 = vpop.xlane.xlu0 %2042
    %v2044 = vsel %vm156, %v2022, 0.0
    %2045 = vadd.xlane.f32.xlu0 %v2044
    %v2046 = vpop.xlane.xlu0 %2045
    %v2047 = vsel %vm156, %v2023, 0.0
    %2048 = vadd.xlane.f32.xlu0 %v2047
    %v2049 = vpop.xlane.xlu0 %2048
    %v2050 = vsel %vm156, %v2024, 0.0
    %2051 = vadd.xlane.f32.xlu0 %v2050
    %v2052 = vpop.xlane.xlu0 %2051
    %v2053 = vsel %vm156, %v2025, 0.0
    %2054 = vadd.xlane.f32.xlu0 %v2053
    %v2055 = vpop.xlane.xlu0 %2054
    %v2056 = vsel %vm156, %v2026, 0.0
    %2057 = vadd.xlane.f32.xlu0 %v2056
    %v2058 = vpop.xlane.xlu0 %2057
    %v2059 = vsel %vm156, %v2027, 0.0
    %2060 = vadd.xlane.f32.xlu0 %v2059
    %v2061 = vpop.xlane.xlu0 %2060
    %v2062 = vsel %vm156, %v2028, 0.0
    %2063 = vadd.xlane.f32.xlu0 %v2062
    %v2064 = vpop.xlane.xlu0 %2063
    %v2065 = vsel %vm156, %v2029, 0.0
    %2066 = vadd.xlane.f32.xlu0 %v2065
    %v2067 = vpop.xlane.xlu0 %2066
    %v2068 = vsel %vm156, %v2030, 0.0
    %2069 = vadd.xlane.f32.xlu0 %v2068
    %v2070 = vpop.xlane.xlu0 %2069
    %v2071 = vsel %vm156, %v2031, 0.0
    %2072 = vadd.xlane.f32.xlu0 %v2071
    %v2073 = vpop.xlane.xlu0 %2072
    %v2074 = vsel %vm156, %v2032, 0.0
    %2075 = vadd.xlane.f32.xlu0 %v2074
    %v2076 = vpop.xlane.xlu0 %2075
    %v2077 = vsel %vm156, %v2033, 0.0
    %2078 = vadd.xlane.f32.xlu0 %v2077
    %v2079 = vpop.xlane.xlu0 %2078
    %v2080 = vsel %vm156, %v2034, 0.0
    %2081 = vadd.xlane.f32.xlu0 %v2080
    %v2082 = vpop.xlane.xlu0 %2081
    %v2083 = vsel %vm156, %v2035, 0.0
    %2084 = vadd.xlane.f32.xlu0 %v2083
    %v2085 = vpop.xlane.xlu0 %2084
    %v2086 = vmul.f32 %v2040, %v1475
    %v2087 = vmul.f32 %v2043, %v1475
    %v2088 = vmul.f32 %v2046, %v1475
    %v2089 = vmul.f32 %v2049, %v1475
    %v2090 = vmul.f32 %v2052, %v1475
    %v2091 = vmul.f32 %v2055, %v1475
    %v2092 = vmul.f32 %v2058, %v1475
    %v2093 = vmul.f32 %v2061, %v1475
    %v2094 = vmul.f32 %v2064, %v1475
    %v2095 = vmul.f32 %v2067, %v1475
    %v2096 = vmul.f32 %v2070, %v1475
    %v2097 = vmul.f32 %v2073, %v1475
    %v2098 = vmul.f32 %v2076, %v1475
    %v2099 = vmul.f32 %v2079, %v1475
    %v2100 = vmul.f32 %v2082, %v1475
    %v2101 = vmul.f32 %v2085, %v1475
    %v2102 = vsub.f32 %v2020, %v2086
    %v2103 = vsub.f32 %v2021, %v2087
    %v2104 = vsub.f32 %v2022, %v2088
    %v2105 = vsub.f32 %v2023, %v2089
    %v2106 = vsub.f32 %v2024, %v2090
    %v2107 = vsub.f32 %v2025, %v2091
    %v2108 = vsub.f32 %v2026, %v2092
    %v2109 = vsub.f32 %v2027, %v2093
    %v2110 = vsub.f32 %v2028, %v2094
    %v2111 = vsub.f32 %v2029, %v2095
    %v2112 = vsub.f32 %v2030, %v2096
    %v2113 = vsub.f32 %v2031, %v2097
    %v2114 = vsub.f32 %v2032, %v2098
    %v2115 = vsub.f32 %v2033, %v2099
    %v2116 = vsub.f32 %v2034, %v2100
    %v2117 = vsub.f32 %v2035, %v2101
    %v2118 = vmul.f32 %v2102, %v2102
    %v2119 = vmul.f32 %v2103, %v2103
    %v2120 = vmul.f32 %v2104, %v2104
    %v2121 = vmul.f32 %v2105, %v2105
    %v2122 = vmul.f32 %v2106, %v2106
    %v2123 = vmul.f32 %v2107, %v2107
    %v2124 = vmul.f32 %v2108, %v2108
    %v2125 = vmul.f32 %v2109, %v2109
    %v2126 = vmul.f32 %v2110, %v2110
    %v2127 = vmul.f32 %v2111, %v2111
    %v2128 = vmul.f32 %v2112, %v2112
    %v2129 = vmul.f32 %v2113, %v2113
    %v2130 = vmul.f32 %v2114, %v2114
    %v2131 = vmul.f32 %v2115, %v2115
    %v2132 = vmul.f32 %v2116, %v2116
    %v2133 = vmul.f32 %v2117, %v2117
    %v2134 = vsel %vm156, %v2118, 0.0
    %2135 = vadd.xlane.f32.xlu0 %v2134
    %v2136 = vpop.xlane.xlu0 %2135
    %v2137 = vsel %vm156, %v2119, 0.0
    %2138 = vadd.xlane.f32.xlu0 %v2137
    %v2139 = vpop.xlane.xlu0 %2138
    %v2140 = vsel %vm156, %v2120, 0.0
    %2141 = vadd.xlane.f32.xlu0 %v2140
    %v2142 = vpop.xlane.xlu0 %2141
    %v2143 = vsel %vm156, %v2121, 0.0
    %2144 = vadd.xlane.f32.xlu0 %v2143
    %v2145 = vpop.xlane.xlu0 %2144
    %v2146 = vsel %vm156, %v2122, 0.0
    %2147 = vadd.xlane.f32.xlu0 %v2146
    %v2148 = vpop.xlane.xlu0 %2147
    %v2149 = vsel %vm156, %v2123, 0.0
    %2150 = vadd.xlane.f32.xlu0 %v2149
    %v2151 = vpop.xlane.xlu0 %2150
    %v2152 = vsel %vm156, %v2124, 0.0
    %2153 = vadd.xlane.f32.xlu0 %v2152
    %v2154 = vpop.xlane.xlu0 %2153
    %v2155 = vsel %vm156, %v2125, 0.0
    %2156 = vadd.xlane.f32.xlu0 %v2155
    %v2157 = vpop.xlane.xlu0 %2156
    %v2158 = vsel %vm156, %v2126, 0.0
    %2159 = vadd.xlane.f32.xlu0 %v2158
    %v2160 = vpop.xlane.xlu0 %2159
    %v2161 = vsel %vm156, %v2127, 0.0
    %2162 = vadd.xlane.f32.xlu0 %v2161
    %v2163 = vpop.xlane.xlu0 %2162
    %v2164 = vsel %vm156, %v2128, 0.0
    %2165 = vadd.xlane.f32.xlu0 %v2164
    %v2166 = vpop.xlane.xlu0 %2165
    %v2167 = vsel %vm156, %v2129, 0.0
    %2168 = vadd.xlane.f32.xlu0 %v2167
    %v2169 = vpop.xlane.xlu0 %2168
    %v2170 = vsel %vm156, %v2130, 0.0
    %2171 = vadd.xlane.f32.xlu0 %v2170
    %v2172 = vpop.xlane.xlu0 %2171
    %v2173 = vsel %vm156, %v2131, 0.0
    %2174 = vadd.xlane.f32.xlu0 %v2173
    %v2175 = vpop.xlane.xlu0 %2174
    %v2176 = vsel %vm156, %v2132, 0.0
    %2177 = vadd.xlane.f32.xlu0 %v2176
    %v2178 = vpop.xlane.xlu0 %2177
    %v2179 = vsel %vm156, %v2133, 0.0
    %2180 = vadd.xlane.f32.xlu0 %v2179
    %v2181 = vpop.xlane.xlu0 %2180
    %v2182 = vmul.f32 %v2136, %v1475
    %v2183 = vmul.f32 %v2139, %v1475
    %v2184 = vmul.f32 %v2142, %v1475
    %v2185 = vmul.f32 %v2145, %v1475
    %v2186 = vmul.f32 %v2148, %v1475
    %v2187 = vmul.f32 %v2151, %v1475
    %v2188 = vmul.f32 %v2154, %v1475
    %v2189 = vmul.f32 %v2157, %v1475
    %v2190 = vmul.f32 %v2160, %v1475
    %v2191 = vmul.f32 %v2163, %v1475
    %v2192 = vmul.f32 %v2166, %v1475
    %v2193 = vmul.f32 %v2169, %v1475
    %v2194 = vmul.f32 %v2172, %v1475
    %v2195 = vmul.f32 %v2175, %v1475
    %v2196 = vmul.f32 %v2178, %v1475
    %v2197 = vmul.f32 %v2181, %v1475
    %v2198 = vadd.f32 %v2182, 1e-05
    %v2199 = vadd.f32 %v2183, 1e-05
    %v2200 = vadd.f32 %v2184, 1e-05
    %v2201 = vadd.f32 %v2185, 1e-05
    %v2202 = vadd.f32 %v2186, 1e-05
    %v2203 = vadd.f32 %v2187, 1e-05
    %v2204 = vadd.f32 %v2188, 1e-05
    %v2205 = vadd.f32 %v2189, 1e-05
    %v2206 = vadd.f32 %v2190, 1e-05
    %v2207 = vadd.f32 %v2191, 1e-05
    %v2208 = vadd.f32 %v2192, 1e-05
    %v2209 = vadd.f32 %v2193, 1e-05
    %v2210 = vadd.f32 %v2194, 1e-05
    %v2211 = vadd.f32 %v2195, 1e-05
    %v2212 = vadd.f32 %v2196, 1e-05
    %v2213 = vadd.f32 %v2197, 1e-05
    %v2214 = vrsqrt.pop %v2198
    %v2215 = vmul.f32 %v2214, %v2198
    %v2216 = vmul.f32 %v2215, %v2214
    %v2217 = vmul.f32 0.5, %v2216
    %v2218 = vsub.f32 1.5, %v2217
    %v2219 = vmul.f32 %v2214, %v2218
    %vm2220 = vweird.f32 %v2198
    %vm2221 = vweird.f32 %v2214
    %vm2222 = vmor %vm2220, %vm2221
    %v2223 = vsel %vm2222, %v2214, %v2219
    %v2224 = vrsqrt.pop %v2199
    %v2225 = vmul.f32 %v2224, %v2199
    %v2226 = vmul.f32 %v2225, %v2224
    %v2227 = vmul.f32 0.5, %v2226
    %v2228 = vsub.f32 1.5, %v2227
    %v2229 = vmul.f32 %v2224, %v2228
    %vm2230 = vweird.f32 %v2199
    %vm2231 = vweird.f32 %v2224
    %vm2232 = vmor %vm2230, %vm2231
    %v2233 = vsel %vm2232, %v2224, %v2229
    %v2234 = vrsqrt.pop %v2200
    %v2235 = vmul.f32 %v2234, %v2200
    %v2236 = vmul.f32 %v2235, %v2234
    %v2237 = vmul.f32 0.5, %v2236
    %v2238 = vsub.f32 1.5, %v2237
    %v2239 = vmul.f32 %v2234, %v2238
    %vm2240 = vweird.f32 %v2200
    %vm2241 = vweird.f32 %v2234
    %vm2242 = vmor %vm2240, %vm2241
    %v2243 = vsel %vm2242, %v2234, %v2239
    %v2244 = vrsqrt.pop %v2201
    %v2245 = vmul.f32 %v2244, %v2201
    %v2246 = vmul.f32 %v2245, %v2244
    %v2247 = vmul.f32 0.5, %v2246
    %v2248 = vsub.f32 1.5, %v2247
    %v2249 = vmul.f32 %v2244, %v2248
    %vm2250 = vweird.f32 %v2201
    %vm2251 = vweird.f32 %v2244
    %vm2252 = vmor %vm2250, %vm2251
    %v2253 = vsel %vm2252, %v2244, %v2249
    %v2254 = vrsqrt.pop %v2202
    %v2255 = vmul.f32 %v2254, %v2202
    %v2256 = vmul.f32 %v2255, %v2254
    %v2257 = vmul.f32 0.5, %v2256
    %v2258 = vsub.f32 1.5, %v2257
    %v2259 = vmul.f32 %v2254, %v2258
    %vm2260 = vweird.f32 %v2202
    %vm2261 = vweird.f32 %v2254
    %vm2262 = vmor %vm2260, %vm2261
    %v2263 = vsel %vm2262, %v2254, %v2259
    %v2264 = vrsqrt.pop %v2203
    %v2265 = vmul.f32 %v2264, %v2203
    %v2266 = vmul.f32 %v2265, %v2264
    %v2267 = vmul.f32 0.5, %v2266
    %v2268 = vsub.f32 1.5, %v2267
    %v2269 = vmul.f32 %v2264, %v2268
    %vm2270 = vweird.f32 %v2203
    %vm2271 = vweird.f32 %v2264
    %vm2272 = vmor %vm2270, %vm2271
    %v2273 = vsel %vm2272, %v2264, %v2269
    %v2274 = vrsqrt.pop %v2204
    %v2275 = vmul.f32 %v2274, %v2204
    %v2276 = vmul.f32 %v2275, %v2274
    %v2277 = vmul.f32 0.5, %v2276
    %v2278 = vsub.f32 1.5, %v2277
    %v2279 = vmul.f32 %v2274, %v2278
    %vm2280 = vweird.f32 %v2204
    %vm2281 = vweird.f32 %v2274
    %vm2282 = vmor %vm2280, %vm2281
    %v2283 = vsel %vm2282, %v2274, %v2279
    %v2284 = vrsqrt.pop %v2205
    %v2285 = vmul.f32 %v2284, %v2205
    %v2286 = vmul.f32 %v2285, %v2284
    %v2287 = vmul.f32 0.5, %v2286
    %v2288 = vsub.f32 1.5, %v2287
    %v2289 = vmul.f32 %v2284, %v2288
    %vm2290 = vweird.f32 %v2205
    %vm2291 = vweird.f32 %v2284
    %vm2292 = vmor %vm2290, %vm2291
    %v2293 = vsel %vm2292, %v2284, %v2289
    %v2294 = vrsqrt.pop %v2206
    %v2295 = vmul.f32 %v2294, %v2206
    %v2296 = vmul.f32 %v2295, %v2294
    %v2297 = vmul.f32 0.5, %v2296
    %v2298 = vsub.f32 1.5, %v2297
    %v2299 = vmul.f32 %v2294, %v2298
    %vm2300 = vweird.f32 %v2206
    %vm2301 = vweird.f32 %v2294
    %vm2302 = vmor %vm2300, %vm2301
    %v2303 = vsel %vm2302, %v2294, %v2299
    %v2304 = vrsqrt.pop %v2207
    %v2305 = vmul.f32 %v2304, %v2207
    %v2306 = vmul.f32 %v2305, %v2304
    %v2307 = vmul.f32 0.5, %v2306
    %v2308 = vsub.f32 1.5, %v2307
    %v2309 = vmul.f32 %v2304, %v2308
    %vm2310 = vweird.f32 %v2207
    %vm2311 = vweird.f32 %v2304
    %vm2312 = vmor %vm2310, %vm2311
    %v2313 = vsel %vm2312, %v2304, %v2309
    %v2314 = vrsqrt.pop %v2208
    %v2315 = vmul.f32 %v2314, %v2208
    %v2316 = vmul.f32 %v2315, %v2314
    %v2317 = vmul.f32 0.5, %v2316
    %v2318 = vsub.f32 1.5, %v2317
    %v2319 = vmul.f32 %v2314, %v2318
    %vm2320 = vweird.f32 %v2208
    %vm2321 = vweird.f32 %v2314
    %vm2322 = vmor %vm2320, %vm2321
    %v2323 = vsel %vm2322, %v2314, %v2319
    %v2324 = vrsqrt.pop %v2209
    %v2325 = vmul.f32 %v2324, %v2209
    %v2326 = vmul.f32 %v2325, %v2324
    %v2327 = vmul.f32 0.5, %v2326
    %v2328 = vsub.f32 1.5, %v2327
    %v2329 = vmul.f32 %v2324, %v2328
    %vm2330 = vweird.f32 %v2209
    %vm2331 = vweird.f32 %v2324
    %vm2332 = vmor %vm2330, %vm2331
    %v2333 = vsel %vm2332, %v2324, %v2329
    %v2334 = vrsqrt.pop %v2210
    %v2335 = vmul.f32 %v2334, %v2210
    %v2336 = vmul.f32 %v2335, %v2334
    %v2337 = vmul.f32 0.5, %v2336
    %v2338 = vsub.f32 1.5, %v2337
    %v2339 = vmul.f32 %v2334, %v2338
    %vm2340 = vweird.f32 %v2210
    %vm2341 = vweird.f32 %v2334
    %vm2342 = vmor %vm2340, %vm2341
    %v2343 = vsel %vm2342, %v2334, %v2339
    %v2344 = vrsqrt.pop %v2211
    %v2345 = vmul.f32 %v2344, %v2211
    %v2346 = vmul.f32 %v2345, %v2344
    %v2347 = vmul.f32 0.5, %v2346
    %v2348 = vsub.f32 1.5, %v2347
    %v2349 = vmul.f32 %v2344, %v2348
    %vm2350 = vweird.f32 %v2211
    %vm2351 = vweird.f32 %v2344
    %vm2352 = vmor %vm2350, %vm2351
    %v2353 = vsel %vm2352, %v2344, %v2349
    %v2354 = vrsqrt.pop %v2212
    %v2355 = vmul.f32 %v2354, %v2212
    %v2356 = vmul.f32 %v2355, %v2354
    %v2357 = vmul.f32 0.5, %v2356
    %v2358 = vsub.f32 1.5, %v2357
    %v2359 = vmul.f32 %v2354, %v2358
    %vm2360 = vweird.f32 %v2212
    %vm2361 = vweird.f32 %v2354
    %vm2362 = vmor %vm2360, %vm2361
    %v2363 = vsel %vm2362, %v2354, %v2359
    %v2364 = vrsqrt.pop %v2213
    %v2365 = vmul.f32 %v2364, %v2213
    %v2366 = vmul.f32 %v2365, %v2364
    %v2367 = vmul.f32 0.5, %v2366
    %v2368 = vsub.f32 1.5, %v2367
    %v2369 = vmul.f32 %v2364, %v2368
    %vm2370 = vweird.f32 %v2213
    %vm2371 = vweird.f32 %v2364
    %vm2372 = vmor %vm2370, %vm2371
    %v2373 = vsel %vm2372, %v2364, %v2369
    %v2374 = vmul.f32 %v2102, %v2223
    %v2375 = vmul.f32 %v2103, %v2233
    %v2376 = vmul.f32 %v2104, %v2243
    %v2377 = vmul.f32 %v2105, %v2253
    %v2378 = vmul.f32 %v2106, %v2263
    %v2379 = vmul.f32 %v2107, %v2273
    %v2380 = vmul.f32 %v2108, %v2283
    %v2381 = vmul.f32 %v2109, %v2293
    %v2382 = vmul.f32 %v2110, %v2303
    %v2383 = vmul.f32 %v2111, %v2313
    %v2384 = vmul.f32 %v2112, %v2323
    %v2385 = vmul.f32 %v2113, %v2333
    %v2386 = vmul.f32 %v2114, %v2343
    %v2387 = vmul.f32 %v2115, %v2353
    %v2388 = vmul.f32 %v2116, %v2363
    %v2389 = vmul.f32 %v2117, %v2373
    %v2390 = vperm.slane %v2036, 0
    %v2391 = vmul.f32 %v2374, %v2390
    %v2392 = vmul.f32 %v2375, %v2390
    %v2393 = vmul.f32 %v2376, %v2390
    %v2394 = vmul.f32 %v2377, %v2390
    %v2395 = vmul.f32 %v2378, %v2390
    %v2396 = vmul.f32 %v2379, %v2390
    %v2397 = vmul.f32 %v2380, %v2390
    %v2398 = vmul.f32 %v2381, %v2390
    %v2399 = vmul.f32 %v2382, %v2390
    %v2400 = vmul.f32 %v2383, %v2390
    %v2401 = vmul.f32 %v2384, %v2390
    %v2402 = vmul.f32 %v2385, %v2390
    %v2403 = vmul.f32 %v2386, %v2390
    %v2404 = vmul.f32 %v2387, %v2390
    %v2405 = vmul.f32 %v2388, %v2390
    %v2406 = vmul.f32 %v2389, %v2390
    %v2407 = vperm.slane %v2037, 0
    %v2408 = vadd.f32 %v2391, %v2407
    %v2409 = vadd.f32 %v2392, %v2407
    %v2410 = vadd.f32 %v2393, %v2407
    %v2411 = vadd.f32 %v2394, %v2407
    %v2412 = vadd.f32 %v2395, %v2407
    %v2413 = vadd.f32 %v2396, %v2407
    %v2414 = vadd.f32 %v2397, %v2407
    %v2415 = vadd.f32 %v2398, %v2407
    %v2416 = vadd.f32 %v2399, %v2407
    %v2417 = vadd.f32 %v2400, %v2407
    %v2418 = vadd.f32 %v2401, %v2407
    %v2419 = vadd.f32 %v2402, %v2407
    %v2420 = vadd.f32 %v2403, %v2407
    %v2421 = vadd.f32 %v2404, %v2407
    %v2422 = vadd.f32 %v2405, %v2407
    %v2423 = vadd.f32 %v2406, %v2407
    %v2424 = vld [vmem:[%s1 + $0x18] sm:$0xf]
    %v2425 = vld [vmem:[%s1 + $0x1c] sm:$0xf]
    %v2426 = vld [vmem:[%s1 + $0x20] sm:$0xf]
    %v2427 = vld [vmem:[%s1 + $0x24] sm:$0xf]
    %v2428 = vpack.c.bf16 %v2409, %v2408
    %v2429 = vpack.c.bf16 %v2411, %v2410
    %v2430 = vpack.c.bf16 %v2413, %v2412
    %v2431 = vpack.c.bf16 %v2415, %v2414
    %v2432 = vpack.c.bf16 %v2417, %v2416
    %v2433 = vpack.c.bf16 %v2419, %v2418
    %v2434 = vpack.c.bf16 %v2421, %v2420
    %v2435 = vpack.c.bf16 %v2423, %v2422
    %v2436 = vld [vmem:[%s2 + $0x2] sm:$0x1]
    %v2437 = vperm.slane %v2436, 0
    %v2442 = vunpack.c.l.b16 %v2424
    %v2443 = vunpack.c.l.b16 %v2425
    %v2444 = vunpack.c.l.b16 %v2426
    %v2445 = vunpack.c.l.b16 %v2427
    %v2446 = vpack.c.b16 %v2443, %v2442
    %v2447 = vpack.c.b16 %v2445, %v2444
    %v2451 = vsel %vm156, %v2428, 0
    %v2454 = vsel %vm156, %v2429, 0
    %v2457 = vsel %vm156, %v2430, 0
    %v2460 = vsel %vm156, %v2431, 0
    %v2463 = vsel %vm156, %v2432, 0
    %v2466 = vsel %vm156, %v2433, 0
    %v2469 = vsel %vm156, %v2434, 0
    %v2472 = vsel %vm156, %v2435, 0
    %2474 = vmatpush.bf16.msra.mxu0 0
    %2475 = vmatpush.bf16.msra.mxu0 0
    %2476 = vmatpush.bf16.msra.mxu0 0
    %2477 = vmatpush.bf16.msra.mxu0 0
    %2478 = vmatpush.bf16.msra.mxu0 0
    %2479 = vmatpush.bf16.msra.mxu0 0
    %2480 = vmatpush.bf16.msra.mxu0 %v2447
    %2481 = vmatpush.bf16.msra.mxu0 %v2446
    %2482 = vmatmul.bf16.gmra.mxu0 %v2451
    %v2483 = vpop.f32.mrf.mxu0
    %v2484 = vadd.f32 %v2437, %v2483
    %v2485 = vpop.f32.mrf.mxu0
    %v2486 = vadd.f32 %v2437, %v2485
    %2487 = vmatmul.bf16.gmra.mxu0 %v2454
    %v2488 = vpop.f32.mrf.mxu0
    %v2489 = vadd.f32 %v2437, %v2488
    %v2490 = vpop.f32.mrf.mxu0
    %v2491 = vadd.f32 %v2437, %v2490
    %2492 = vmatmul.bf16.gmra.mxu0 %v2457
    %v2493 = vpop.f32.mrf.mxu0
    %v2494 = vadd.f32 %v2437, %v2493
    %v2495 = vpop.f32.mrf.mxu0
    %v2496 = vadd.f32 %v2437, %v2495
    %2497 = vmatmul.bf16.gmra.mxu0 %v2460
    %v2498 = vpop.f32.mrf.mxu0
    %v2499 = vadd.f32 %v2437, %v2498
    %v2500 = vpop.f32.mrf.mxu0
    %v2501 = vadd.f32 %v2437, %v2500
    %2502 = vmatmul.bf16.gmra.mxu0 %v2463
    %v2503 = vpop.f32.mrf.mxu0
    %v2504 = vadd.f32 %v2437, %v2503
    %v2505 = vpop.f32.mrf.mxu0
    %v2506 = vadd.f32 %v2437, %v2505
    %2507 = vmatmul.bf16.gmra.mxu0 %v2466
    %v2508 = vpop.f32.mrf.mxu0
    %v2509 = vadd.f32 %v2437, %v2508
    %v2510 = vpop.f32.mrf.mxu0
    %v2511 = vadd.f32 %v2437, %v2510
    %2512 = vmatmul.bf16.gmra.mxu0 %v2469
    %v2513 = vpop.f32.mrf.mxu0
    %v2514 = vadd.f32 %v2437, %v2513
    %v2515 = vpop.f32.mrf.mxu0
    %v2516 = vadd.f32 %v2437, %v2515
    %2517 = vmatmul.bf16.gmra.mxu0 %v2472
    %v2518 = vpop.f32.mrf.mxu0
    %v2519 = vadd.f32 %v2437, %v2518
    %v2520 = vpop.f32.mrf.mxu0
    %v2521 = vadd.f32 %v2437, %v2520
    %2522 = vdwg.mxu0
    %v2523 = vpack.c.bf16 %v2484, %v2484
    %v2524 = vpack.c.bf16 %v2486, %v2486
    %v2525 = vpack.c.bf16 %v2489, %v2489
    %v2526 = vpack.c.bf16 %v2491, %v2491
    %v2527 = vpack.c.bf16 %v2494, %v2494
    %v2528 = vpack.c.bf16 %v2496, %v2496
    %v2529 = vpack.c.bf16 %v2499, %v2499
    %v2530 = vpack.c.bf16 %v2501, %v2501
    %v2531 = vpack.c.bf16 %v2504, %v2504
    %v2532 = vpack.c.bf16 %v2506, %v2506
    %v2533 = vpack.c.bf16 %v2509, %v2509
    %v2534 = vpack.c.bf16 %v2511, %v2511
    %v2535 = vpack.c.bf16 %v2514, %v2514
    %v2536 = vpack.c.bf16 %v2516, %v2516
    %v2537 = vpack.c.bf16 %v2519, %v2519
    %v2538 = vpack.c.bf16 %v2521, %v2521
    %v2547 = vunpack.c.l.b16 %v2523
    %v2548 = vunpack.c.l.b16 %v2524
    %v2549 = vunpack.c.l.b16 %v2525
    %v2550 = vunpack.c.l.b16 %v2526
    %v2551 = vunpack.c.l.b16 %v2527
    %v2552 = vunpack.c.l.b16 %v2528
    %v2553 = vunpack.c.l.b16 %v2529
    %v2554 = vunpack.c.l.b16 %v2530
    %v2555 = vpack.c.b16 %v2548, %v2547
    %v2556 = vpack.c.b16 %v2550, %v2549
    %v2557 = vpack.c.b16 %v2552, %v2551
    %v2558 = vpack.c.b16 %v2554, %v2553
    %2559 = vrot.lane.b32.xlu0 %v2555, 96
    %v2560 = vpop.permute.xlu0 %2559
    %2561 = vrot.lane.b32.xlu0 %v2556, 96
    %v2562 = vpop.permute.xlu0 %2561
    %2563 = vrot.lane.b32.xlu0 %v2557, 96
    %v2564 = vpop.permute.xlu0 %2563
    %2565 = vrot.lane.b32.xlu0 %v2558, 96
    %v2566 = vpop.permute.xlu0 %2565
    %v2568 = vsel %vm274, %v2555, 0
    %v2571 = vsel %vm274, %v2556, 0
    %v2574 = vsel %vm274, %v2557, 0
    %v2577 = vsel %vm274, %v2558, 0
    %v2580 = vsel %vm274, %v2560, 0
    %v2583 = vsel %vm274, %v2562, 0
    %v2586 = vsel %vm274, %v2564, 0
    %v2589 = vsel %vm274, %v2566, 0
    %2591 = vmatpush.bf16.xpose.msra.mxu0 0
    %2592 = vmatpush.bf16.xpose.msra.mxu0 0
    %2593 = vmatpush.bf16.xpose.msra.mxu0 0
    %2594 = vmatpush.bf16.xpose.msra.mxu0 0
    %2595 = vmatpush.bf16.xpose.msra.mxu0 %v2589
    %2596 = vmatpush.bf16.xpose.msra.mxu0 %v2586
    %2597 = vmatpush.bf16.xpose.msra.mxu0 %v2583
    %2598 = vmatpush.bf16.xpose.msra.mxu0 %v2580
    %2599 = vmatmul.bf16.gmra.mxu0 %v2568
    %v2600 = vpop.f32.mrf.mxu0
    %v2601 = vadd.f32 0.0, %v2600
    %v2602 = vpop.f32.mrf.mxu0
    %v2603 = vadd.f32 0.0, %v2602
    %2604 = vmatmul.bf16.gmra.mxu0 %v2571
    %v2605 = vpop.f32.mrf.mxu0
    %v2606 = vadd.f32 0.0, %v2605
    %v2607 = vpop.f32.mrf.mxu0
    %v2608 = vadd.f32 0.0, %v2607
    %2609 = vmatmul.bf16.gmra.mxu0 %v2574
    %v2610 = vpop.f32.mrf.mxu0
    %v2611 = vadd.f32 0.0, %v2610
    %v2612 = vpop.f32.mrf.mxu0
    %v2613 = vadd.f32 0.0, %v2612
    %2614 = vmatmul.bf16.gmra.mxu0 %v2577
    %v2615 = vpop.f32.mrf.mxu0
    %v2616 = vadd.f32 0.0, %v2615
    %v2617 = vpop.f32.mrf.mxu0
    %v2618 = vadd.f32 0.0, %v2617
    %2619 = vdwg.mxu0
    %v2628 = vunpack.c.l.b16 %v2531
    %v2629 = vunpack.c.l.b16 %v2532
    %v2630 = vunpack.c.l.b16 %v2533
    %v2631 = vunpack.c.l.b16 %v2534
    %v2632 = vunpack.c.l.b16 %v2535
    %v2633 = vunpack.c.l.b16 %v2536
    %v2634 = vunpack.c.l.b16 %v2537
    %v2635 = vunpack.c.l.b16 %v2538
    %v2636 = vpack.c.b16 %v2629, %v2628
    %v2637 = vpack.c.b16 %v2631, %v2630
    %v2638 = vpack.c.b16 %v2633, %v2632
    %v2639 = vpack.c.b16 %v2635, %v2634
    %2640 = vrot.lane.b32.xlu0 %v2636, 96
    %v2641 = vpop.permute.xlu0 %2640
    %2642 = vrot.lane.b32.xlu0 %v2637, 96
    %v2643 = vpop.permute.xlu0 %2642
    %2644 = vrot.lane.b32.xlu0 %v2638, 96
    %v2645 = vpop.permute.xlu0 %2644
    %2646 = vrot.lane.b32.xlu0 %v2639, 96
    %v2647 = vpop.permute.xlu0 %2646
    %v2649 = vsel %vm274, %v2636, 0
    %v2652 = vsel %vm274, %v2637, 0
    %v2655 = vsel %vm274, %v2638, 0
    %v2658 = vsel %vm274, %v2639, 0
    %v2661 = vsel %vm274, %v2641, 0
    %v2664 = vsel %vm274, %v2643, 0
    %v2667 = vsel %vm274, %v2645, 0
    %v2670 = vsel %vm274, %v2647, 0
    %2672 = vmatpush.bf16.xpose.msra.mxu0 0
    %2673 = vmatpush.bf16.xpose.msra.mxu0 0
    %2674 = vmatpush.bf16.xpose.msra.mxu0 0
    %2675 = vmatpush.bf16.xpose.msra.mxu0 0
    %2676 = vmatpush.bf16.xpose.msra.mxu0 %v2670
    %2677 = vmatpush.bf16.xpose.msra.mxu0 %v2667
    %2678 = vmatpush.bf16.xpose.msra.mxu0 %v2664
    %2679 = vmatpush.bf16.xpose.msra.mxu0 %v2661
    %2680 = vmatmul.bf16.gmra.mxu0 %v2649
    %v2681 = vpop.f32.mrf.mxu0
    %v2682 = vadd.f32 0.0, %v2681
    %v2683 = vpop.f32.mrf.mxu0
    %v2684 = vadd.f32 0.0, %v2683
    %2685 = vmatmul.bf16.gmra.mxu0 %v2652
    %v2686 = vpop.f32.mrf.mxu0
    %v2687 = vadd.f32 0.0, %v2686
    %v2688 = vpop.f32.mrf.mxu0
    %v2689 = vadd.f32 0.0, %v2688
    %2690 = vmatmul.bf16.gmra.mxu0 %v2655
    %v2691 = vpop.f32.mrf.mxu0
    %v2692 = vadd.f32 0.0, %v2691
    %v2693 = vpop.f32.mrf.mxu0
    %v2694 = vadd.f32 0.0, %v2693
    %2695 = vmatmul.bf16.gmra.mxu0 %v2658
    %v2696 = vpop.f32.mrf.mxu0
    %v2697 = vadd.f32 0.0, %v2696
    %v2698 = vpop.f32.mrf.mxu0
    %v2699 = vadd.f32 0.0, %v2698
    %2700 = vdwg.mxu0
    %v2701 = vsel %vm409, %v2601, -inf
    %2702 = vmax.xlane.f32.xlu0 %v2701
    %v2703 = vpop.xlane.xlu0 %2702
    %v2704 = vsel %vm409, %v2603, -inf
    %2705 = vmax.xlane.f32.xlu0 %v2704
    %v2706 = vpop.xlane.xlu0 %2705
    %v2707 = vsel %vm409, %v2606, -inf
    %2708 = vmax.xlane.f32.xlu0 %v2707
    %v2709 = vpop.xlane.xlu0 %2708
    %v2710 = vsel %vm409, %v2608, -inf
    %2711 = vmax.xlane.f32.xlu0 %v2710
    %v2712 = vpop.xlane.xlu0 %2711
    %v2713 = vsel %vm409, %v2611, -inf
    %2714 = vmax.xlane.f32.xlu0 %v2713
    %v2715 = vpop.xlane.xlu0 %2714
    %v2716 = vsel %vm409, %v2613, -inf
    %2717 = vmax.xlane.f32.xlu0 %v2716
    %v2718 = vpop.xlane.xlu0 %2717
    %v2719 = vsel %vm409, %v2616, -inf
    %2720 = vmax.xlane.f32.xlu0 %v2719
    %v2721 = vpop.xlane.xlu0 %2720
    %v2722 = vsel %vm409, %v2618, -inf
    %2723 = vmax.xlane.f32.xlu0 %v2722
    %v2724 = vpop.xlane.xlu0 %2723
    %v2725 = vsel %vm409, %v2682, -inf
    %2726 = vmax.xlane.f32.xlu0 %v2725
    %v2727 = vpop.xlane.xlu0 %2726
    %v2728 = vsel %vm409, %v2684, -inf
    %2729 = vmax.xlane.f32.xlu0 %v2728
    %v2730 = vpop.xlane.xlu0 %2729
    %v2731 = vsel %vm409, %v2687, -inf
    %2732 = vmax.xlane.f32.xlu0 %v2731
    %v2733 = vpop.xlane.xlu0 %2732
    %v2734 = vsel %vm409, %v2689, -inf
    %2735 = vmax.xlane.f32.xlu0 %v2734
    %v2736 = vpop.xlane.xlu0 %2735
    %v2737 = vsel %vm409, %v2692, -inf
    %2738 = vmax.xlane.f32.xlu0 %v2737
    %v2739 = vpop.xlane.xlu0 %2738
    %v2740 = vsel %vm409, %v2694, -inf
    %2741 = vmax.xlane.f32.xlu0 %v2740
    %v2742 = vpop.xlane.xlu0 %2741
    %v2743 = vsel %vm409, %v2697, -inf
    %2744 = vmax.xlane.f32.xlu0 %v2743
    %v2745 = vpop.xlane.xlu0 %2744
    %v2746 = vsel %vm409, %v2699, -inf
    %2747 = vmax.xlane.f32.xlu0 %v2746
    %v2748 = vpop.xlane.xlu0 %2747
    %v2749 = vsub.f32 %v2601, %v2703
    %v2750 = vsub.f32 %v2603, %v2706
    %v2751 = vsub.f32 %v2606, %v2709
    %v2752 = vsub.f32 %v2608, %v2712
    %v2753 = vsub.f32 %v2611, %v2715
    %v2754 = vsub.f32 %v2613, %v2718
    %v2755 = vsub.f32 %v2616, %v2721
    %v2756 = vsub.f32 %v2618, %v2724
    %v2757 = vsub.f32 %v2682, %v2727
    %v2758 = vsub.f32 %v2684, %v2730
    %v2759 = vsub.f32 %v2687, %v2733
    %v2760 = vsub.f32 %v2689, %v2736
    %v2761 = vsub.f32 %v2692, %v2739
    %v2762 = vsub.f32 %v2694, %v2742
    %v2763 = vsub.f32 %v2697, %v2745
    %v2764 = vsub.f32 %v2699, %v2748
    %v2765 = vmul.f32 %v2749, 1.442695
    %v2766 = vpow.pop %v2765
    %v2767 = vmul.f32 %v2750, 1.442695
    %v2768 = vpow.pop %v2767
    %v2769 = vmul.f32 %v2751, 1.442695
    %v2770 = vpow.pop %v2769
    %v2771 = vmul.f32 %v2752, 1.442695
    %v2772 = vpow.pop %v2771
    %v2773 = vmul.f32 %v2753, 1.442695
    %v2774 = vpow.pop %v2773
    %v2775 = vmul.f32 %v2754, 1.442695
    %v2776 = vpow.pop %v2775
    %v2777 = vmul.f32 %v2755, 1.442695
    %v2778 = vpow.pop %v2777
    %v2779 = vmul.f32 %v2756, 1.442695
    %v2780 = vpow.pop %v2779
    %v2781 = vmul.f32 %v2757, 1.442695
    %v2782 = vpow.pop %v2781
    %v2783 = vmul.f32 %v2758, 1.442695
    %v2784 = vpow.pop %v2783
    %v2785 = vmul.f32 %v2759, 1.442695
    %v2786 = vpow.pop %v2785
    %v2787 = vmul.f32 %v2760, 1.442695
    %v2788 = vpow.pop %v2787
    %v2789 = vmul.f32 %v2761, 1.442695
    %v2790 = vpow.pop %v2789
    %v2791 = vmul.f32 %v2762, 1.442695
    %v2792 = vpow.pop %v2791
    %v2793 = vmul.f32 %v2763, 1.442695
    %v2794 = vpow.pop %v2793
    %v2795 = vmul.f32 %v2764, 1.442695
    %v2796 = vpow.pop %v2795
    %v2797 = vsel %vm409, %v2766, 0.0
    %2798 = vadd.xlane.f32.xlu0 %v2797
    %v2799 = vpop.xlane.xlu0 %2798
    %v2800 = vsel %vm409, %v2768, 0.0
    %2801 = vadd.xlane.f32.xlu0 %v2800
    %v2802 = vpop.xlane.xlu0 %2801
    %v2803 = vsel %vm409, %v2770, 0.0
    %2804 = vadd.xlane.f32.xlu0 %v2803
    %v2805 = vpop.xlane.xlu0 %2804
    %v2806 = vsel %vm409, %v2772, 0.0
    %2807 = vadd.xlane.f32.xlu0 %v2806
    %v2808 = vpop.xlane.xlu0 %2807
    %v2809 = vsel %vm409, %v2774, 0.0
    %2810 = vadd.xlane.f32.xlu0 %v2809
    %v2811 = vpop.xlane.xlu0 %2810
    %v2812 = vsel %vm409, %v2776, 0.0
    %2813 = vadd.xlane.f32.xlu0 %v2812
    %v2814 = vpop.xlane.xlu0 %2813
    %v2815 = vsel %vm409, %v2778, 0.0
    %2816 = vadd.xlane.f32.xlu0 %v2815
    %v2817 = vpop.xlane.xlu0 %2816
    %v2818 = vsel %vm409, %v2780, 0.0
    %2819 = vadd.xlane.f32.xlu0 %v2818
    %v2820 = vpop.xlane.xlu0 %2819
    %v2821 = vsel %vm409, %v2782, 0.0
    %2822 = vadd.xlane.f32.xlu0 %v2821
    %v2823 = vpop.xlane.xlu0 %2822
    %v2824 = vsel %vm409, %v2784, 0.0
    %2825 = vadd.xlane.f32.xlu0 %v2824
    %v2826 = vpop.xlane.xlu0 %2825
    %v2827 = vsel %vm409, %v2786, 0.0
    %2828 = vadd.xlane.f32.xlu0 %v2827
    %v2829 = vpop.xlane.xlu0 %2828
    %v2830 = vsel %vm409, %v2788, 0.0
    %2831 = vadd.xlane.f32.xlu0 %v2830
    %v2832 = vpop.xlane.xlu0 %2831
    %v2833 = vsel %vm409, %v2790, 0.0
    %2834 = vadd.xlane.f32.xlu0 %v2833
    %v2835 = vpop.xlane.xlu0 %2834
    %v2836 = vsel %vm409, %v2792, 0.0
    %2837 = vadd.xlane.f32.xlu0 %v2836
    %v2838 = vpop.xlane.xlu0 %2837
    %v2839 = vsel %vm409, %v2794, 0.0
    %2840 = vadd.xlane.f32.xlu0 %v2839
    %v2841 = vpop.xlane.xlu0 %2840
    %v2842 = vsel %vm409, %v2796, 0.0
    %2843 = vadd.xlane.f32.xlu0 %v2842
    %v2844 = vpop.xlane.xlu0 %2843
    %v2845 = vrcp.pop %v2799
    %v2846 = vrcp.pop %v2802
    %v2847 = vrcp.pop %v2805
    %v2848 = vrcp.pop %v2808
    %v2849 = vrcp.pop %v2811
    %v2850 = vrcp.pop %v2814
    %v2851 = vrcp.pop %v2817
    %v2852 = vrcp.pop %v2820
    %v2853 = vrcp.pop %v2823
    %v2854 = vrcp.pop %v2826
    %v2855 = vrcp.pop %v2829
    %v2856 = vrcp.pop %v2832
    %v2857 = vrcp.pop %v2835
    %v2858 = vrcp.pop %v2838
    %v2859 = vrcp.pop %v2841
    %v2860 = vrcp.pop %v2844
    %v2861 = vmul.f32 %v2766, %v2845
    %v2862 = vmul.f32 %v2768, %v2846
    %v2863 = vmul.f32 %v2770, %v2847
    %v2864 = vmul.f32 %v2772, %v2848
    %v2865 = vmul.f32 %v2774, %v2849
    %v2866 = vmul.f32 %v2776, %v2850
    %v2867 = vmul.f32 %v2778, %v2851
    %v2868 = vmul.f32 %v2780, %v2852
    %v2869 = vmul.f32 %v2782, %v2853
    %v2870 = vmul.f32 %v2784, %v2854
    %v2871 = vmul.f32 %v2786, %v2855
    %v2872 = vmul.f32 %v2788, %v2856
    %v2873 = vmul.f32 %v2790, %v2857
    %v2874 = vmul.f32 %v2792, %v2858
    %v2875 = vmul.f32 %v2794, %v2859
    %v2876 = vmul.f32 %v2796, %v2860
    %v2877 = vpack.c.bf16 %v2861, %v2861
    %v2878 = vpack.c.bf16 %v2862, %v2862
    %v2879 = vpack.c.bf16 %v2863, %v2863
    %v2880 = vpack.c.bf16 %v2864, %v2864
    %v2881 = vpack.c.bf16 %v2865, %v2865
    %v2882 = vpack.c.bf16 %v2866, %v2866
    %v2883 = vpack.c.bf16 %v2867, %v2867
    %v2884 = vpack.c.bf16 %v2868, %v2868
    %v2885 = vpack.c.bf16 %v2869, %v2869
    %v2886 = vpack.c.bf16 %v2870, %v2870
    %v2887 = vpack.c.bf16 %v2871, %v2871
    %v2888 = vpack.c.bf16 %v2872, %v2872
    %v2889 = vpack.c.bf16 %v2873, %v2873
    %v2890 = vpack.c.bf16 %v2874, %v2874
    %v2891 = vpack.c.bf16 %v2875, %v2875
    %v2892 = vpack.c.bf16 %v2876, %v2876
    %v2901 = vunpack.c.l.b16 %v2877
    %v2902 = vunpack.c.l.b16 %v2878
    %v2903 = vunpack.c.l.b16 %v2879
    %v2904 = vunpack.c.l.b16 %v2880
    %v2905 = vunpack.c.l.b16 %v2881
    %v2906 = vunpack.c.l.b16 %v2882
    %v2907 = vunpack.c.l.b16 %v2883
    %v2908 = vunpack.c.l.b16 %v2884
    %v2909 = vpack.c.b16 %v2902, %v2901
    %v2910 = vpack.c.b16 %v2904, %v2903
    %v2911 = vpack.c.b16 %v2906, %v2905
    %v2912 = vpack.c.b16 %v2908, %v2907
    %2913 = vrot.lane.b32.xlu0 %v2555, 64
    %v2914 = vpop.permute.xlu0 %2913
    %2915 = vrot.lane.b32.xlu0 %v2556, 64
    %v2916 = vpop.permute.xlu0 %2915
    %2917 = vrot.lane.b32.xlu0 %v2557, 64
    %v2918 = vpop.permute.xlu0 %2917
    %2919 = vrot.lane.b32.xlu0 %v2558, 64
    %v2920 = vpop.permute.xlu0 %2919
    %v2926 = vsel %vm409, %v2909, 0
    %v2929 = vsel %vm409, %v2910, 0
    %v2932 = vsel %vm409, %v2911, 0
    %v2935 = vsel %vm409, %v2912, 0
    %2937 = vmatpush.bf16.msra.mxu0 0
    %2938 = vmatpush.bf16.msra.mxu0 0
    %2939 = vmatpush.bf16.msra.mxu0 0
    %2940 = vmatpush.bf16.msra.mxu0 0
    %2941 = vmatpush.bf16.msra.mxu0 %v2920
    %2942 = vmatpush.bf16.msra.mxu0 %v2918
    %2943 = vmatpush.bf16.msra.mxu0 %v2916
    %2944 = vmatpush.bf16.msra.mxu0 %v2914
    %2945 = vmatmul.bf16.gmra.mxu0 %v2926
    %v2946 = vpop.f32.mrf.mxu0
    %v2947 = vadd.f32 0.0, %v2946
    %v2948 = vpop.f32.mrf.mxu0
    %v2949 = vadd.f32 0.0, %v2948
    %2950 = vmatmul.bf16.gmra.mxu0 %v2929
    %v2951 = vpop.f32.mrf.mxu0
    %v2952 = vadd.f32 0.0, %v2951
    %v2953 = vpop.f32.mrf.mxu0
    %v2954 = vadd.f32 0.0, %v2953
    %2955 = vmatmul.bf16.gmra.mxu0 %v2932
    %v2956 = vpop.f32.mrf.mxu0
    %v2957 = vadd.f32 0.0, %v2956
    %v2958 = vpop.f32.mrf.mxu0
    %v2959 = vadd.f32 0.0, %v2958
    %2960 = vmatmul.bf16.gmra.mxu0 %v2935
    %v2961 = vpop.f32.mrf.mxu0
    %v2962 = vadd.f32 0.0, %v2961
    %v2963 = vpop.f32.mrf.mxu0
    %v2964 = vadd.f32 0.0, %v2963
    %2965 = vdwg.mxu0
    %v2974 = vunpack.c.l.b16 %v2885
    %v2975 = vunpack.c.l.b16 %v2886
    %v2976 = vunpack.c.l.b16 %v2887
    %v2977 = vunpack.c.l.b16 %v2888
    %v2978 = vunpack.c.l.b16 %v2889
    %v2979 = vunpack.c.l.b16 %v2890
    %v2980 = vunpack.c.l.b16 %v2891
    %v2981 = vunpack.c.l.b16 %v2892
    %v2982 = vpack.c.b16 %v2975, %v2974
    %v2983 = vpack.c.b16 %v2977, %v2976
    %v2984 = vpack.c.b16 %v2979, %v2978
    %v2985 = vpack.c.b16 %v2981, %v2980
    %2986 = vrot.lane.b32.xlu0 %v2636, 64
    %v2987 = vpop.permute.xlu0 %2986
    %2988 = vrot.lane.b32.xlu0 %v2637, 64
    %v2989 = vpop.permute.xlu0 %2988
    %2990 = vrot.lane.b32.xlu0 %v2638, 64
    %v2991 = vpop.permute.xlu0 %2990
    %2992 = vrot.lane.b32.xlu0 %v2639, 64
    %v2993 = vpop.permute.xlu0 %2992
    %v2999 = vsel %vm409, %v2982, 0
    %v3002 = vsel %vm409, %v2983, 0
    %v3005 = vsel %vm409, %v2984, 0
    %v3008 = vsel %vm409, %v2985, 0
    %3010 = vmatpush.bf16.msra.mxu0 0
    %3011 = vmatpush.bf16.msra.mxu0 0
    %3012 = vmatpush.bf16.msra.mxu0 0
    %3013 = vmatpush.bf16.msra.mxu0 0
    %3014 = vmatpush.bf16.msra.mxu0 %v2993
    %3015 = vmatpush.bf16.msra.mxu0 %v2991
    %3016 = vmatpush.bf16.msra.mxu0 %v2989
    %3017 = vmatpush.bf16.msra.mxu0 %v2987
    %3018 = vmatmul.bf16.gmra.mxu0 %v2999
    %v3019 = vpop.f32.mrf.mxu0
    %v3020 = vadd.f32 0.0, %v3019
    %v3021 = vpop.f32.mrf.mxu0
    %v3022 = vadd.f32 0.0, %v3021
    %3023 = vmatmul.bf16.gmra.mxu0 %v3002
    %v3024 = vpop.f32.mrf.mxu0
    %v3025 = vadd.f32 0.0, %v3024
    %v3026 = vpop.f32.mrf.mxu0
    %v3027 = vadd.f32 0.0, %v3026
    %3028 = vmatmul.bf16.gmra.mxu0 %v3005
    %v3029 = vpop.f32.mrf.mxu0
    %v3030 = vadd.f32 0.0, %v3029
    %v3031 = vpop.f32.mrf.mxu0
    %v3032 = vadd.f32 0.0, %v3031
    %3033 = vmatmul.bf16.gmra.mxu0 %v3008
    %v3034 = vpop.f32.mrf.mxu0
    %v3035 = vadd.f32 0.0, %v3034
    %v3036 = vpop.f32.mrf.mxu0
    %v3037 = vadd.f32 0.0, %v3036
    %3038 = vdwg.mxu0
    %3039 = vrot.lane.b32.xlu0 %v2555, 112
    %v3040 = vpop.permute.xlu0 %3039
    %3041 = vrot.lane.b32.xlu0 %v2556, 112
    %v3042 = vpop.permute.xlu0 %3041
    %3043 = vrot.lane.b32.xlu0 %v2557, 112
    %v3044 = vpop.permute.xlu0 %3043
    %3045 = vrot.lane.b32.xlu0 %v2558, 112
    %v3046 = vpop.permute.xlu0 %3045
    %3047 = vrot.lane.b32.xlu0 %v2555, 80
    %v3048 = vpop.permute.xlu0 %3047
    %3049 = vrot.lane.b32.xlu0 %v2556, 80
    %v3050 = vpop.permute.xlu0 %3049
    %3051 = vrot.lane.b32.xlu0 %v2557, 80
    %v3052 = vpop.permute.xlu0 %3051
    %3053 = vrot.lane.b32.xlu0 %v2558, 80
    %v3054 = vpop.permute.xlu0 %3053
    %v3056 = vsel %vm274, %v3040, 0
    %v3059 = vsel %vm274, %v3042, 0
    %v3062 = vsel %vm274, %v3044, 0
    %v3065 = vsel %vm274, %v3046, 0
    %v3068 = vsel %vm274, %v3048, 0
    %v3071 = vsel %vm274, %v3050, 0
    %v3074 = vsel %vm274, %v3052, 0
    %v3077 = vsel %vm274, %v3054, 0
    %3079 = vmatpush.bf16.xpose.msra.mxu0 0
    %3080 = vmatpush.bf16.xpose.msra.mxu0 0
    %3081 = vmatpush.bf16.xpose.msra.mxu0 0
    %3082 = vmatpush.bf16.xpose.msra.mxu0 0
    %3083 = vmatpush.bf16.xpose.msra.mxu0 %v3077
    %3084 = vmatpush.bf16.xpose.msra.mxu0 %v3074
    %3085 = vmatpush.bf16.xpose.msra.mxu0 %v3071
    %3086 = vmatpush.bf16.xpose.msra.mxu0 %v3068
    %3087 = vmatmul.bf16.gmra.mxu0 %v3056
    %v3088 = vpop.f32.mrf.mxu0
    %v3089 = vadd.f32 0.0, %v3088
    %v3090 = vpop.f32.mrf.mxu0
    %v3091 = vadd.f32 0.0, %v3090
    %3092 = vmatmul.bf16.gmra.mxu0 %v3059
    %v3093 = vpop.f32.mrf.mxu0
    %v3094 = vadd.f32 0.0, %v3093
    %v3095 = vpop.f32.mrf.mxu0
    %v3096 = vadd.f32 0.0, %v3095
    %3097 = vmatmul.bf16.gmra.mxu0 %v3062
    %v3098 = vpop.f32.mrf.mxu0
    %v3099 = vadd.f32 0.0, %v3098
    %v3100 = vpop.f32.mrf.mxu0
    %v3101 = vadd.f32 0.0, %v3100
    %3102 = vmatmul.bf16.gmra.mxu0 %v3065
    %v3103 = vpop.f32.mrf.mxu0
    %v3104 = vadd.f32 0.0, %v3103
    %v3105 = vpop.f32.mrf.mxu0
    %v3106 = vadd.f32 0.0, %v3105
    %3107 = vdwg.mxu0
    %3108 = vrot.lane.b32.xlu0 %v2636, 112
    %v3109 = vpop.permute.xlu0 %3108
    %3110 = vrot.lane.b32.xlu0 %v2637, 112
    %v3111 = vpop.permute.xlu0 %3110
    %3112 = vrot.lane.b32.xlu0 %v2638, 112
    %v3113 = vpop.permute.xlu0 %3112
    %3114 = vrot.lane.b32.xlu0 %v2639, 112
    %v3115 = vpop.permute.xlu0 %3114
    %3116 = vrot.lane.b32.xlu0 %v2636, 80
    %v3117 = vpop.permute.xlu0 %3116
    %3118 = vrot.lane.b32.xlu0 %v2637, 80
    %v3119 = vpop.permute.xlu0 %3118
    %3120 = vrot.lane.b32.xlu0 %v2638, 80
    %v3121 = vpop.permute.xlu0 %3120
    %3122 = vrot.lane.b32.xlu0 %v2639, 80
    %v3123 = vpop.permute.xlu0 %3122
    %v3125 = vsel %vm274, %v3109, 0
    %v3128 = vsel %vm274, %v3111, 0
    %v3131 = vsel %vm274, %v3113, 0
    %v3134 = vsel %vm274, %v3115, 0
    %v3137 = vsel %vm274, %v3117, 0
    %v3140 = vsel %vm274, %v3119, 0
    %v3143 = vsel %vm274, %v3121, 0
    %v3146 = vsel %vm274, %v3123, 0
    %3148 = vmatpush.bf16.xpose.msra.mxu0 0
    %3149 = vmatpush.bf16.xpose.msra.mxu0 0
    %3150 = vmatpush.bf16.xpose.msra.mxu0 0
    %3151 = vmatpush.bf16.xpose.msra.mxu0 0
    %3152 = vmatpush.bf16.xpose.msra.mxu0 %v3146
    %3153 = vmatpush.bf16.xpose.msra.mxu0 %v3143
    %3154 = vmatpush.bf16.xpose.msra.mxu0 %v3140
    %3155 = vmatpush.bf16.xpose.msra.mxu0 %v3137
    %3156 = vmatmul.bf16.gmra.mxu0 %v3125
    %v3157 = vpop.f32.mrf.mxu0
    %v3158 = vadd.f32 0.0, %v3157
    %v3159 = vpop.f32.mrf.mxu0
    %v3160 = vadd.f32 0.0, %v3159
    %3161 = vmatmul.bf16.gmra.mxu0 %v3128
    %v3162 = vpop.f32.mrf.mxu0
    %v3163 = vadd.f32 0.0, %v3162
    %v3164 = vpop.f32.mrf.mxu0
    %v3165 = vadd.f32 0.0, %v3164
    %3166 = vmatmul.bf16.gmra.mxu0 %v3131
    %v3167 = vpop.f32.mrf.mxu0
    %v3168 = vadd.f32 0.0, %v3167
    %v3169 = vpop.f32.mrf.mxu0
    %v3170 = vadd.f32 0.0, %v3169
    %3171 = vmatmul.bf16.gmra.mxu0 %v3134
    %v3172 = vpop.f32.mrf.mxu0
    %v3173 = vadd.f32 0.0, %v3172
    %v3174 = vpop.f32.mrf.mxu0
    %v3175 = vadd.f32 0.0, %v3174
    %3176 = vdwg.mxu0
    %v3177 = vsel %vm409, %v3089, -inf
    %3178 = vmax.xlane.f32.xlu0 %v3177
    %v3179 = vpop.xlane.xlu0 %3178
    %v3180 = vsel %vm409, %v3091, -inf
    %3181 = vmax.xlane.f32.xlu0 %v3180
    %v3182 = vpop.xlane.xlu0 %3181
    %v3183 = vsel %vm409, %v3094, -inf
    %3184 = vmax.xlane.f32.xlu0 %v3183
    %v3185 = vpop.xlane.xlu0 %3184
    %v3186 = vsel %vm409, %v3096, -inf
    %3187 = vmax.xlane.f32.xlu0 %v3186
    %v3188 = vpop.xlane.xlu0 %3187
    %v3189 = vsel %vm409, %v3099, -inf
    %3190 = vmax.xlane.f32.xlu0 %v3189
    %v3191 = vpop.xlane.xlu0 %3190
    %v3192 = vsel %vm409, %v3101, -inf
    %3193 = vmax.xlane.f32.xlu0 %v3192
    %v3194 = vpop.xlane.xlu0 %3193
    %v3195 = vsel %vm409, %v3104, -inf
    %3196 = vmax.xlane.f32.xlu0 %v3195
    %v3197 = vpop.xlane.xlu0 %3196
    %v3198 = vsel %vm409, %v3106, -inf
    %3199 = vmax.xlane.f32.xlu0 %v3198
    %v3200 = vpop.xlane.xlu0 %3199
    %v3201 = vsel %vm409, %v3158, -inf
    %3202 = vmax.xlane.f32.xlu0 %v3201
    %v3203 = vpop.xlane.xlu0 %3202
    %v3204 = vsel %vm409, %v3160, -inf
    %3205 = vmax.xlane.f32.xlu0 %v3204
    %v3206 = vpop.xlane.xlu0 %3205
    %v3207 = vsel %vm409, %v3163, -inf
    %3208 = vmax.xlane.f32.xlu0 %v3207
    %v3209 = vpop.xlane.xlu0 %3208
    %v3210 = vsel %vm409, %v3165, -inf
    %3211 = vmax.xlane.f32.xlu0 %v3210
    %v3212 = vpop.xlane.xlu0 %3211
    %v3213 = vsel %vm409, %v3168, -inf
    %3214 = vmax.xlane.f32.xlu0 %v3213
    %v3215 = vpop.xlane.xlu0 %3214
    %v3216 = vsel %vm409, %v3170, -inf
    %3217 = vmax.xlane.f32.xlu0 %v3216
    %v3218 = vpop.xlane.xlu0 %3217
    %v3219 = vsel %vm409, %v3173, -inf
    %3220 = vmax.xlane.f32.xlu0 %v3219
    %v3221 = vpop.xlane.xlu0 %3220
    %v3222 = vsel %vm409, %v3175, -inf
    %3223 = vmax.xlane.f32.xlu0 %v3222
    %v3224 = vpop.xlane.xlu0 %3223
    %v3225 = vsub.f32 %v3089, %v3179
    %v3226 = vsub.f32 %v3091, %v3182
    %v3227 = vsub.f32 %v3094, %v3185
    %v3228 = vsub.f32 %v3096, %v3188
    %v3229 = vsub.f32 %v3099, %v3191
    %v3230 = vsub.f32 %v3101, %v3194
    %v3231 = vsub.f32 %v3104, %v3197
    %v3232 = vsub.f32 %v3106, %v3200
    %v3233 = vsub.f32 %v3158, %v3203
    %v3234 = vsub.f32 %v3160, %v3206
    %v3235 = vsub.f32 %v3163, %v3209
    %v3236 = vsub.f32 %v3165, %v3212
    %v3237 = vsub.f32 %v3168, %v3215
    %v3238 = vsub.f32 %v3170, %v3218
    %v3239 = vsub.f32 %v3173, %v3221
    %v3240 = vsub.f32 %v3175, %v3224
    %v3241 = vmul.f32 %v3225, 1.442695
    %v3242 = vpow.pop %v3241
    %v3243 = vmul.f32 %v3226, 1.442695
    %v3244 = vpow.pop %v3243
    %v3245 = vmul.f32 %v3227, 1.442695
    %v3246 = vpow.pop %v3245
    %v3247 = vmul.f32 %v3228, 1.442695
    %v3248 = vpow.pop %v3247
    %v3249 = vmul.f32 %v3229, 1.442695
    %v3250 = vpow.pop %v3249
    %v3251 = vmul.f32 %v3230, 1.442695
    %v3252 = vpow.pop %v3251
    %v3253 = vmul.f32 %v3231, 1.442695
    %v3254 = vpow.pop %v3253
    %v3255 = vmul.f32 %v3232, 1.442695
    %v3256 = vpow.pop %v3255
    %v3257 = vmul.f32 %v3233, 1.442695
    %v3258 = vpow.pop %v3257
    %v3259 = vmul.f32 %v3234, 1.442695
    %v3260 = vpow.pop %v3259
    %v3261 = vmul.f32 %v3235, 1.442695
    %v3262 = vpow.pop %v3261
    %v3263 = vmul.f32 %v3236, 1.442695
    %v3264 = vpow.pop %v3263
    %v3265 = vmul.f32 %v3237, 1.442695
    %v3266 = vpow.pop %v3265
    %v3267 = vmul.f32 %v3238, 1.442695
    %v3268 = vpow.pop %v3267
    %v3269 = vmul.f32 %v3239, 1.442695
    %v3270 = vpow.pop %v3269
    %v3271 = vmul.f32 %v3240, 1.442695
    %v3272 = vpow.pop %v3271
    %v3273 = vsel %vm409, %v3242, 0.0
    %3274 = vadd.xlane.f32.xlu0 %v3273
    %v3275 = vpop.xlane.xlu0 %3274
    %v3276 = vsel %vm409, %v3244, 0.0
    %3277 = vadd.xlane.f32.xlu0 %v3276
    %v3278 = vpop.xlane.xlu0 %3277
    %v3279 = vsel %vm409, %v3246, 0.0
    %3280 = vadd.xlane.f32.xlu0 %v3279
    %v3281 = vpop.xlane.xlu0 %3280
    %v3282 = vsel %vm409, %v3248, 0.0
    %3283 = vadd.xlane.f32.xlu0 %v3282
    %v3284 = vpop.xlane.xlu0 %3283
    %v3285 = vsel %vm409, %v3250, 0.0
    %3286 = vadd.xlane.f32.xlu0 %v3285
    %v3287 = vpop.xlane.xlu0 %3286
    %v3288 = vsel %vm409, %v3252, 0.0
    %3289 = vadd.xlane.f32.xlu0 %v3288
    %v3290 = vpop.xlane.xlu0 %3289
    %v3291 = vsel %vm409, %v3254, 0.0
    %3292 = vadd.xlane.f32.xlu0 %v3291
    %v3293 = vpop.xlane.xlu0 %3292
    %v3294 = vsel %vm409, %v3256, 0.0
    %3295 = vadd.xlane.f32.xlu0 %v3294
    %v3296 = vpop.xlane.xlu0 %3295
    %v3297 = vsel %vm409, %v3258, 0.0
    %3298 = vadd.xlane.f32.xlu0 %v3297
    %v3299 = vpop.xlane.xlu0 %3298
    %v3300 = vsel %vm409, %v3260, 0.0
    %3301 = vadd.xlane.f32.xlu0 %v3300
    %v3302 = vpop.xlane.xlu0 %3301
    %v3303 = vsel %vm409, %v3262, 0.0
    %3304 = vadd.xlane.f32.xlu0 %v3303
    %v3305 = vpop.xlane.xlu0 %3304
    %v3306 = vsel %vm409, %v3264, 0.0
    %3307 = vadd.xlane.f32.xlu0 %v3306
    %v3308 = vpop.xlane.xlu0 %3307
    %v3309 = vsel %vm409, %v3266, 0.0
    %3310 = vadd.xlane.f32.xlu0 %v3309
    %v3311 = vpop.xlane.xlu0 %3310
    %v3312 = vsel %vm409, %v3268, 0.0
    %3313 = vadd.xlane.f32.xlu0 %v3312
    %v3314 = vpop.xlane.xlu0 %3313
    %v3315 = vsel %vm409, %v3270, 0.0
    %3316 = vadd.xlane.f32.xlu0 %v3315
    %v3317 = vpop.xlane.xlu0 %3316
    %v3318 = vsel %vm409, %v3272, 0.0
    %3319 = vadd.xlane.f32.xlu0 %v3318
    %v3320 = vpop.xlane.xlu0 %3319
    %v3321 = vrcp.pop %v3275
    %v3322 = vrcp.pop %v3278
    %v3323 = vrcp.pop %v3281
    %v3324 = vrcp.pop %v3284
    %v3325 = vrcp.pop %v3287
    %v3326 = vrcp.pop %v3290
    %v3327 = vrcp.pop %v3293
    %v3328 = vrcp.pop %v3296
    %v3329 = vrcp.pop %v3299
    %v3330 = vrcp.pop %v3302
    %v3331 = vrcp.pop %v3305
    %v3332 = vrcp.pop %v3308
    %v3333 = vrcp.pop %v3311
    %v3334 = vrcp.pop %v3314
    %v3335 = vrcp.pop %v3317
    %v3336 = vrcp.pop %v3320
    %v3337 = vmul.f32 %v3242, %v3321
    %v3338 = vmul.f32 %v3244, %v3322
    %v3339 = vmul.f32 %v3246, %v3323
    %v3340 = vmul.f32 %v3248, %v3324
    %v3341 = vmul.f32 %v3250, %v3325
    %v3342 = vmul.f32 %v3252, %v3326
    %v3343 = vmul.f32 %v3254, %v3327
    %v3344 = vmul.f32 %v3256, %v3328
    %v3345 = vmul.f32 %v3258, %v3329
    %v3346 = vmul.f32 %v3260, %v3330
    %v3347 = vmul.f32 %v3262, %v3331
    %v3348 = vmul.f32 %v3264, %v3332
    %v3349 = vmul.f32 %v3266, %v3333
    %v3350 = vmul.f32 %v3268, %v3334
    %v3351 = vmul.f32 %v3270, %v3335
    %v3352 = vmul.f32 %v3272, %v3336
    %v3353 = vpack.c.bf16 %v3337, %v3337
    %v3354 = vpack.c.bf16 %v3338, %v3338
    %v3355 = vpack.c.bf16 %v3339, %v3339
    %v3356 = vpack.c.bf16 %v3340, %v3340
    %v3357 = vpack.c.bf16 %v3341, %v3341
    %v3358 = vpack.c.bf16 %v3342, %v3342
    %v3359 = vpack.c.bf16 %v3343, %v3343
    %v3360 = vpack.c.bf16 %v3344, %v3344
    %v3361 = vpack.c.bf16 %v3345, %v3345
    %v3362 = vpack.c.bf16 %v3346, %v3346
    %v3363 = vpack.c.bf16 %v3347, %v3347
    %v3364 = vpack.c.bf16 %v3348, %v3348
    %v3365 = vpack.c.bf16 %v3349, %v3349
    %v3366 = vpack.c.bf16 %v3350, %v3350
    %v3367 = vpack.c.bf16 %v3351, %v3351
    %v3368 = vpack.c.bf16 %v3352, %v3352
    %v3377 = vunpack.c.l.b16 %v3353
    %v3378 = vunpack.c.l.b16 %v3354
    %v3379 = vunpack.c.l.b16 %v3355
    %v3380 = vunpack.c.l.b16 %v3356
    %v3381 = vunpack.c.l.b16 %v3357
    %v3382 = vunpack.c.l.b16 %v3358
    %v3383 = vunpack.c.l.b16 %v3359
    %v3384 = vunpack.c.l.b16 %v3360
    %v3385 = vpack.c.b16 %v3378, %v3377
    %v3386 = vpack.c.b16 %v3380, %v3379
    %v3387 = vpack.c.b16 %v3382, %v3381
    %v3388 = vpack.c.b16 %v3384, %v3383
    %3389 = vrot.lane.b32.xlu0 %v2555, 48
    %v3390 = vpop.permute.xlu0 %3389
    %3391 = vrot.lane.b32.xlu0 %v2556, 48
    %v3392 = vpop.permute.xlu0 %3391
    %3393 = vrot.lane.b32.xlu0 %v2557, 48
    %v3394 = vpop.permute.xlu0 %3393
    %3395 = vrot.lane.b32.xlu0 %v2558, 48
    %v3396 = vpop.permute.xlu0 %3395
    %v3402 = vsel %vm409, %v3385, 0
    %v3405 = vsel %vm409, %v3386, 0
    %v3408 = vsel %vm409, %v3387, 0
    %v3411 = vsel %vm409, %v3388, 0
    %3413 = vmatpush.bf16.msra.mxu0 0
    %3414 = vmatpush.bf16.msra.mxu0 0
    %3415 = vmatpush.bf16.msra.mxu0 0
    %3416 = vmatpush.bf16.msra.mxu0 0
    %3417 = vmatpush.bf16.msra.mxu0 %v3396
    %3418 = vmatpush.bf16.msra.mxu0 %v3394
    %3419 = vmatpush.bf16.msra.mxu0 %v3392
    %3420 = vmatpush.bf16.msra.mxu0 %v3390
    %3421 = vmatmul.bf16.gmra.mxu0 %v3402
    %v3422 = vpop.f32.mrf.mxu0
    %v3423 = vadd.f32 0.0, %v3422
    %v3424 = vpop.f32.mrf.mxu0
    %v3425 = vadd.f32 0.0, %v3424
    %3426 = vmatmul.bf16.gmra.mxu0 %v3405
    %v3427 = vpop.f32.mrf.mxu0
    %v3428 = vadd.f32 0.0, %v3427
    %v3429 = vpop.f32.mrf.mxu0
    %v3430 = vadd.f32 0.0, %v3429
    %3431 = vmatmul.bf16.gmra.mxu0 %v3408
    %v3432 = vpop.f32.mrf.mxu0
    %v3433 = vadd.f32 0.0, %v3432
    %v3434 = vpop.f32.mrf.mxu0
    %v3435 = vadd.f32 0.0, %v3434
    %3436 = vmatmul.bf16.gmra.mxu0 %v3411
    %v3437 = vpop.f32.mrf.mxu0
    %v3438 = vadd.f32 0.0, %v3437
    %v3439 = vpop.f32.mrf.mxu0
    %v3440 = vadd.f32 0.0, %v3439
    %3441 = vdwg.mxu0
    %v3450 = vunpack.c.l.b16 %v3361
    %v3451 = vunpack.c.l.b16 %v3362
    %v3452 = vunpack.c.l.b16 %v3363
    %v3453 = vunpack.c.l.b16 %v3364
    %v3454 = vunpack.c.l.b16 %v3365
    %v3455 = vunpack.c.l.b16 %v3366
    %v3456 = vunpack.c.l.b16 %v3367
    %v3457 = vunpack.c.l.b16 %v3368
    %v3458 = vpack.c.b16 %v3451, %v3450
    %v3459 = vpack.c.b16 %v3453, %v3452
    %v3460 = vpack.c.b16 %v3455, %v3454
    %v3461 = vpack.c.b16 %v3457, %v3456
    %3462 = vrot.lane.b32.xlu0 %v2636, 48
    %v3463 = vpop.permute.xlu0 %3462
    %3464 = vrot.lane.b32.xlu0 %v2637, 48
    %v3465 = vpop.permute.xlu0 %3464
    %3466 = vrot.lane.b32.xlu0 %v2638, 48
    %v3467 = vpop.permute.xlu0 %3466
    %3468 = vrot.lane.b32.xlu0 %v2639, 48
    %v3469 = vpop.permute.xlu0 %3468
    %v3475 = vsel %vm409, %v3458, 0
    %v3478 = vsel %vm409, %v3459, 0
    %v3481 = vsel %vm409, %v3460, 0
    %v3484 = vsel %vm409, %v3461, 0
    %3486 = vmatpush.bf16.msra.mxu0 0
    %3487 = vmatpush.bf16.msra.mxu0 0
    %3488 = vmatpush.bf16.msra.mxu0 0
    %3489 = vmatpush.bf16.msra.mxu0 0
    %3490 = vmatpush.bf16.msra.mxu0 %v3469
    %3491 = vmatpush.bf16.msra.mxu0 %v3467
    %3492 = vmatpush.bf16.msra.mxu0 %v3465
    %3493 = vmatpush.bf16.msra.mxu0 %v3463
    %3494 = vmatmul.bf16.gmra.mxu0 %v3475
    %v3495 = vpop.f32.mrf.mxu0
    %v3496 = vadd.f32 0.0, %v3495
    %v3497 = vpop.f32.mrf.mxu0
    %v3498 = vadd.f32 0.0, %v3497
    %3499 = vmatmul.bf16.gmra.mxu0 %v3478
    %v3500 = vpop.f32.mrf.mxu0
    %v3501 = vadd.f32 0.0, %v3500
    %v3502 = vpop.f32.mrf.mxu0
    %v3503 = vadd.f32 0.0, %v3502
    %3504 = vmatmul.bf16.gmra.mxu0 %v3481
    %v3505 = vpop.f32.mrf.mxu0
    %v3506 = vadd.f32 0.0, %v3505
    %v3507 = vpop.f32.mrf.mxu0
    %v3508 = vadd.f32 0.0, %v3507
    %3509 = vmatmul.bf16.gmra.mxu0 %v3484
    %v3510 = vpop.f32.mrf.mxu0
    %v3511 = vadd.f32 0.0, %v3510
    %v3512 = vpop.f32.mrf.mxu0
    %v3513 = vadd.f32 0.0, %v3512
    %3514 = vdwg.mxu0
    %3531 = vrot.lane.b32.xlu0 %v3423, 16
    %v3532 = vpop.permute.xlu0 %3531
    %3533 = vrot.lane.b32.xlu0 %v3425, 16
    %v3534 = vpop.permute.xlu0 %3533
    %3535 = vrot.lane.b32.xlu0 %v3428, 16
    %v3536 = vpop.permute.xlu0 %3535
    %3537 = vrot.lane.b32.xlu0 %v3430, 16
    %v3538 = vpop.permute.xlu0 %3537
    %3539 = vrot.lane.b32.xlu0 %v3433, 16
    %v3540 = vpop.permute.xlu0 %3539
    %3541 = vrot.lane.b32.xlu0 %v3435, 16
    %v3542 = vpop.permute.xlu0 %3541
    %3543 = vrot.lane.b32.xlu0 %v3438, 16
    %v3544 = vpop.permute.xlu0 %3543
    %3545 = vrot.lane.b32.xlu0 %v3440, 16
    %v3546 = vpop.permute.xlu0 %3545
    %3547 = vrot.lane.b32.xlu0 %v3496, 16
    %v3548 = vpop.permute.xlu0 %3547
    %3549 = vrot.lane.b32.xlu0 %v3498, 16
    %v3550 = vpop.permute.xlu0 %3549
    %3551 = vrot.lane.b32.xlu0 %v3501, 16
    %v3552 = vpop.permute.xlu0 %3551
    %3553 = vrot.lane.b32.xlu0 %v3503, 16
    %v3554 = vpop.permute.xlu0 %3553
    %3555 = vrot.lane.b32.xlu0 %v3506, 16
    %v3556 = vpop.permute.xlu0 %3555
    %3557 = vrot.lane.b32.xlu0 %v3508, 16
    %v3558 = vpop.permute.xlu0 %3557
    %3559 = vrot.lane.b32.xlu0 %v3511, 16
    %v3560 = vpop.permute.xlu0 %3559
    %3561 = vrot.lane.b32.xlu0 %v3513, 16
    %v3562 = vpop.permute.xlu0 %3561
    %v3579 = vsel %vm274, %v2947, %v3532
    %v3580 = vsel %vm274, %v2949, %v3534
    %v3581 = vsel %vm274, %v2952, %v3536
    %v3582 = vsel %vm274, %v2954, %v3538
    %v3583 = vsel %vm274, %v2957, %v3540
    %v3584 = vsel %vm274, %v2959, %v3542
    %v3585 = vsel %vm274, %v2962, %v3544
    %v3586 = vsel %vm274, %v2964, %v3546
    %v3587 = vsel %vm274, %v3020, %v3548
    %v3588 = vsel %vm274, %v3022, %v3550
    %v3589 = vsel %vm274, %v3025, %v3552
    %v3590 = vsel %vm274, %v3027, %v3554
    %v3591 = vsel %vm274, %v3030, %v3556
    %v3592 = vsel %vm274, %v3032, %v3558
    %v3593 = vsel %vm274, %v3035, %v3560
    %v3594 = vsel %vm274, %v3037, %v3562
    %v3595 = vld [vmem:[%s1 + $0x38] sm:$0xf]
    %v3596 = vld [vmem:[%s1 + $0x3c] sm:$0xf]
    %v3597 = vld [vmem:[%s1 + $0x40] sm:$0xf]
    %v3598 = vld [vmem:[%s1 + $0x44] sm:$0xf]
    %v3599 = vpack.c.bf16 %v3580, %v3579
    %v3600 = vpack.c.bf16 %v3582, %v3581
    %v3601 = vpack.c.bf16 %v3584, %v3583
    %v3602 = vpack.c.bf16 %v3586, %v3585
    %v3603 = vpack.c.bf16 %v3588, %v3587
    %v3604 = vpack.c.bf16 %v3590, %v3589
    %v3605 = vpack.c.bf16 %v3592, %v3591
    %v3606 = vpack.c.bf16 %v3594, %v3593
    %v3607 = vld [vmem:[%s2 + $0x4] sm:$0x1]
    %v3608 = vperm.slane %v3607, 0
    %v3613 = vunpack.c.l.b16 %v3595
    %v3614 = vunpack.c.l.b16 %v3596
    %v3615 = vunpack.c.l.b16 %v3597
    %v3616 = vunpack.c.l.b16 %v3598
    %v3617 = vpack.c.b16 %v3614, %v3613
    %v3618 = vpack.c.b16 %v3616, %v3615
    %v3622 = vsel %vm156, %v3599, 0
    %v3625 = vsel %vm156, %v3600, 0
    %v3628 = vsel %vm156, %v3601, 0
    %v3631 = vsel %vm156, %v3602, 0
    %v3634 = vsel %vm156, %v3603, 0
    %v3637 = vsel %vm156, %v3604, 0
    %v3640 = vsel %vm156, %v3605, 0
    %v3643 = vsel %vm156, %v3606, 0
    %3645 = vmatpush.bf16.msra.mxu0 0
    %3646 = vmatpush.bf16.msra.mxu0 0
    %3647 = vmatpush.bf16.msra.mxu0 0
    %3648 = vmatpush.bf16.msra.mxu0 0
    %3649 = vmatpush.bf16.msra.mxu0 0
    %3650 = vmatpush.bf16.msra.mxu0 0
    %3651 = vmatpush.bf16.msra.mxu0 %v3618
    %3652 = vmatpush.bf16.msra.mxu0 %v3617
    %3653 = vmatmul.bf16.gmra.mxu0 %v3622
    %v3654 = vpop.f32.mrf.mxu0
    %v3655 = vadd.f32 %v3608, %v3654
    %v3656 = vpop.f32.mrf.mxu0
    %v3657 = vadd.f32 %v3608, %v3656
    %3658 = vmatmul.bf16.gmra.mxu0 %v3625
    %v3659 = vpop.f32.mrf.mxu0
    %v3660 = vadd.f32 %v3608, %v3659
    %v3661 = vpop.f32.mrf.mxu0
    %v3662 = vadd.f32 %v3608, %v3661
    %3663 = vmatmul.bf16.gmra.mxu0 %v3628
    %v3664 = vpop.f32.mrf.mxu0
    %v3665 = vadd.f32 %v3608, %v3664
    %v3666 = vpop.f32.mrf.mxu0
    %v3667 = vadd.f32 %v3608, %v3666
    %3668 = vmatmul.bf16.gmra.mxu0 %v3631
    %v3669 = vpop.f32.mrf.mxu0
    %v3670 = vadd.f32 %v3608, %v3669
    %v3671 = vpop.f32.mrf.mxu0
    %v3672 = vadd.f32 %v3608, %v3671
    %3673 = vmatmul.bf16.gmra.mxu0 %v3634
    %v3674 = vpop.f32.mrf.mxu0
    %v3675 = vadd.f32 %v3608, %v3674
    %v3676 = vpop.f32.mrf.mxu0
    %v3677 = vadd.f32 %v3608, %v3676
    %3678 = vmatmul.bf16.gmra.mxu0 %v3637
    %v3679 = vpop.f32.mrf.mxu0
    %v3680 = vadd.f32 %v3608, %v3679
    %v3681 = vpop.f32.mrf.mxu0
    %v3682 = vadd.f32 %v3608, %v3681
    %3683 = vmatmul.bf16.gmra.mxu0 %v3640
    %v3684 = vpop.f32.mrf.mxu0
    %v3685 = vadd.f32 %v3608, %v3684
    %v3686 = vpop.f32.mrf.mxu0
    %v3687 = vadd.f32 %v3608, %v3686
    %3688 = vmatmul.bf16.gmra.mxu0 %v3643
    %v3689 = vpop.f32.mrf.mxu0
    %v3690 = vadd.f32 %v3608, %v3689
    %v3691 = vpop.f32.mrf.mxu0
    %v3692 = vadd.f32 %v3608, %v3691
    %3693 = vdwg.mxu0
    %v3694 = vadd.f32 %v2408, %v3655
    %v3695 = vadd.f32 %v2409, %v3657
    %v3696 = vadd.f32 %v2410, %v3660
    %v3697 = vadd.f32 %v2411, %v3662
    %v3698 = vadd.f32 %v2412, %v3665
    %v3699 = vadd.f32 %v2413, %v3667
    %v3700 = vadd.f32 %v2414, %v3670
    %v3701 = vadd.f32 %v2415, %v3672
    %v3702 = vadd.f32 %v2416, %v3675
    %v3703 = vadd.f32 %v2417, %v3677
    %v3704 = vadd.f32 %v2418, %v3680
    %v3705 = vadd.f32 %v2419, %v3682
    %v3706 = vadd.f32 %v2420, %v3685
    %v3707 = vadd.f32 %v2421, %v3687
    %v3708 = vadd.f32 %v2422, %v3690
    %v3709 = vadd.f32 %v2423, %v3692
    %v3710 = vld [vmem:[%s2 + $0x6] sm:$0x1]
    %v3711 = vld [vmem:[%s2 + $0x8] sm:$0x1]
    %v3712 = vsel %vm156, %v3694, 0.0
    %3713 = vadd.xlane.f32.xlu0 %v3712
    %v3714 = vpop.xlane.xlu0 %3713
    %v3715 = vsel %vm156, %v3695, 0.0
    %3716 = vadd.xlane.f32.xlu0 %v3715
    %v3717 = vpop.xlane.xlu0 %3716
    %v3718 = vsel %vm156, %v3696, 0.0
    %3719 = vadd.xlane.f32.xlu0 %v3718
    %v3720 = vpop.xlane.xlu0 %3719
    %v3721 = vsel %vm156, %v3697, 0.0
    %3722 = vadd.xlane.f32.xlu0 %v3721
    %v3723 = vpop.xlane.xlu0 %3722
    %v3724 = vsel %vm156, %v3698, 0.0
    %3725 = vadd.xlane.f32.xlu0 %v3724
    %v3726 = vpop.xlane.xlu0 %3725
    %v3727 = vsel %vm156, %v3699, 0.0
    %3728 = vadd.xlane.f32.xlu0 %v3727
    %v3729 = vpop.xlane.xlu0 %3728
    %v3730 = vsel %vm156, %v3700, 0.0
    %3731 = vadd.xlane.f32.xlu0 %v3730
    %v3732 = vpop.xlane.xlu0 %3731
    %v3733 = vsel %vm156, %v3701, 0.0
    %3734 = vadd.xlane.f32.xlu0 %v3733
    %v3735 = vpop.xlane.xlu0 %3734
    %v3736 = vsel %vm156, %v3702, 0.0
    %3737 = vadd.xlane.f32.xlu0 %v3736
    %v3738 = vpop.xlane.xlu0 %3737
    %v3739 = vsel %vm156, %v3703, 0.0
    %3740 = vadd.xlane.f32.xlu0 %v3739
    %v3741 = vpop.xlane.xlu0 %3740
    %v3742 = vsel %vm156, %v3704, 0.0
    %3743 = vadd.xlane.f32.xlu0 %v3742
    %v3744 = vpop.xlane.xlu0 %3743
    %v3745 = vsel %vm156, %v3705, 0.0
    %3746 = vadd.xlane.f32.xlu0 %v3745
    %v3747 = vpop.xlane.xlu0 %3746
    %v3748 = vsel %vm156, %v3706, 0.0
    %3749 = vadd.xlane.f32.xlu0 %v3748
    %v3750 = vpop.xlane.xlu0 %3749
    %v3751 = vsel %vm156, %v3707, 0.0
    %3752 = vadd.xlane.f32.xlu0 %v3751
    %v3753 = vpop.xlane.xlu0 %3752
    %v3754 = vsel %vm156, %v3708, 0.0
    %3755 = vadd.xlane.f32.xlu0 %v3754
    %v3756 = vpop.xlane.xlu0 %3755
    %v3757 = vsel %vm156, %v3709, 0.0
    %3758 = vadd.xlane.f32.xlu0 %v3757
    %v3759 = vpop.xlane.xlu0 %3758
    %v3760 = vmul.f32 %v3714, %v1475
    %v3761 = vmul.f32 %v3717, %v1475
    %v3762 = vmul.f32 %v3720, %v1475
    %v3763 = vmul.f32 %v3723, %v1475
    %v3764 = vmul.f32 %v3726, %v1475
    %v3765 = vmul.f32 %v3729, %v1475
    %v3766 = vmul.f32 %v3732, %v1475
    %v3767 = vmul.f32 %v3735, %v1475
    %v3768 = vmul.f32 %v3738, %v1475
    %v3769 = vmul.f32 %v3741, %v1475
    %v3770 = vmul.f32 %v3744, %v1475
    %v3771 = vmul.f32 %v3747, %v1475
    %v3772 = vmul.f32 %v3750, %v1475
    %v3773 = vmul.f32 %v3753, %v1475
    %v3774 = vmul.f32 %v3756, %v1475
    %v3775 = vmul.f32 %v3759, %v1475
    %v3776 = vsub.f32 %v3694, %v3760
    %v3777 = vsub.f32 %v3695, %v3761
    %v3778 = vsub.f32 %v3696, %v3762
    %v3779 = vsub.f32 %v3697, %v3763
    %v3780 = vsub.f32 %v3698, %v3764
    %v3781 = vsub.f32 %v3699, %v3765
    %v3782 = vsub.f32 %v3700, %v3766
    %v3783 = vsub.f32 %v3701, %v3767
    %v3784 = vsub.f32 %v3702, %v3768
    %v3785 = vsub.f32 %v3703, %v3769
    %v3786 = vsub.f32 %v3704, %v3770
    %v3787 = vsub.f32 %v3705, %v3771
    %v3788 = vsub.f32 %v3706, %v3772
    %v3789 = vsub.f32 %v3707, %v3773
    %v3790 = vsub.f32 %v3708, %v3774
    %v3791 = vsub.f32 %v3709, %v3775
    %v3792 = vmul.f32 %v3776, %v3776
    %v3793 = vmul.f32 %v3777, %v3777
    %v3794 = vmul.f32 %v3778, %v3778
    %v3795 = vmul.f32 %v3779, %v3779
    %v3796 = vmul.f32 %v3780, %v3780
    %v3797 = vmul.f32 %v3781, %v3781
    %v3798 = vmul.f32 %v3782, %v3782
    %v3799 = vmul.f32 %v3783, %v3783
    %v3800 = vmul.f32 %v3784, %v3784
    %v3801 = vmul.f32 %v3785, %v3785
    %v3802 = vmul.f32 %v3786, %v3786
    %v3803 = vmul.f32 %v3787, %v3787
    %v3804 = vmul.f32 %v3788, %v3788
    %v3805 = vmul.f32 %v3789, %v3789
    %v3806 = vmul.f32 %v3790, %v3790
    %v3807 = vmul.f32 %v3791, %v3791
    %v3808 = vsel %vm156, %v3792, 0.0
    %3809 = vadd.xlane.f32.xlu0 %v3808
    %v3810 = vpop.xlane.xlu0 %3809
    %v3811 = vsel %vm156, %v3793, 0.0
    %3812 = vadd.xlane.f32.xlu0 %v3811
    %v3813 = vpop.xlane.xlu0 %3812
    %v3814 = vsel %vm156, %v3794, 0.0
    %3815 = vadd.xlane.f32.xlu0 %v3814
    %v3816 = vpop.xlane.xlu0 %3815
    %v3817 = vsel %vm156, %v3795, 0.0
    %3818 = vadd.xlane.f32.xlu0 %v3817
    %v3819 = vpop.xlane.xlu0 %3818
    %v3820 = vsel %vm156, %v3796, 0.0
    %3821 = vadd.xlane.f32.xlu0 %v3820
    %v3822 = vpop.xlane.xlu0 %3821
    %v3823 = vsel %vm156, %v3797, 0.0
    %3824 = vadd.xlane.f32.xlu0 %v3823
    %v3825 = vpop.xlane.xlu0 %3824
    %v3826 = vsel %vm156, %v3798, 0.0
    %3827 = vadd.xlane.f32.xlu0 %v3826
    %v3828 = vpop.xlane.xlu0 %3827
    %v3829 = vsel %vm156, %v3799, 0.0
    %3830 = vadd.xlane.f32.xlu0 %v3829
    %v3831 = vpop.xlane.xlu0 %3830
    %v3832 = vsel %vm156, %v3800, 0.0
    %3833 = vadd.xlane.f32.xlu0 %v3832
    %v3834 = vpop.xlane.xlu0 %3833
    %v3835 = vsel %vm156, %v3801, 0.0
    %3836 = vadd.xlane.f32.xlu0 %v3835
    %v3837 = vpop.xlane.xlu0 %3836
    %v3838 = vsel %vm156, %v3802, 0.0
    %3839 = vadd.xlane.f32.xlu0 %v3838
    %v3840 = vpop.xlane.xlu0 %3839
    %v3841 = vsel %vm156, %v3803, 0.0
    %3842 = vadd.xlane.f32.xlu0 %v3841
    %v3843 = vpop.xlane.xlu0 %3842
    %v3844 = vsel %vm156, %v3804, 0.0
    %3845 = vadd.xlane.f32.xlu0 %v3844
    %v3846 = vpop.xlane.xlu0 %3845
    %v3847 = vsel %vm156, %v3805, 0.0
    %3848 = vadd.xlane.f32.xlu0 %v3847
    %v3849 = vpop.xlane.xlu0 %3848
    %v3850 = vsel %vm156, %v3806, 0.0
    %3851 = vadd.xlane.f32.xlu0 %v3850
    %v3852 = vpop.xlane.xlu0 %3851
    %v3853 = vsel %vm156, %v3807, 0.0
    %3854 = vadd.xlane.f32.xlu0 %v3853
    %v3855 = vpop.xlane.xlu0 %3854
    %v3856 = vmul.f32 %v3810, %v1475
    %v3857 = vmul.f32 %v3813, %v1475
    %v3858 = vmul.f32 %v3816, %v1475
    %v3859 = vmul.f32 %v3819, %v1475
    %v3860 = vmul.f32 %v3822, %v1475
    %v3861 = vmul.f32 %v3825, %v1475
    %v3862 = vmul.f32 %v3828, %v1475
    %v3863 = vmul.f32 %v3831, %v1475
    %v3864 = vmul.f32 %v3834, %v1475
    %v3865 = vmul.f32 %v3837, %v1475
    %v3866 = vmul.f32 %v3840, %v1475
    %v3867 = vmul.f32 %v3843, %v1475
    %v3868 = vmul.f32 %v3846, %v1475
    %v3869 = vmul.f32 %v3849, %v1475
    %v3870 = vmul.f32 %v3852, %v1475
    %v3871 = vmul.f32 %v3855, %v1475
    %v3872 = vadd.f32 %v3856, 1e-05
    %v3873 = vadd.f32 %v3857, 1e-05
    %v3874 = vadd.f32 %v3858, 1e-05
    %v3875 = vadd.f32 %v3859, 1e-05
    %v3876 = vadd.f32 %v3860, 1e-05
    %v3877 = vadd.f32 %v3861, 1e-05
    %v3878 = vadd.f32 %v3862, 1e-05
    %v3879 = vadd.f32 %v3863, 1e-05
    %v3880 = vadd.f32 %v3864, 1e-05
    %v3881 = vadd.f32 %v3865, 1e-05
    %v3882 = vadd.f32 %v3866, 1e-05
    %v3883 = vadd.f32 %v3867, 1e-05
    %v3884 = vadd.f32 %v3868, 1e-05
    %v3885 = vadd.f32 %v3869, 1e-05
    %v3886 = vadd.f32 %v3870, 1e-05
    %v3887 = vadd.f32 %v3871, 1e-05
    %v3888 = vrsqrt.pop %v3872
    %v3889 = vmul.f32 %v3888, %v3872
    %v3890 = vmul.f32 %v3889, %v3888
    %v3891 = vmul.f32 0.5, %v3890
    %v3892 = vsub.f32 1.5, %v3891
    %v3893 = vmul.f32 %v3888, %v3892
    %vm3894 = vweird.f32 %v3872
    %vm3895 = vweird.f32 %v3888
    %vm3896 = vmor %vm3894, %vm3895
    %v3897 = vsel %vm3896, %v3888, %v3893
    %v3898 = vrsqrt.pop %v3873
    %v3899 = vmul.f32 %v3898, %v3873
    %v3900 = vmul.f32 %v3899, %v3898
    %v3901 = vmul.f32 0.5, %v3900
    %v3902 = vsub.f32 1.5, %v3901
    %v3903 = vmul.f32 %v3898, %v3902
    %vm3904 = vweird.f32 %v3873
    %vm3905 = vweird.f32 %v3898
    %vm3906 = vmor %vm3904, %vm3905
    %v3907 = vsel %vm3906, %v3898, %v3903
    %v3908 = vrsqrt.pop %v3874
    %v3909 = vmul.f32 %v3908, %v3874
    %v3910 = vmul.f32 %v3909, %v3908
    %v3911 = vmul.f32 0.5, %v3910
    %v3912 = vsub.f32 1.5, %v3911
    %v3913 = vmul.f32 %v3908, %v3912
    %vm3914 = vweird.f32 %v3874
    %vm3915 = vweird.f32 %v3908
    %vm3916 = vmor %vm3914, %vm3915
    %v3917 = vsel %vm3916, %v3908, %v3913
    %v3918 = vrsqrt.pop %v3875
    %v3919 = vmul.f32 %v3918, %v3875
    %v3920 = vmul.f32 %v3919, %v3918
    %v3921 = vmul.f32 0.5, %v3920
    %v3922 = vsub.f32 1.5, %v3921
    %v3923 = vmul.f32 %v3918, %v3922
    %vm3924 = vweird.f32 %v3875
    %vm3925 = vweird.f32 %v3918
    %vm3926 = vmor %vm3924, %vm3925
    %v3927 = vsel %vm3926, %v3918, %v3923
    %v3928 = vrsqrt.pop %v3876
    %v3929 = vmul.f32 %v3928, %v3876
    %v3930 = vmul.f32 %v3929, %v3928
    %v3931 = vmul.f32 0.5, %v3930
    %v3932 = vsub.f32 1.5, %v3931
    %v3933 = vmul.f32 %v3928, %v3932
    %vm3934 = vweird.f32 %v3876
    %vm3935 = vweird.f32 %v3928
    %vm3936 = vmor %vm3934, %vm3935
    %v3937 = vsel %vm3936, %v3928, %v3933
    %v3938 = vrsqrt.pop %v3877
    %v3939 = vmul.f32 %v3938, %v3877
    %v3940 = vmul.f32 %v3939, %v3938
    %v3941 = vmul.f32 0.5, %v3940
    %v3942 = vsub.f32 1.5, %v3941
    %v3943 = vmul.f32 %v3938, %v3942
    %vm3944 = vweird.f32 %v3877
    %vm3945 = vweird.f32 %v3938
    %vm3946 = vmor %vm3944, %vm3945
    %v3947 = vsel %vm3946, %v3938, %v3943
    %v3948 = vrsqrt.pop %v3878
    %v3949 = vmul.f32 %v3948, %v3878
    %v3950 = vmul.f32 %v3949, %v3948
    %v3951 = vmul.f32 0.5, %v3950
    %v3952 = vsub.f32 1.5, %v3951
    %v3953 = vmul.f32 %v3948, %v3952
    %vm3954 = vweird.f32 %v3878
    %vm3955 = vweird.f32 %v3948
    %vm3956 = vmor %vm3954, %vm3955
    %v3957 = vsel %vm3956, %v3948, %v3953
    %v3958 = vrsqrt.pop %v3879
    %v3959 = vmul.f32 %v3958, %v3879
    %v3960 = vmul.f32 %v3959, %v3958
    %v3961 = vmul.f32 0.5, %v3960
    %v3962 = vsub.f32 1.5, %v3961
    %v3963 = vmul.f32 %v3958, %v3962
    %vm3964 = vweird.f32 %v3879
    %vm3965 = vweird.f32 %v3958
    %vm3966 = vmor %vm3964, %vm3965
    %v3967 = vsel %vm3966, %v3958, %v3963
    %v3968 = vrsqrt.pop %v3880
    %v3969 = vmul.f32 %v3968, %v3880
    %v3970 = vmul.f32 %v3969, %v3968
    %v3971 = vmul.f32 0.5, %v3970
    %v3972 = vsub.f32 1.5, %v3971
    %v3973 = vmul.f32 %v3968, %v3972
    %vm3974 = vweird.f32 %v3880
    %vm3975 = vweird.f32 %v3968
    %vm3976 = vmor %vm3974, %vm3975
    %v3977 = vsel %vm3976, %v3968, %v3973
    %v3978 = vrsqrt.pop %v3881
    %v3979 = vmul.f32 %v3978, %v3881
    %v3980 = vmul.f32 %v3979, %v3978
    %v3981 = vmul.f32 0.5, %v3980
    %v3982 = vsub.f32 1.5, %v3981
    %v3983 = vmul.f32 %v3978, %v3982
    %vm3984 = vweird.f32 %v3881
    %vm3985 = vweird.f32 %v3978
    %vm3986 = vmor %vm3984, %vm3985
    %v3987 = vsel %vm3986, %v3978, %v3983
    %v3988 = vrsqrt.pop %v3882
    %v3989 = vmul.f32 %v3988, %v3882
    %v3990 = vmul.f32 %v3989, %v3988
    %v3991 = vmul.f32 0.5, %v3990
    %v3992 = vsub.f32 1.5, %v3991
    %v3993 = vmul.f32 %v3988, %v3992
    %vm3994 = vweird.f32 %v3882
    %vm3995 = vweird.f32 %v3988
    %vm3996 = vmor %vm3994, %vm3995
    %v3997 = vsel %vm3996, %v3988, %v3993
    %v3998 = vrsqrt.pop %v3883
    %v3999 = vmul.f32 %v3998, %v3883
    %v4000 = vmul.f32 %v3999, %v3998
    %v4001 = vmul.f32 0.5, %v4000
    %v4002 = vsub.f32 1.5, %v4001
    %v4003 = vmul.f32 %v3998, %v4002
    %vm4004 = vweird.f32 %v3883
    %vm4005 = vweird.f32 %v3998
    %vm4006 = vmor %vm4004, %vm4005
    %v4007 = vsel %vm4006, %v3998, %v4003
    %v4008 = vrsqrt.pop %v3884
    %v4009 = vmul.f32 %v4008, %v3884
    %v4010 = vmul.f32 %v4009, %v4008
    %v4011 = vmul.f32 0.5, %v4010
    %v4012 = vsub.f32 1.5, %v4011
    %v4013 = vmul.f32 %v4008, %v4012
    %vm4014 = vweird.f32 %v3884
    %vm4015 = vweird.f32 %v4008
    %vm4016 = vmor %vm4014, %vm4015
    %v4017 = vsel %vm4016, %v4008, %v4013
    %v4018 = vrsqrt.pop %v3885
    %v4019 = vmul.f32 %v4018, %v3885
    %v4020 = vmul.f32 %v4019, %v4018
    %v4021 = vmul.f32 0.5, %v4020
    %v4022 = vsub.f32 1.5, %v4021
    %v4023 = vmul.f32 %v4018, %v4022
    %vm4024 = vweird.f32 %v3885
    %vm4025 = vweird.f32 %v4018
    %vm4026 = vmor %vm4024, %vm4025
    %v4027 = vsel %vm4026, %v4018, %v4023
    %v4028 = vrsqrt.pop %v3886
    %v4029 = vmul.f32 %v4028, %v3886
    %v4030 = vmul.f32 %v4029, %v4028
    %v4031 = vmul.f32 0.5, %v4030
    %v4032 = vsub.f32 1.5, %v4031
    %v4033 = vmul.f32 %v4028, %v4032
    %vm4034 = vweird.f32 %v3886
    %vm4035 = vweird.f32 %v4028
    %vm4036 = vmor %vm4034, %vm4035
    %v4037 = vsel %vm4036, %v4028, %v4033
    %v4038 = vrsqrt.pop %v3887
    %v4039 = vmul.f32 %v4038, %v3887
    %v4040 = vmul.f32 %v4039, %v4038
    %v4041 = vmul.f32 0.5, %v4040
    %v4042 = vsub.f32 1.5, %v4041
    %v4043 = vmul.f32 %v4038, %v4042
    %vm4044 = vweird.f32 %v3887
    %vm4045 = vweird.f32 %v4038
    %vm4046 = vmor %vm4044, %vm4045
    %v4047 = vsel %vm4046, %v4038, %v4043
    %v4048 = vmul.f32 %v3776, %v3897
    %v4049 = vmul.f32 %v3777, %v3907
    %v4050 = vmul.f32 %v3778, %v3917
    %v4051 = vmul.f32 %v3779, %v3927
    %v4052 = vmul.f32 %v3780, %v3937
    %v4053 = vmul.f32 %v3781, %v3947
    %v4054 = vmul.f32 %v3782, %v3957
    %v4055 = vmul.f32 %v3783, %v3967
    %v4056 = vmul.f32 %v3784, %v3977
    %v4057 = vmul.f32 %v3785, %v3987
    %v4058 = vmul.f32 %v3786, %v3997
    %v4059 = vmul.f32 %v3787, %v4007
    %v4060 = vmul.f32 %v3788, %v4017
    %v4061 = vmul.f32 %v3789, %v4027
    %v4062 = vmul.f32 %v3790, %v4037
    %v4063 = vmul.f32 %v3791, %v4047
    %v4064 = vperm.slane %v3710, 0
    %v4065 = vmul.f32 %v4048, %v4064
    %v4066 = vmul.f32 %v4049, %v4064
    %v4067 = vmul.f32 %v4050, %v4064
    %v4068 = vmul.f32 %v4051, %v4064
    %v4069 = vmul.f32 %v4052, %v4064
    %v4070 = vmul.f32 %v4053, %v4064
    %v4071 = vmul.f32 %v4054, %v4064
    %v4072 = vmul.f32 %v4055, %v4064
    %v4073 = vmul.f32 %v4056, %v4064
    %v4074 = vmul.f32 %v4057, %v4064
    %v4075 = vmul.f32 %v4058, %v4064
    %v4076 = vmul.f32 %v4059, %v4064
    %v4077 = vmul.f32 %v4060, %v4064
    %v4078 = vmul.f32 %v4061, %v4064
    %v4079 = vmul.f32 %v4062, %v4064
    %v4080 = vmul.f32 %v4063, %v4064
    %v4081 = vperm.slane %v3711, 0
    %v4082 = vadd.f32 %v4065, %v4081
    %v4083 = vadd.f32 %v4066, %v4081
    %v4084 = vadd.f32 %v4067, %v4081
    %v4085 = vadd.f32 %v4068, %v4081
    %v4086 = vadd.f32 %v4069, %v4081
    %v4087 = vadd.f32 %v4070, %v4081
    %v4088 = vadd.f32 %v4071, %v4081
    %v4089 = vadd.f32 %v4072, %v4081
    %v4090 = vadd.f32 %v4073, %v4081
    %v4091 = vadd.f32 %v4074, %v4081
    %v4092 = vadd.f32 %v4075, %v4081
    %v4093 = vadd.f32 %v4076, %v4081
    %v4094 = vadd.f32 %v4077, %v4081
    %v4095 = vadd.f32 %v4078, %v4081
    %v4096 = vadd.f32 %v4079, %v4081
    %v4097 = vadd.f32 %v4080, %v4081
    %v4098 = vld [vmem:[%s1 + $0x58] sm:$0xf]
    %v4099 = vld [vmem:[%s1 + $0x5c] sm:$0xf]
    %v4100 = vld [vmem:[%s1 + $0x60] sm:$0xf]
    %v4101 = vld [vmem:[%s1 + $0x64] sm:$0xf]
    %v4102 = vld [vmem:[%s1 + $0x70] sm:$0xf]
    %v4103 = vld [vmem:[%s1 + $0x74] sm:$0xf]
    %v4104 = vpack.c.bf16 %v4083, %v4082
    %v4105 = vpack.c.bf16 %v4085, %v4084
    %v4106 = vpack.c.bf16 %v4087, %v4086
    %v4107 = vpack.c.bf16 %v4089, %v4088
    %v4108 = vpack.c.bf16 %v4091, %v4090
    %v4109 = vpack.c.bf16 %v4093, %v4092
    %v4110 = vpack.c.bf16 %v4095, %v4094
    %v4111 = vpack.c.bf16 %v4097, %v4096
    %v4112 = vld [vmem:[%s2 + $0xa] sm:$0x1]
    %v4113 = vperm.slane %v4112, 0
    %v4118 = vunpack.c.l.b16 %v4098
    %v4119 = vunpack.c.l.b16 %v4099
    %v4120 = vunpack.c.l.b16 %v4100
    %v4121 = vunpack.c.l.b16 %v4101
    %v4122 = vpack.c.b16 %v4119, %v4118
    %v4123 = vpack.c.b16 %v4121, %v4120
    %v4127 = vsel %vm156, %v4104, 0
    %v4130 = vsel %vm156, %v4105, 0
    %v4133 = vsel %vm156, %v4106, 0
    %v4136 = vsel %vm156, %v4107, 0
    %v4139 = vsel %vm156, %v4108, 0
    %v4142 = vsel %vm156, %v4109, 0
    %v4145 = vsel %vm156, %v4110, 0
    %v4148 = vsel %vm156, %v4111, 0
    %4150 = vmatpush.bf16.msra.mxu0 0
    %4151 = vmatpush.bf16.msra.mxu0 0
    %4152 = vmatpush.bf16.msra.mxu0 0
    %4153 = vmatpush.bf16.msra.mxu0 0
    %4154 = vmatpush.bf16.msra.mxu0 0
    %4155 = vmatpush.bf16.msra.mxu0 0
    %4156 = vmatpush.bf16.msra.mxu0 %v4123
    %4157 = vmatpush.bf16.msra.mxu0 %v4122
    %4158 = vmatmul.bf16.gmra.mxu0 %v4127
    %v4159 = vpop.f32.mrf.mxu0
    %v4160 = vadd.f32 %v4113, %v4159
    %v4161 = vpop.f32.mrf.mxu0
    %v4162 = vadd.f32 %v4113, %v4161
    %4163 = vmatmul.bf16.gmra.mxu0 %v4130
    %v4164 = vpop.f32.mrf.mxu0
    %v4165 = vadd.f32 %v4113, %v4164
    %v4166 = vpop.f32.mrf.mxu0
    %v4167 = vadd.f32 %v4113, %v4166
    %4168 = vmatmul.bf16.gmra.mxu0 %v4133
    %v4169 = vpop.f32.mrf.mxu0
    %v4170 = vadd.f32 %v4113, %v4169
    %v4171 = vpop.f32.mrf.mxu0
    %v4172 = vadd.f32 %v4113, %v4171
    %4173 = vmatmul.bf16.gmra.mxu0 %v4136
    %v4174 = vpop.f32.mrf.mxu0
    %v4175 = vadd.f32 %v4113, %v4174
    %v4176 = vpop.f32.mrf.mxu0
    %v4177 = vadd.f32 %v4113, %v4176
    %4178 = vmatmul.bf16.gmra.mxu0 %v4139
    %v4179 = vpop.f32.mrf.mxu0
    %v4180 = vadd.f32 %v4113, %v4179
    %v4181 = vpop.f32.mrf.mxu0
    %v4182 = vadd.f32 %v4113, %v4181
    %4183 = vmatmul.bf16.gmra.mxu0 %v4142
    %v4184 = vpop.f32.mrf.mxu0
    %v4185 = vadd.f32 %v4113, %v4184
    %v4186 = vpop.f32.mrf.mxu0
    %v4187 = vadd.f32 %v4113, %v4186
    %4188 = vmatmul.bf16.gmra.mxu0 %v4145
    %v4189 = vpop.f32.mrf.mxu0
    %v4190 = vadd.f32 %v4113, %v4189
    %v4191 = vpop.f32.mrf.mxu0
    %v4192 = vadd.f32 %v4113, %v4191
    %4193 = vmatmul.bf16.gmra.mxu0 %v4148
    %v4194 = vpop.f32.mrf.mxu0
    %v4195 = vadd.f32 %v4113, %v4194
    %v4196 = vpop.f32.mrf.mxu0
    %v4197 = vadd.f32 %v4113, %v4196
    %4198 = vdwg.mxu0
    %v4199 = vmax.f32 %v4160, 0.0
    %v4200 = vmax.f32 %v4162, 0.0
    %v4201 = vmax.f32 %v4165, 0.0
    %v4202 = vmax.f32 %v4167, 0.0
    %v4203 = vmax.f32 %v4170, 0.0
    %v4204 = vmax.f32 %v4172, 0.0
    %v4205 = vmax.f32 %v4175, 0.0
    %v4206 = vmax.f32 %v4177, 0.0
    %v4207 = vmax.f32 %v4180, 0.0
    %v4208 = vmax.f32 %v4182, 0.0
    %v4209 = vmax.f32 %v4185, 0.0
    %v4210 = vmax.f32 %v4187, 0.0
    %v4211 = vmax.f32 %v4190, 0.0
    %v4212 = vmax.f32 %v4192, 0.0
    %v4213 = vmax.f32 %v4195, 0.0
    %v4214 = vmax.f32 %v4197, 0.0
    %v4215 = vpack.c.bf16 %v4200, %v4199
    %v4216 = vpack.c.bf16 %v4202, %v4201
    %v4217 = vpack.c.bf16 %v4204, %v4203
    %v4218 = vpack.c.bf16 %v4206, %v4205
    %v4219 = vpack.c.bf16 %v4208, %v4207
    %v4220 = vpack.c.bf16 %v4210, %v4209
    %v4221 = vpack.c.bf16 %v4212, %v4211
    %v4222 = vpack.c.bf16 %v4214, %v4213
    %v4223 = vld [vmem:[%s2 + $0xc] sm:$0x1]
    %v4224 = vperm.slane %v4223, 0
    %v4227 = vunpack.c.l.b16 %v4102
    %v4228 = vunpack.c.l.b16 %v4103
    %v4229 = vpack.c.b16 %v4228, %v4227
    %v4232 = vsel %vm274, %v4215, 0
    %v4235 = vsel %vm274, %v4216, 0
    %v4238 = vsel %vm274, %v4217, 0
    %v4241 = vsel %vm274, %v4218, 0
    %v4244 = vsel %vm274, %v4219, 0
    %v4247 = vsel %vm274, %v4220, 0
    %v4250 = vsel %vm274, %v4221, 0
    %v4253 = vsel %vm274, %v4222, 0
    %4255 = vmatpush.bf16.msra.mxu0 0
    %4256 = vmatpush.bf16.msra.mxu0 0
    %4257 = vmatpush.bf16.msra.mxu0 0
    %4258 = vmatpush.bf16.msra.mxu0 0
    %4259 = vmatpush.bf16.msra.mxu0 0
    %4260 = vmatpush.bf16.msra.mxu0 0
    %4261 = vmatpush.bf16.msra.mxu0 0
    %4262 = vmatpush.bf16.msra.mxu0 %v4229
    %4263 = vmatmul.bf16.gmra.mxu0 %v4232
    %v4264 = vpop.f32.mrf.mxu0
    %v4265 = vadd.f32 %v4224, %v4264
    %v4266 = vpop.f32.mrf.mxu0
    %v4267 = vadd.f32 %v4224, %v4266
    %4268 = vmatmul.bf16.gmra.mxu0 %v4235
    %v4269 = vpop.f32.mrf.mxu0
    %v4270 = vadd.f32 %v4224, %v4269
    %v4271 = vpop.f32.mrf.mxu0
    %v4272 = vadd.f32 %v4224, %v4271
    %4273 = vmatmul.bf16.gmra.mxu0 %v4238
    %v4274 = vpop.f32.mrf.mxu0
    %v4275 = vadd.f32 %v4224, %v4274
    %v4276 = vpop.f32.mrf.mxu0
    %v4277 = vadd.f32 %v4224, %v4276
    %4278 = vmatmul.bf16.gmra.mxu0 %v4241
    %v4279 = vpop.f32.mrf.mxu0
    %v4280 = vadd.f32 %v4224, %v4279
    %v4281 = vpop.f32.mrf.mxu0
    %v4282 = vadd.f32 %v4224, %v4281
    %4283 = vmatmul.bf16.gmra.mxu0 %v4244
    %v4284 = vpop.f32.mrf.mxu0
    %v4285 = vadd.f32 %v4224, %v4284
    %v4286 = vpop.f32.mrf.mxu0
    %v4287 = vadd.f32 %v4224, %v4286
    %4288 = vmatmul.bf16.gmra.mxu0 %v4247
    %v4289 = vpop.f32.mrf.mxu0
    %v4290 = vadd.f32 %v4224, %v4289
    %v4291 = vpop.f32.mrf.mxu0
    %v4292 = vadd.f32 %v4224, %v4291
    %4293 = vmatmul.bf16.gmra.mxu0 %v4250
    %v4294 = vpop.f32.mrf.mxu0
    %v4295 = vadd.f32 %v4224, %v4294
    %v4296 = vpop.f32.mrf.mxu0
    %v4297 = vadd.f32 %v4224, %v4296
    %4298 = vmatmul.bf16.gmra.mxu0 %v4253
    %v4299 = vpop.f32.mrf.mxu0
    %v4300 = vadd.f32 %v4224, %v4299
    %v4301 = vpop.f32.mrf.mxu0
    %v4302 = vadd.f32 %v4224, %v4301
    %4303 = vdwg.mxu0
    %v4304 = vadd.f32 %v4082, %v4265
    %v4305 = vadd.f32 %v4083, %v4267
    %v4306 = vadd.f32 %v4084, %v4270
    %v4307 = vadd.f32 %v4085, %v4272
    %v4308 = vadd.f32 %v4086, %v4275
    %v4309 = vadd.f32 %v4087, %v4277
    %v4310 = vadd.f32 %v4088, %v4280
    %v4311 = vadd.f32 %v4089, %v4282
    %v4312 = vadd.f32 %v4090, %v4285
    %v4313 = vadd.f32 %v4091, %v4287
    %v4314 = vadd.f32 %v4092, %v4290
    %v4315 = vadd.f32 %v4093, %v4292
    %v4316 = vadd.f32 %v4094, %v4295
    %v4317 = vadd.f32 %v4095, %v4297
    %v4318 = vadd.f32 %v4096, %v4300
    %v4319 = vadd.f32 %v4097, %v4302
    %v4320 = vld [vmem:[%s2 + $0xe] sm:$0x1]
    %v4321 = vld [vmem:[%s2 + $0x10] sm:$0x1]
    %v4322 = vsel %vm156, %v4304, 0.0
    %4323 = vadd.xlane.f32.xlu0 %v4322
    %v4324 = vpop.xlane.xlu0 %4323
    %v4325 = vsel %vm156, %v4305, 0.0
    %4326 = vadd.xlane.f32.xlu0 %v4325
    %v4327 = vpop.xlane.xlu0 %4326
    %v4328 = vsel %vm156, %v4306, 0.0
    %4329 = vadd.xlane.f32.xlu0 %v4328
    %v4330 = vpop.xlane.xlu0 %4329
    %v4331 = vsel %vm156, %v4307, 0.0
    %4332 = vadd.xlane.f32.xlu0 %v4331
    %v4333 = vpop.xlane.xlu0 %4332
    %v4334 = vsel %vm156, %v4308, 0.0
    %4335 = vadd.xlane.f32.xlu0 %v4334
    %v4336 = vpop.xlane.xlu0 %4335
    %v4337 = vsel %vm156, %v4309, 0.0
    %4338 = vadd.xlane.f32.xlu0 %v4337
    %v4339 = vpop.xlane.xlu0 %4338
    %v4340 = vsel %vm156, %v4310, 0.0
    %4341 = vadd.xlane.f32.xlu0 %v4340
    %v4342 = vpop.xlane.xlu0 %4341
    %v4343 = vsel %vm156, %v4311, 0.0
    %4344 = vadd.xlane.f32.xlu0 %v4343
    %v4345 = vpop.xlane.xlu0 %4344
    %v4346 = vsel %vm156, %v4312, 0.0
    %4347 = vadd.xlane.f32.xlu0 %v4346
    %v4348 = vpop.xlane.xlu0 %4347
    %v4349 = vsel %vm156, %v4313, 0.0
    %4350 = vadd.xlane.f32.xlu0 %v4349
    %v4351 = vpop.xlane.xlu0 %4350
    %v4352 = vsel %vm156, %v4314, 0.0
    %4353 = vadd.xlane.f32.xlu0 %v4352
    %v4354 = vpop.xlane.xlu0 %4353
    %v4355 = vsel %vm156, %v4315, 0.0
    %4356 = vadd.xlane.f32.xlu0 %v4355
    %v4357 = vpop.xlane.xlu0 %4356
    %v4358 = vsel %vm156, %v4316, 0.0
    %4359 = vadd.xlane.f32.xlu0 %v4358
    %v4360 = vpop.xlane.xlu0 %4359
    %v4361 = vsel %vm156, %v4317, 0.0
    %4362 = vadd.xlane.f32.xlu0 %v4361
    %v4363 = vpop.xlane.xlu0 %4362
    %v4364 = vsel %vm156, %v4318, 0.0
    %4365 = vadd.xlane.f32.xlu0 %v4364
    %v4366 = vpop.xlane.xlu0 %4365
    %v4367 = vsel %vm156, %v4319, 0.0
    %4368 = vadd.xlane.f32.xlu0 %v4367
    %v4369 = vpop.xlane.xlu0 %4368
    %v4370 = vmul.f32 %v4324, %v1475
    %v4371 = vmul.f32 %v4327, %v1475
    %v4372 = vmul.f32 %v4330, %v1475
    %v4373 = vmul.f32 %v4333, %v1475
    %v4374 = vmul.f32 %v4336, %v1475
    %v4375 = vmul.f32 %v4339, %v1475
    %v4376 = vmul.f32 %v4342, %v1475
    %v4377 = vmul.f32 %v4345, %v1475
    %v4378 = vmul.f32 %v4348, %v1475
    %v4379 = vmul.f32 %v4351, %v1475
    %v4380 = vmul.f32 %v4354, %v1475
    %v4381 = vmul.f32 %v4357, %v1475
    %v4382 = vmul.f32 %v4360, %v1475
    %v4383 = vmul.f32 %v4363, %v1475
    %v4384 = vmul.f32 %v4366, %v1475
    %v4385 = vmul.f32 %v4369, %v1475
    %v4386 = vsub.f32 %v4304, %v4370
    %v4387 = vsub.f32 %v4305, %v4371
    %v4388 = vsub.f32 %v4306, %v4372
    %v4389 = vsub.f32 %v4307, %v4373
    %v4390 = vsub.f32 %v4308, %v4374
    %v4391 = vsub.f32 %v4309, %v4375
    %v4392 = vsub.f32 %v4310, %v4376
    %v4393 = vsub.f32 %v4311, %v4377
    %v4394 = vsub.f32 %v4312, %v4378
    %v4395 = vsub.f32 %v4313, %v4379
    %v4396 = vsub.f32 %v4314, %v4380
    %v4397 = vsub.f32 %v4315, %v4381
    %v4398 = vsub.f32 %v4316, %v4382
    %v4399 = vsub.f32 %v4317, %v4383
    %v4400 = vsub.f32 %v4318, %v4384
    %v4401 = vsub.f32 %v4319, %v4385
    %v4402 = vmul.f32 %v4386, %v4386
    %v4403 = vmul.f32 %v4387, %v4387
    %v4404 = vmul.f32 %v4388, %v4388
    %v4405 = vmul.f32 %v4389, %v4389
    %v4406 = vmul.f32 %v4390, %v4390
    %v4407 = vmul.f32 %v4391, %v4391
    %v4408 = vmul.f32 %v4392, %v4392
    %v4409 = vmul.f32 %v4393, %v4393
    %v4410 = vmul.f32 %v4394, %v4394
    %v4411 = vmul.f32 %v4395, %v4395
    %v4412 = vmul.f32 %v4396, %v4396
    %v4413 = vmul.f32 %v4397, %v4397
    %v4414 = vmul.f32 %v4398, %v4398
    %v4415 = vmul.f32 %v4399, %v4399
    %v4416 = vmul.f32 %v4400, %v4400
    %v4417 = vmul.f32 %v4401, %v4401
    %v4418 = vsel %vm156, %v4402, 0.0
    %4419 = vadd.xlane.f32.xlu0 %v4418
    %v4420 = vpop.xlane.xlu0 %4419
    %v4421 = vsel %vm156, %v4403, 0.0
    %4422 = vadd.xlane.f32.xlu0 %v4421
    %v4423 = vpop.xlane.xlu0 %4422
    %v4424 = vsel %vm156, %v4404, 0.0
    %4425 = vadd.xlane.f32.xlu0 %v4424
    %v4426 = vpop.xlane.xlu0 %4425
    %v4427 = vsel %vm156, %v4405, 0.0
    %4428 = vadd.xlane.f32.xlu0 %v4427
    %v4429 = vpop.xlane.xlu0 %4428
    %v4430 = vsel %vm156, %v4406, 0.0
    %4431 = vadd.xlane.f32.xlu0 %v4430
    %v4432 = vpop.xlane.xlu0 %4431
    %v4433 = vsel %vm156, %v4407, 0.0
    %4434 = vadd.xlane.f32.xlu0 %v4433
    %v4435 = vpop.xlane.xlu0 %4434
    %v4436 = vsel %vm156, %v4408, 0.0
    %4437 = vadd.xlane.f32.xlu0 %v4436
    %v4438 = vpop.xlane.xlu0 %4437
    %v4439 = vsel %vm156, %v4409, 0.0
    %4440 = vadd.xlane.f32.xlu0 %v4439
    %v4441 = vpop.xlane.xlu0 %4440
    %v4442 = vsel %vm156, %v4410, 0.0
    %4443 = vadd.xlane.f32.xlu0 %v4442
    %v4444 = vpop.xlane.xlu0 %4443
    %v4445 = vsel %vm156, %v4411, 0.0
    %4446 = vadd.xlane.f32.xlu0 %v4445
    %v4447 = vpop.xlane.xlu0 %4446
    %v4448 = vsel %vm156, %v4412, 0.0
    %4449 = vadd.xlane.f32.xlu0 %v4448
    %v4450 = vpop.xlane.xlu0 %4449
    %v4451 = vsel %vm156, %v4413, 0.0
    %4452 = vadd.xlane.f32.xlu0 %v4451
    %v4453 = vpop.xlane.xlu0 %4452
    %v4454 = vsel %vm156, %v4414, 0.0
    %4455 = vadd.xlane.f32.xlu0 %v4454
    %v4456 = vpop.xlane.xlu0 %4455
    %v4457 = vsel %vm156, %v4415, 0.0
    %4458 = vadd.xlane.f32.xlu0 %v4457
    %v4459 = vpop.xlane.xlu0 %4458
    %v4460 = vsel %vm156, %v4416, 0.0
    %4461 = vadd.xlane.f32.xlu0 %v4460
    %v4462 = vpop.xlane.xlu0 %4461
    %v4463 = vsel %vm156, %v4417, 0.0
    %4464 = vadd.xlane.f32.xlu0 %v4463
    %v4465 = vpop.xlane.xlu0 %4464
    %v4466 = vmul.f32 %v4420, %v1475
    %v4467 = vmul.f32 %v4423, %v1475
    %v4468 = vmul.f32 %v4426, %v1475
    %v4469 = vmul.f32 %v4429, %v1475
    %v4470 = vmul.f32 %v4432, %v1475
    %v4471 = vmul.f32 %v4435, %v1475
    %v4472 = vmul.f32 %v4438, %v1475
    %v4473 = vmul.f32 %v4441, %v1475
    %v4474 = vmul.f32 %v4444, %v1475
    %v4475 = vmul.f32 %v4447, %v1475
    %v4476 = vmul.f32 %v4450, %v1475
    %v4477 = vmul.f32 %v4453, %v1475
    %v4478 = vmul.f32 %v4456, %v1475
    %v4479 = vmul.f32 %v4459, %v1475
    %v4480 = vmul.f32 %v4462, %v1475
    %v4481 = vmul.f32 %v4465, %v1475
    %v4482 = vadd.f32 %v4466, 1e-05
    %v4483 = vadd.f32 %v4467, 1e-05
    %v4484 = vadd.f32 %v4468, 1e-05
    %v4485 = vadd.f32 %v4469, 1e-05
    %v4486 = vadd.f32 %v4470, 1e-05
    %v4487 = vadd.f32 %v4471, 1e-05
    %v4488 = vadd.f32 %v4472, 1e-05
    %v4489 = vadd.f32 %v4473, 1e-05
    %v4490 = vadd.f32 %v4474, 1e-05
    %v4491 = vadd.f32 %v4475, 1e-05
    %v4492 = vadd.f32 %v4476, 1e-05
    %v4493 = vadd.f32 %v4477, 1e-05
    %v4494 = vadd.f32 %v4478, 1e-05
    %v4495 = vadd.f32 %v4479, 1e-05
    %v4496 = vadd.f32 %v4480, 1e-05
    %v4497 = vadd.f32 %v4481, 1e-05
    %v4498 = vrsqrt.pop %v4482
    %v4499 = vmul.f32 %v4498, %v4482
    %v4500 = vmul.f32 %v4499, %v4498
    %v4501 = vmul.f32 0.5, %v4500
    %v4502 = vsub.f32 1.5, %v4501
    %v4503 = vmul.f32 %v4498, %v4502
    %vm4504 = vweird.f32 %v4482
    %vm4505 = vweird.f32 %v4498
    %vm4506 = vmor %vm4504, %vm4505
    %v4507 = vsel %vm4506, %v4498, %v4503
    %v4508 = vrsqrt.pop %v4483
    %v4509 = vmul.f32 %v4508, %v4483
    %v4510 = vmul.f32 %v4509, %v4508
    %v4511 = vmul.f32 0.5, %v4510
    %v4512 = vsub.f32 1.5, %v4511
    %v4513 = vmul.f32 %v4508, %v4512
    %vm4514 = vweird.f32 %v4483
    %vm4515 = vweird.f32 %v4508
    %vm4516 = vmor %vm4514, %vm4515
    %v4517 = vsel %vm4516, %v4508, %v4513
    %v4518 = vrsqrt.pop %v4484
    %v4519 = vmul.f32 %v4518, %v4484
    %v4520 = vmul.f32 %v4519, %v4518
    %v4521 = vmul.f32 0.5, %v4520
    %v4522 = vsub.f32 1.5, %v4521
    %v4523 = vmul.f32 %v4518, %v4522
    %vm4524 = vweird.f32 %v4484
    %vm4525 = vweird.f32 %v4518
    %vm4526 = vmor %vm4524, %vm4525
    %v4527 = vsel %vm4526, %v4518, %v4523
    %v4528 = vrsqrt.pop %v4485
    %v4529 = vmul.f32 %v4528, %v4485
    %v4530 = vmul.f32 %v4529, %v4528
    %v4531 = vmul.f32 0.5, %v4530
    %v4532 = vsub.f32 1.5, %v4531
    %v4533 = vmul.f32 %v4528, %v4532
    %vm4534 = vweird.f32 %v4485
    %vm4535 = vweird.f32 %v4528
    %vm4536 = vmor %vm4534, %vm4535
    %v4537 = vsel %vm4536, %v4528, %v4533
    %v4538 = vrsqrt.pop %v4486
    %v4539 = vmul.f32 %v4538, %v4486
    %v4540 = vmul.f32 %v4539, %v4538
    %v4541 = vmul.f32 0.5, %v4540
    %v4542 = vsub.f32 1.5, %v4541
    %v4543 = vmul.f32 %v4538, %v4542
    %vm4544 = vweird.f32 %v4486
    %vm4545 = vweird.f32 %v4538
    %vm4546 = vmor %vm4544, %vm4545
    %v4547 = vsel %vm4546, %v4538, %v4543
    %v4548 = vrsqrt.pop %v4487
    %v4549 = vmul.f32 %v4548, %v4487
    %v4550 = vmul.f32 %v4549, %v4548
    %v4551 = vmul.f32 0.5, %v4550
    %v4552 = vsub.f32 1.5, %v4551
    %v4553 = vmul.f32 %v4548, %v4552
    %vm4554 = vweird.f32 %v4487
    %vm4555 = vweird.f32 %v4548
    %vm4556 = vmor %vm4554, %vm4555
    %v4557 = vsel %vm4556, %v4548, %v4553
    %v4558 = vrsqrt.pop %v4488
    %v4559 = vmul.f32 %v4558, %v4488
    %v4560 = vmul.f32 %v4559, %v4558
    %v4561 = vmul.f32 0.5, %v4560
    %v4562 = vsub.f32 1.5, %v4561
    %v4563 = vmul.f32 %v4558, %v4562
    %vm4564 = vweird.f32 %v4488
    %vm4565 = vweird.f32 %v4558
    %vm4566 = vmor %vm4564, %vm4565
    %v4567 = vsel %vm4566, %v4558, %v4563
    %v4568 = vrsqrt.pop %v4489
    %v4569 = vmul.f32 %v4568, %v4489
    %v4570 = vmul.f32 %v4569, %v4568
    %v4571 = vmul.f32 0.5, %v4570
    %v4572 = vsub.f32 1.5, %v4571
    %v4573 = vmul.f32 %v4568, %v4572
    %vm4574 = vweird.f32 %v4489
    %vm4575 = vweird.f32 %v4568
    %vm4576 = vmor %vm4574, %vm4575
    %v4577 = vsel %vm4576, %v4568, %v4573
    %v4578 = vrsqrt.pop %v4490
    %v4579 = vmul.f32 %v4578, %v4490
    %v4580 = vmul.f32 %v4579, %v4578
    %v4581 = vmul.f32 0.5, %v4580
    %v4582 = vsub.f32 1.5, %v4581
    %v4583 = vmul.f32 %v4578, %v4582
    %vm4584 = vweird.f32 %v4490
    %vm4585 = vweird.f32 %v4578
    %vm4586 = vmor %vm4584, %vm4585
    %v4587 = vsel %vm4586, %v4578, %v4583
    %v4588 = vrsqrt.pop %v4491
    %v4589 = vmul.f32 %v4588, %v4491
    %v4590 = vmul.f32 %v4589, %v4588
    %v4591 = vmul.f32 0.5, %v4590
    %v4592 = vsub.f32 1.5, %v4591
    %v4593 = vmul.f32 %v4588, %v4592
    %vm4594 = vweird.f32 %v4491
    %vm4595 = vweird.f32 %v4588
    %vm4596 = vmor %vm4594, %vm4595
    %v4597 = vsel %vm4596, %v4588, %v4593
    %v4598 = vrsqrt.pop %v4492
    %v4599 = vmul.f32 %v4598, %v4492
    %v4600 = vmul.f32 %v4599, %v4598
    %v4601 = vmul.f32 0.5, %v4600
    %v4602 = vsub.f32 1.5, %v4601
    %v4603 = vmul.f32 %v4598, %v4602
    %vm4604 = vweird.f32 %v4492
    %vm4605 = vweird.f32 %v4598
    %vm4606 = vmor %vm4604, %vm4605
    %v4607 = vsel %vm4606, %v4598, %v4603
    %v4608 = vrsqrt.pop %v4493
    %v4609 = vmul.f32 %v4608, %v4493
    %v4610 = vmul.f32 %v4609, %v4608
    %v4611 = vmul.f32 0.5, %v4610
    %v4612 = vsub.f32 1.5, %v4611
    %v4613 = vmul.f32 %v4608, %v4612
    %vm4614 = vweird.f32 %v4493
    %vm4615 = vweird.f32 %v4608
    %vm4616 = vmor %vm4614, %vm4615
    %v4617 = vsel %vm4616, %v4608, %v4613
    %v4618 = vrsqrt.pop %v4494
    %v4619 = vmul.f32 %v4618, %v4494
    %v4620 = vmul.f32 %v4619, %v4618
    %v4621 = vmul.f32 0.5, %v4620
    %v4622 = vsub.f32 1.5, %v4621
    %v4623 = vmul.f32 %v4618, %v4622
    %vm4624 = vweird.f32 %v4494
    %vm4625 = vweird.f32 %v4618
    %vm4626 = vmor %vm4624, %vm4625
    %v4627 = vsel %vm4626, %v4618, %v4623
    %v4628 = vrsqrt.pop %v4495
    %v4629 = vmul.f32 %v4628, %v4495
    %v4630 = vmul.f32 %v4629, %v4628
    %v4631 = vmul.f32 0.5, %v4630
    %v4632 = vsub.f32 1.5, %v4631
    %v4633 = vmul.f32 %v4628, %v4632
    %vm4634 = vweird.f32 %v4495
    %vm4635 = vweird.f32 %v4628
    %vm4636 = vmor %vm4634, %vm4635
    %v4637 = vsel %vm4636, %v4628, %v4633
    %v4638 = vrsqrt.pop %v4496
    %v4639 = vmul.f32 %v4638, %v4496
    %v4640 = vmul.f32 %v4639, %v4638
    %v4641 = vmul.f32 0.5, %v4640
    %v4642 = vsub.f32 1.5, %v4641
    %v4643 = vmul.f32 %v4638, %v4642
    %vm4644 = vweird.f32 %v4496
    %vm4645 = vweird.f32 %v4638
    %vm4646 = vmor %vm4644, %vm4645
    %v4647 = vsel %vm4646, %v4638, %v4643
    %v4648 = vrsqrt.pop %v4497
    %v4649 = vmul.f32 %v4648, %v4497
    %v4650 = vmul.f32 %v4649, %v4648
    %v4651 = vmul.f32 0.5, %v4650
    %v4652 = vsub.f32 1.5, %v4651
    %v4653 = vmul.f32 %v4648, %v4652
    %vm4654 = vweird.f32 %v4497
    %vm4655 = vweird.f32 %v4648
    %vm4656 = vmor %vm4654, %vm4655
    %v4657 = vsel %vm4656, %v4648, %v4653
    %v4658 = vmul.f32 %v4386, %v4507
    %v4659 = vmul.f32 %v4387, %v4517
    %v4660 = vmul.f32 %v4388, %v4527
    %v4661 = vmul.f32 %v4389, %v4537
    %v4662 = vmul.f32 %v4390, %v4547
    %v4663 = vmul.f32 %v4391, %v4557
    %v4664 = vmul.f32 %v4392, %v4567
    %v4665 = vmul.f32 %v4393, %v4577
    %v4666 = vmul.f32 %v4394, %v4587
    %v4667 = vmul.f32 %v4395, %v4597
    %v4668 = vmul.f32 %v4396, %v4607
    %v4669 = vmul.f32 %v4397, %v4617
    %v4670 = vmul.f32 %v4398, %v4627
    %v4671 = vmul.f32 %v4399, %v4637
    %v4672 = vmul.f32 %v4400, %v4647
    %v4673 = vmul.f32 %v4401, %v4657
    %v4674 = vperm.slane %v4320, 0
    %v4675 = vmul.f32 %v4658, %v4674
    %v4676 = vmul.f32 %v4659, %v4674
    %v4677 = vmul.f32 %v4660, %v4674
    %v4678 = vmul.f32 %v4661, %v4674
    %v4679 = vmul.f32 %v4662, %v4674
    %v4680 = vmul.f32 %v4663, %v4674
    %v4681 = vmul.f32 %v4664, %v4674
    %v4682 = vmul.f32 %v4665, %v4674
    %v4683 = vmul.f32 %v4666, %v4674
    %v4684 = vmul.f32 %v4667, %v4674
    %v4685 = vmul.f32 %v4668, %v4674
    %v4686 = vmul.f32 %v4669, %v4674
    %v4687 = vmul.f32 %v4670, %v4674
    %v4688 = vmul.f32 %v4671, %v4674
    %v4689 = vmul.f32 %v4672, %v4674
    %v4690 = vmul.f32 %v4673, %v4674
    %v4691 = vperm.slane %v4321, 0
    %v4692 = vadd.f32 %v4675, %v4691
    %v4693 = vadd.f32 %v4676, %v4691
    %v4694 = vadd.f32 %v4677, %v4691
    %v4695 = vadd.f32 %v4678, %v4691
    %v4696 = vadd.f32 %v4679, %v4691
    %v4697 = vadd.f32 %v4680, %v4691
    %v4698 = vadd.f32 %v4681, %v4691
    %v4699 = vadd.f32 %v4682, %v4691
    %v4700 = vadd.f32 %v4683, %v4691
    %v4701 = vadd.f32 %v4684, %v4691
    %v4702 = vadd.f32 %v4685, %v4691
    %v4703 = vadd.f32 %v4686, %v4691
    %v4704 = vadd.f32 %v4687, %v4691
    %v4705 = vadd.f32 %v4688, %v4691
    %v4706 = vadd.f32 %v4689, %v4691
    %v4707 = vadd.f32 %v4690, %v4691
    %v4708 = vsel %vm156, %v4692, 0.0
    %4709 = vadd.xlane.f32.xlu0 %v4708
    %v4710 = vpop.xlane.xlu0 %4709
    %v4711 = vsel %vm156, %v4693, 0.0
    %4712 = vadd.xlane.f32.xlu0 %v4711
    %v4713 = vpop.xlane.xlu0 %4712
    %v4714 = vsel %vm156, %v4694, 0.0
    %4715 = vadd.xlane.f32.xlu0 %v4714
    %v4716 = vpop.xlane.xlu0 %4715
    %v4717 = vsel %vm156, %v4695, 0.0
    %4718 = vadd.xlane.f32.xlu0 %v4717
    %v4719 = vpop.xlane.xlu0 %4718
    %v4720 = vsel %vm156, %v4696, 0.0
    %4721 = vadd.xlane.f32.xlu0 %v4720
    %v4722 = vpop.xlane.xlu0 %4721
    %v4723 = vsel %vm156, %v4697, 0.0
    %4724 = vadd.xlane.f32.xlu0 %v4723
    %v4725 = vpop.xlane.xlu0 %4724
    %v4726 = vsel %vm156, %v4698, 0.0
    %4727 = vadd.xlane.f32.xlu0 %v4726
    %v4728 = vpop.xlane.xlu0 %4727
    %v4729 = vsel %vm156, %v4699, 0.0
    %4730 = vadd.xlane.f32.xlu0 %v4729
    %v4731 = vpop.xlane.xlu0 %4730
    %v4732 = vsel %vm156, %v4700, 0.0
    %4733 = vadd.xlane.f32.xlu0 %v4732
    %v4734 = vpop.xlane.xlu0 %4733
    %v4735 = vsel %vm156, %v4701, 0.0
    %4736 = vadd.xlane.f32.xlu0 %v4735
    %v4737 = vpop.xlane.xlu0 %4736
    %v4738 = vsel %vm156, %v4702, 0.0
    %4739 = vadd.xlane.f32.xlu0 %v4738
    %v4740 = vpop.xlane.xlu0 %4739
    %v4741 = vsel %vm156, %v4703, 0.0
    %4742 = vadd.xlane.f32.xlu0 %v4741
    %v4743 = vpop.xlane.xlu0 %4742
    %v4744 = vsel %vm156, %v4704, 0.0
    %4745 = vadd.xlane.f32.xlu0 %v4744
    %v4746 = vpop.xlane.xlu0 %4745
    %v4747 = vsel %vm156, %v4705, 0.0
    %4748 = vadd.xlane.f32.xlu0 %v4747
    %v4749 = vpop.xlane.xlu0 %4748
    %v4750 = vsel %vm156, %v4706, 0.0
    %4751 = vadd.xlane.f32.xlu0 %v4750
    %v4752 = vpop.xlane.xlu0 %4751
    %v4753 = vsel %vm156, %v4707, 0.0
    %4754 = vadd.xlane.f32.xlu0 %v4753
    %v4755 = vpop.xlane.xlu0 %4754
    %v4756 = vmul.f32 %v4710, %v1475
    %v4757 = vmul.f32 %v4713, %v1475
    %v4758 = vmul.f32 %v4716, %v1475
    %v4759 = vmul.f32 %v4719, %v1475
    %v4760 = vmul.f32 %v4722, %v1475
    %v4761 = vmul.f32 %v4725, %v1475
    %v4762 = vmul.f32 %v4728, %v1475
    %v4763 = vmul.f32 %v4731, %v1475
    %v4764 = vmul.f32 %v4734, %v1475
    %v4765 = vmul.f32 %v4737, %v1475
    %v4766 = vmul.f32 %v4740, %v1475
    %v4767 = vmul.f32 %v4743, %v1475
    %v4768 = vmul.f32 %v4746, %v1475
    %v4769 = vmul.f32 %v4749, %v1475
    %v4770 = vmul.f32 %v4752, %v1475
    %v4771 = vmul.f32 %v4755, %v1475
    %v4772 = vld [vmem:[%s2 + $0x18] sm:$0xff]
    %v4773 = vld [vmem:[%s2 + $0x20] sm:$0xff]
    %v4774 = vld [vmem:[%s2 + $0x28] sm:$0xff]
    %v4775 = vld [vmem:[%s2 + $0x30] sm:$0xff]
    %v4776 = vld [vmem:[%s2 + $0x38] sm:$0xff]
    %v4777 = vld [vmem:[%s2 + $0x40] sm:$0xff]
    %v4778 = vld [vmem:[%s2 + $0x48] sm:$0xff]
    %v4779 = vld [vmem:[%s2 + $0x50] sm:$0xff]
    %v4780 = vmul.f32 %v4756, %v4772
    %v4781 = vmul.f32 %v4757, %v4773
    %v4782 = vmul.f32 %v4758, %v4774
    %v4783 = vmul.f32 %v4759, %v4775
    %v4784 = vmul.f32 %v4760, %v4776
    %v4785 = vmul.f32 %v4761, %v4777
    %v4786 = vmul.f32 %v4762, %v4778
    %v4787 = vmul.f32 %v4763, %v4779
    %v4788 = vmul.f32 %v4764, %v4772
    %v4789 = vmul.f32 %v4765, %v4773
    %v4790 = vmul.f32 %v4766, %v4774
    %v4791 = vmul.f32 %v4767, %v4775
    %v4792 = vmul.f32 %v4768, %v4776
    %v4793 = vmul.f32 %v4769, %v4777
    %v4794 = vmul.f32 %v4770, %v4778
    %v4795 = vmul.f32 %v4771, %v4779
    %vm4796 = vcmask 31744
    %v4797 = vsel %vm4796, %v4780, 0.0
    %v4798 = vsel %vm4796, %v4781, 0.0
    %v4799 = vadd.f32 %v4797, %v4798
    %v4800 = vsel %vm4796, %v4782, 0.0
    %v4801 = vadd.f32 %v4799, %v4800
    %v4802 = vsel %vm4796, %v4783, 0.0
    %v4803 = vadd.f32 %v4801, %v4802
    %v4804 = vsel %vm4796, %v4784, 0.0
    %v4805 = vadd.f32 %v4803, %v4804
    %v4806 = vsel %vm4796, %v4785, 0.0
    %v4807 = vadd.f32 %v4805, %v4806
    %v4808 = vsel %vm4796, %v4786, 0.0
    %v4809 = vadd.f32 %v4807, %v4808
    %v4810 = vsel %vm4796, %v4787, 0.0
    %v4811 = vadd.f32 %v4809, %v4810
    %v4812 = vrot.slane %v4811, 4
    %v4813 = vadd.f32 %v4811, %v4812
    %v4814 = vrot.slane %v4813, 2
    %v4815 = vadd.f32 %v4813, %v4814
    %v4816 = vrot.slane %v4815, 1
    %v4817 = vadd.f32 %v4815, %v4816
    %v4818 = vsel %vm4796, %v4788, 0.0
    %v4819 = vsel %vm4796, %v4789, 0.0
    %v4820 = vadd.f32 %v4818, %v4819
    %v4821 = vsel %vm4796, %v4790, 0.0
    %v4822 = vadd.f32 %v4820, %v4821
    %v4823 = vsel %vm4796, %v4791, 0.0
    %v4824 = vadd.f32 %v4822, %v4823
    %v4825 = vsel %vm4796, %v4792, 0.0
    %v4826 = vadd.f32 %v4824, %v4825
    %v4827 = vsel %vm4796, %v4793, 0.0
    %v4828 = vadd.f32 %v4826, %v4827
    %v4829 = vsel %vm4796, %v4794, 0.0
    %v4830 = vadd.f32 %v4828, %v4829
    %v4831 = vsel %vm4796, %v4795, 0.0
    %v4832 = vadd.f32 %v4830, %v4831
    %v4833 = vrot.slane %v4832, 4
    %v4834 = vadd.f32 %v4832, %v4833
    %v4835 = vrot.slane %v4834, 2
    %v4836 = vadd.f32 %v4834, %v4835
    %v4837 = vrot.slane %v4836, 1
    %v4838 = vadd.f32 %v4836, %v4837
    %v4839 = vld [vmem:[%s2 + $0x11] sm:$0x1]
    %v4840 = vperm.slane %v4839, 0
    %v4841 = vadd.f32 %v4817, %v4840
    %v4842 = vadd.f32 %v4838, %v4840
    %v4845 = vrot.slane %v4842, 7
    %vm4846 = vcmask 1041409
    %v4847 = vsel %vm4846, %v4845, %v4841
    %vm4849 = vcmask 25600
    %v4850 = vsel %vm4849, %v4847, -inf
    %4851 = vmax.xlane.f32.xlu0 %v4850
    %v4852 = vpop.xlane.xlu0 %4851
    %v4854 = vrot.slane %v4852, 1
    %v4857 = vsub.f32 %v4841, %v4852
    %v4858 = vsub.f32 %v4842, %v4854
    %v4859 = vmul.f32 %v4857, 1.442695
    %v4860 = vpow.pop %v4859
    %v4861 = vmul.f32 %v4858, 1.442695
    %v4862 = vpow.pop %v4861
    %v4865 = vrot.slane %v4862, 7
    %v4866 = vsel %vm4846, %v4865, %v4860
    %v4868 = vsel %vm4849, %v4866, 0.0
    %4869 = vadd.xlane.f32.xlu0 %v4868
    %v4870 = vpop.xlane.xlu0 %4869
    %v4872 = vrot.slane %v4870, 1
    %v4875 = vrcp.pop %v4870
    %v4876 = vmul.f32 %v4870, %v4875
    %v4877 = vsub.f32 1.0, %v4876
    %v4878 = vmul.f32 %v4875, %v4877
    %v4879 = vadd.f32 %v4875, %v4878
    %vm4880 = vweird.f32 %v4870
    %vm4881 = vweird.f32 %v4875
    %vm4882 = vmor %vm4880, %vm4881
    %v4883 = vsel %vm4882, %v4875, %v4879
    %v4884 = vand.u32 2147483647, %v4870
    %vm4885 = vcmp.eq.f32.partialorder %v4884, 8.507059e+37
    %v4886 = vand.u32 %v4870, 2147483648
    %v4887 = vor.u32 1.1754944e-38, %v4886
    %v4888 = vsel %vm4885, %v4887, %v4883
    %v4889 = vmul.f32 %v4860, %v4888
    %v4890 = vrcp.pop %v4872
    %v4891 = vmul.f32 %v4872, %v4890
    %v4892 = vsub.f32 1.0, %v4891
    %v4893 = vmul.f32 %v4890, %v4892
    %v4894 = vadd.f32 %v4890, %v4893
    %vm4895 = vweird.f32 %v4872
    %vm4896 = vweird.f32 %v4890
    %vm4897 = vmor %vm4895, %vm4896
    %v4898 = vsel %vm4897, %v4890, %v4894
    %v4899 = vand.u32 2147483647, %v4872
    %vm4900 = vcmp.eq.f32.partialorder %v4899, 8.507059e+37
    %v4901 = vand.u32 %v4872, 2147483648
    %v4902 = vor.u32 1.1754944e-38, %v4901
    %v4903 = vsel %vm4900, %v4902, %v4898
    %v4904 = vmul.f32 %v4862, %v4903
    %v4907 = vrot.slane %v4904, 7
    %v4908 = vsel %vm4846, %v4907, %v4889
    %4910 = vst.msk [vmem:[#allocation2] sm:$0x3] %vm4849, %v4908
    // Predicated region
    $region14: #{topological_conv_transformer.1} parent=1 // pred_check
      _
    $region15: #{topological_conv_transformer.1} parent=1 // pred_check_branch
      %4912 = sbr.rel (0) target = $region17
    $region16: #{topological_conv_transformer.1} parent=1 // pred_region
      %4914 = vsyncadd [#allocation3], 0
      %s4916 = sshll.u32 [#allocation2], 4
      %s4917 = int_to_ptr.vmem [resolvable:$true] %s4916
      %s4918 = sshll.u32 %s3, 4
      %s4919 = int_to_ptr.hbm [resolvable:$true] %s4918
      %4921 = dma.vmem_to_hbm [thread:$0]  %s4917, 32, %s4919, [#allocation3]
    $region17: #{topological_conv_transformer.1} parent=1 // pred_fallthru
      _
    // Predicated region
    $region18: #{topological_conv_transformer.1} parent=1 // pred_check
      _
    $region19: #{topological_conv_transformer.1} parent=1 // pred_check_branch
      %4923 = sbr.rel (0) target = $region21
    $region20: #{topological_conv_transformer.1} parent=1 // pred_region
      %4925 = dma.done [#allocation3], 32
    $region21: #{topological_conv_transformer.1} parent=1 // pred_fallthru
      _
    %4926 = vsyncpa [#allocation3], 1

</llo_original>
